<compile_context>
chip_gen: v5e
topology: v5e:2x2
jax: 0.10.0
libtpu: 0.0.40
codegen_flags: <defaults>
</compile_context>

<pallas_src>
import numpy as np
import jax
import jax.numpy as jnp
from jax.experimental import pallas as pl
from jax.experimental.pallas import tpu as pltpu

# ----------------------------- config (small, deterministic) ----------------
CFG = dict(
    num_layers=4,          # -> dims_geo has 5 entries, 4 linear layers
    hidden_dim=64,
    octaves_pe=2,
    octaves_pe_views=2,
    skips=[2],
    rescale=2.0,
    feat_size=15,          # last layer out = feat_size + 1 = 16
    encoder_channels=17,   # dim_embed
    geometric_init=True,
)
DIM = 3
BIAS = 0.6
DIM_EMBED_INIT = DIM * CFG["octaves_pe"] * 2 + DIM          # 15
DIM_EMBED = CFG["encoder_channels"]                          # 17
DIMS_GEO = ([DIM_EMBED_INIT + DIM_EMBED]                     # 32
            + [CFG["hidden_dim"]] * (CFG["num_layers"] - 1)  # 64,64,64
            + [CFG["feat_size"] + 1])                        # 16
NUM_LAYERS = len(DIMS_GEO)                                   # 5


# ----------------------------- positional encoding (glue) -------------------
def positional_encoding(p, L):
    # matches PositionalEncoding.__call__ with pi = 1.0
    feats = [p]
    for i in range(L):
        feats.append(jnp.sin((2.0 ** i) * p))
        feats.append(jnp.cos((2.0 ** i) * p))
    return jnp.concatenate(feats, axis=-1)


# ----------------------------- parameter init (glue) ------------------------
def make_params(key):
    """Deterministic geometric init (+ weight_norm with g = ||v|| at init)."""
    params = []
    skips = CFG["skips"]
    for l in range(NUM_LAYERS - 1):
        if l + 1 in skips:
            out_dim = DIMS_GEO[l + 1] - DIMS_GEO[0]
        else:
            out_dim = DIMS_GEO[l + 1]
        in_dim = DIMS_GEO[l]
        key, k = jax.random.split(key)
        if l == NUM_LAYERS - 2:
            w = (np.sqrt(np.pi) / np.sqrt(DIMS_GEO[l])
                 + 1e-4 * jax.random.normal(k, (out_dim, in_dim), jnp.float32))
            b = jnp.full((out_dim,), -BIAS, jnp.float32)
        elif CFG["octaves_pe"] > 0 and l == 0:
            w = jnp.zeros((out_dim, in_dim), jnp.float32)
            w = w.at[:, :3].set(
                jax.random.normal(k, (out_dim, 3), jnp.float32)
                * (np.sqrt(2.0) / np.sqrt(out_dim)))
            b = jnp.zeros((out_dim,), jnp.float32)
        elif CFG["octaves_pe"] > 0 and l in skips:
            w = (jax.random.normal(k, (out_dim, in_dim), jnp.float32)
                 * (np.sqrt(2.0) / np.sqrt(out_dim)))
            w = w.at[:, -(DIMS_GEO[0] - 3):].set(0.0)
            b = jnp.zeros((out_dim,), jnp.float32)
        else:
            w = (jax.random.normal(k, (out_dim, in_dim), jnp.float32)
                 * (np.sqrt(2.0) / np.sqrt(out_dim)))
            b = jnp.zeros((out_dim,), jnp.float32)
        # weight_norm: v = w, g = ||v|| per output row  ->  W_eff == w at init
        g = jnp.sqrt(jnp.sum(w * w, axis=1, keepdims=True) + 1e-12)
        w_eff = w * (g / jnp.sqrt(jnp.sum(w * w, axis=1, keepdims=True) + 1e-12))
        # pass transposed (in, out) weights + (1, out) biases downstream
        params.append(w_eff.T.astype(jnp.float32))
        params.append(b.reshape(1, -1).astype(jnp.float32))
    return params  # [w0,b0,w1,b1,w2,b2,w3,b3]   (all f32)


def prep_kernel_params(params):
    """Split w2, fold in 1/sqrt(2), fuse [w0 | w2x] (shared LHS), cast bf16."""
    w0, b0, w1, b1, w2, b2, w3, b3 = params
    s = np.float32(1.0 / np.sqrt(2.0))
    h_in = w1.shape[1]                   # hidden width entering the skip (32)
    w2h = w2[:h_in, :] * s               # multiplies the running hidden state
    w2x = w2[h_in:, :] * s               # multiplies the layer-0 input (x_init)
    # fuse the two matmuls that share LHS x0 into one (32, 128) weight:
    #   x0 @ [w0 | w2x] -> lanes [:64] = layer-0 preact, lanes [64:] = skip term
    w02 = jnp.concatenate([w0, w2x], axis=1)
    bf = lambda w: w.astype(jnp.bfloat16)
    return [bf(w02), b0, bf(w1), b1, bf(w2h), b2, bf(w3), b3]


# ----------------------------- Pallas kernel --------------------------------
def _softplus100(v):
    # nn.Softplus(beta=100), stable & select-free:
    #   softplus(100 v)/100 = max(v, 0) + log1p(exp(-|100 v|)) / 100
    # exp/log1p run on the EUP slot; no jnp.where selects on the VPU.
    z = jnp.abs(v) * 100.0
    return jnp.maximum(v, 0.0) + jnp.log1p(jnp.exp(-z)) * np.float32(0.01)


def infer_occ_kernel(x_ref, w02_ref, b0_ref, w1_ref, b1_ref,
                     w2h_ref, b2_ref, w3_ref, b3_ref, o_ref):
    hid = b0_ref.shape[1]                               # 64 (layer-0 width)
    x0b = x_ref[...]                                    # (T, 32) bf16
    # fused matmul: layer-0 preact (lanes :64) + skip contribution (lanes 64:)
    y = jnp.dot(x0b, w02_ref[...], preferred_element_type=jnp.float32)  # (T,128)
    skip = y[:, hid:]                                   # (x_init/sqrt2) @ w2x
    h = _softplus100(y[:, :hid] + b0_ref[...])
    h = _softplus100(jnp.dot(h.astype(jnp.bfloat16), w1_ref[...],
                             preferred_element_type=jnp.float32) + b1_ref[...])
    # skip connection at l == 2:  cat([h, x_init]) / sqrt(2) @ w2
    #   == h @ w2h + skip          (1/sqrt(2) folded into w2h / w02's x-half)
    h = _softplus100(jnp.dot(h.astype(jnp.bfloat16), w2h_ref[...],
                             preferred_element_type=jnp.float32)
                     + skip + b2_ref[...])
    o_ref[...] = (jnp.dot(h.astype(jnp.bfloat16), w3_ref[...],
                          preferred_element_type=jnp.float32)
                  + b3_ref[...]).astype(o_ref.dtype)    # (T, 16) logit + feats


def infer_occ_pallas(x_rows, kparams, tile=8192):
    n_rows, d0 = x_rows.shape
    feat_dim = kparams[-2].shape[1]                     # 16

    # Tile selection: as large as possible (amortizes ~0.35 us per-grid-step
    # pipeline overhead and per-step MXU weight reloads).  Only clamp when the
    # problem is small so we still get >=2 grid steps (v7x has 2 TensorCores
    # sharding the parallel axis); keep the tile a multiple of 16 (bf16 rows).
    tile = int(tile)
    if n_rows < 2 * tile:
        tile = max(16, 16 * pl.cdiv(pl.cdiv(n_rows, 2), 16))
    grid_n = pl.cdiv(n_rows, tile)
    if grid_n > 1 and grid_n % 2 == 1:
        # prefer an even number of grid steps for v7x megacore
        tile = max(16, 16 * pl.cdiv(pl.cdiv(n_rows, grid_n + 1), 16))
        grid_n = pl.cdiv(n_rows, tile)

    # No wrapper-side jnp.pad: the tail block reads garbage OOB rows (masked
    # on store, never returned) instead of paying a full HBM read+write pass.

    # weights/biases are grid-invariant: constant index_map -> no re-DMA per step
    param_specs = [pl.BlockSpec(p.shape, lambda i: (0, 0)) for p in kparams]

    w_shapes = [kparams[i].shape for i in (0, 2, 4, 6)]
    flops = n_rows * 2 * sum(s[0] * s[1] for s in w_shapes)
    transc = n_rows * 2 * (kparams[1].shape[1] + kparams[3].shape[1]
                           + kparams[5].shape[1])
    bytes_acc = (n_rows * (d0 * x_rows.dtype.itemsize + feat_dim * 2)
                 + sum(int(p.size) * p.dtype.itemsize for p in kparams))

    feats = pl.pallas_call(
        infer_occ_kernel,
        out_shape=jax.ShapeDtypeStruct((n_rows, feat_dim), jnp.bfloat16),
        grid_spec=pltpu.PrefetchScalarGridSpec(
            num_scalar_prefetch=0,
            grid=(grid_n,),
            in_specs=[pl.BlockSpec((tile, d0), lambda i: (i, 0))] + param_specs,
            out_specs=pl.BlockSpec((tile, feat_dim), lambda i: (i, 0)),
        ),
        compiler_params=pltpu.CompilerParams(
            dimension_semantics=("parallel",),
            # v5e's 16 MiB scoped-VMEM default is the binding limit at 8K-row
            # tiles (activation temporaries ~= 1.1 KiB/row); raise it.
            vmem_limit_bytes=64 * 1024 * 1024,
            # let XLA fuse the PE/concat/cast producer of x into the call
            allow_input_fusion=[True] + [False] * len(kparams),
        ),
        cost_estimate=pl.CostEstimate(
            flops=int(flops), transcendentals=int(transc),
            bytes_accessed=int(bytes_acc)),
    )(x_rows, *kparams)

    # only_occupancy path: sigmoid(x[..., :1] * -10)  (fused by XLA, avoids a
    # 1-lane masked store inside the kernel)
    occ = jax.nn.sigmoid(feats[:, :1].astype(jnp.float32) * -10.0)
    return feats, occ


# ----------------------------- pure-JAX reference (f32) ---------------------
def _softplus100_ref(v):
    z = 100.0 * v
    return jnp.where(z > 20.0, v, jnp.log1p(jnp.exp(jnp.minimum(z, 20.0))) / 100.0)


def infer_occ_ref(x_rows, params):
    w0, b0, w1, b1, w2, b2, w3, b3 = params
    h = _softplus100_ref(x_rows @ w0 + b0)
    h = _softplus100_ref(h @ w1 + b1)
    h = jnp.concatenate([h, x_rows], axis=-1) / np.sqrt(2.0)
    h = _softplus100_ref(h @ w2 + b2)
    out = h @ w3 + b3
    return out, jax.nn.sigmoid(out[:, :1] * -10.0)


# ----------------------------- driver ---------------------------------------
if __name__ == "__main__":
    key = jax.random.PRNGKey(0)
    kp, kf, kw = jax.random.split(key, 3)

    B, N = 2, 512                                   # 1024 points total
    p = jax.random.normal(kp, (B, N, DIM), jnp.float32)          # 3D points
    feat_vec = jax.random.normal(kf, (B, N, DIM_EMBED), jnp.float32)

    params = make_params(kw)                 # f32 reference params
    kparams = prep_kernel_params(params)     # fused/scaled bf16 kernel params

    # glue: infer_occ preamble -> PE(p / rescale), concat with feature vector
    p_enc = positional_encoding(p / CFG["rescale"], CFG["octaves_pe"])
    x = jnp.concatenate([p_enc, feat_vec], axis=-1)              # (B, N, 32)
    x_rows_f32 = x.reshape(B * N, -1)                            # rows layout
    x_rows = x_rows_f32.astype(jnp.bfloat16)   # ship activations in bf16

    feats, occ = infer_occ_pallas(x_rows, kparams, tile=8192)
    feats = jax.block_until_ready(feats)
    occ = jax.block_until_ready(occ)

    feats_bn = feats.reshape(B, N, -1)               # (2, 512, 16) logit + feats
    occ_bn = occ.reshape(B, N, 1)                    # (2, 512, 1)  occupancy

    # sanity check vs pure-JAX f32 reference (bf16 matmul operands + bf16
    # output in the kernel -> slightly looser tolerance than pure f32)
    ref_feats, ref_occ = infer_occ_ref(x_rows_f32, params)
    np.testing.assert_allclose(np.asarray(feats.astype(jnp.float32)),
                               np.asarray(ref_feats), rtol=3e-2, atol=3e-2)
    np.testing.assert_allclose(np.asarray(occ), np.asarray(ref_occ),
                               rtol=3e-2, atol=3e-2)

    print("KERNEL_OK")
</pallas_src>

<mosaic_0001>
module attributes {stable_mosaic.version = 11 : i64} {
  func.func @infer_occ_kernel(%arg0: i32, %arg1: memref<512x32xbf16, #tpu.memory_space<vmem>>, %arg2: memref<32x128xbf16, #tpu.memory_space<vmem>>, %arg3: memref<1x64xf32, #tpu.memory_space<vmem>>, %arg4: memref<64x32xbf16, #tpu.memory_space<vmem>>, %arg5: memref<1x32xf32, #tpu.memory_space<vmem>>, %arg6: memref<32x64xbf16, #tpu.memory_space<vmem>>, %arg7: memref<1x64xf32, #tpu.memory_space<vmem>>, %arg8: memref<64x16xbf16, #tpu.memory_space<vmem>>, %arg9: memref<1x16xf32, #tpu.memory_space<vmem>>, %arg10: memref<512x16xbf16, #tpu.memory_space<vmem>>) attributes {dimension_semantics = [#tpu.dimension_semantics<parallel>], iteration_bounds = array<i64: 2>, scalar_prefetch = 0 : i64, scratch_operands = 0 : i64, tpu.core_type = #tpu.core_type<tc>, window_params = [{transform_indices = @transform_0, window_bounds = array<i64: 512, 32>}, {pipeline_mode = #tpu.pipeline_mode<synchronous>, transform_indices = @transform_1, window_bounds = array<i64: 32, 128>}, {pipeline_mode = #tpu.pipeline_mode<synchronous>, transform_indices = @transform_2, window_bounds = array<i64: 1, 64>}, {pipeline_mode = #tpu.pipeline_mode<synchronous>, transform_indices = @transform_3, window_bounds = array<i64: 64, 32>}, {pipeline_mode = #tpu.pipeline_mode<synchronous>, transform_indices = @transform_4, window_bounds = array<i64: 1, 32>}, {pipeline_mode = #tpu.pipeline_mode<synchronous>, transform_indices = @transform_5, window_bounds = array<i64: 32, 64>}, {pipeline_mode = #tpu.pipeline_mode<synchronous>, transform_indices = @transform_6, window_bounds = array<i64: 1, 64>}, {pipeline_mode = #tpu.pipeline_mode<synchronous>, transform_indices = @transform_7, window_bounds = array<i64: 64, 16>}, {pipeline_mode = #tpu.pipeline_mode<synchronous>, transform_indices = @transform_8, window_bounds = array<i64: 1, 16>}, {transform_indices = @transform_9, window_bounds = array<i64: 512, 16>}]} {
    %c0 = arith.constant 0 : index
    %c0_0 = arith.constant 0 : index
    %0 = vector.load %arg1[%c0, %c0_0] : memref<512x32xbf16, #tpu.memory_space<vmem>>, vector<512x32xbf16>
    %c0_1 = arith.constant 0 : index
    %c0_2 = arith.constant 0 : index
    %1 = vector.load %arg2[%c0_1, %c0_2] : memref<32x128xbf16, #tpu.memory_space<vmem>>, vector<32x128xbf16>
    %cst = arith.constant dense<0.000000e+00> : vector<512x128xf32>
    %2 = tpu.matmul %0, %1, %cst {dimension_numbers = #tpu.dot_dimension_numbers<[1], [0], [0], [1], [0, 0, 1, 1], [], []>} : vector<512x32xbf16>, vector<32x128xbf16>, vector<512x128xf32> -> vector<512x128xf32>
    %3 = vector.extract_strided_slice %2 {offsets = [0, 64], sizes = [512, 64], strides = [1, 1]} : vector<512x128xf32> to vector<512x64xf32>
    %4 = vector.extract_strided_slice %2 {offsets = [0, 0], sizes = [512, 64], strides = [1, 1]} : vector<512x128xf32> to vector<512x64xf32>
    %c0_3 = arith.constant 0 : index
    %c0_4 = arith.constant 0 : index
    %5 = vector.load %arg3[%c0_3, %c0_4] : memref<1x64xf32, #tpu.memory_space<vmem>>, vector<1x64xf32>
    %6 = vector.broadcast %5 : vector<1x64xf32> to vector<512x64xf32>
    %7 = arith.addf %4, %6 : vector<512x64xf32>
    %8 = math.absf %7 : vector<512x64xf32>
    %cst_5 = arith.constant 1.000000e+02 : f32
    %9 = vector.broadcast %cst_5 : f32 to vector<512x64xf32>
    %10 = arith.mulf %8, %9 : vector<512x64xf32>
    %cst_6 = arith.constant 0.000000e+00 : f32
    %11 = vector.broadcast %cst_6 : f32 to vector<512x64xf32>
    %12 = arith.maximumf %7, %11 : vector<512x64xf32>
    %cst_7 = arith.constant 0.000000e+00 : f32
    %13 = vector.broadcast %cst_7 : f32 to vector<512x64xf32>
    %14 = arith.subf %13, %10 : vector<512x64xf32>
    %15 = math.exp %14 : vector<512x64xf32>
    %16 = math.log1p %15 : vector<512x64xf32>
    %cst_8 = arith.constant 0.00999999977 : f32
    %17 = vector.broadcast %cst_8 : f32 to vector<512x64xf32>
    %18 = arith.mulf %16, %17 : vector<512x64xf32>
    %19 = arith.addf %12, %18 : vector<512x64xf32>
    %20 = arith.truncf %19 : vector<512x64xf32> to vector<512x64xbf16>
    %c0_9 = arith.constant 0 : index
    %c0_10 = arith.constant 0 : index
    %21 = vector.load %arg4[%c0_9, %c0_10] : memref<64x32xbf16, #tpu.memory_space<vmem>>, vector<64x32xbf16>
    %cst_11 = arith.constant dense<0.000000e+00> : vector<512x32xf32>
    %22 = tpu.matmul %20, %21, %cst_11 {dimension_numbers = #tpu.dot_dimension_numbers<[1], [0], [0], [1], [0, 0, 1, 1], [], []>} : vector<512x64xbf16>, vector<64x32xbf16>, vector<512x32xf32> -> vector<512x32xf32>
    %c0_12 = arith.constant 0 : index
    %c0_13 = arith.constant 0 : index
    %23 = vector.load %arg5[%c0_12, %c0_13] : memref<1x32xf32, #tpu.memory_space<vmem>>, vector<1x32xf32>
    %24 = vector.broadcast %23 : vector<1x32xf32> to vector<512x32xf32>
    %25 = arith.addf %22, %24 : vector<512x32xf32>
    %26 = math.absf %25 : vector<512x32xf32>
    %cst_14 = arith.constant 1.000000e+02 : f32
    %27 = vector.broadcast %cst_14 : f32 to vector<512x32xf32>
    %28 = arith.mulf %26, %27 : vector<512x32xf32>
    %cst_15 = arith.constant 0.000000e+00 : f32
    %29 = vector.broadcast %cst_15 : f32 to vector<512x32xf32>
    %30 = arith.maximumf %25, %29 : vector<512x32xf32>
    %cst_16 = arith.constant 0.000000e+00 : f32
    %31 = vector.broadcast %cst_16 : f32 to vector<512x32xf32>
    %32 = arith.subf %31, %28 : vector<512x32xf32>
    %33 = math.exp %32 : vector<512x32xf32>
    %34 = math.log1p %33 : vector<512x32xf32>
    %cst_17 = arith.constant 0.00999999977 : f32
    %35 = vector.broadcast %cst_17 : f32 to vector<512x32xf32>
    %36 = arith.mulf %34, %35 : vector<512x32xf32>
    %37 = arith.addf %30, %36 : vector<512x32xf32>
    %38 = arith.truncf %37 : vector<512x32xf32> to vector<512x32xbf16>
    %c0_18 = arith.constant 0 : index
    %c0_19 = arith.constant 0 : index
    %39 = vector.load %arg6[%c0_18, %c0_19] : memref<32x64xbf16, #tpu.memory_space<vmem>>, vector<32x64xbf16>
    %cst_20 = arith.constant dense<0.000000e+00> : vector<512x64xf32>
    %40 = tpu.matmul %38, %39, %cst_20 {dimension_numbers = #tpu.dot_dimension_numbers<[1], [0], [0], [1], [0, 0, 1, 1], [], []>} : vector<512x32xbf16>, vector<32x64xbf16>, vector<512x64xf32> -> vector<512x64xf32>
    %41 = arith.addf %40, %3 : vector<512x64xf32>
    %c0_21 = arith.constant 0 : index
    %c0_22 = arith.constant 0 : index
    %42 = vector.load %arg7[%c0_21, %c0_22] : memref<1x64xf32, #tpu.memory_space<vmem>>, vector<1x64xf32>
    %43 = vector.broadcast %42 : vector<1x64xf32> to vector<512x64xf32>
    %44 = arith.addf %41, %43 : vector<512x64xf32>
    %45 = math.absf %44 : vector<512x64xf32>
    %cst_23 = arith.constant 1.000000e+02 : f32
    %46 = vector.broadcast %cst_23 : f32 to vector<512x64xf32>
    %47 = arith.mulf %45, %46 : vector<512x64xf32>
    %cst_24 = arith.constant 0.000000e+00 : f32
    %48 = vector.broadcast %cst_24 : f32 to vector<512x64xf32>
    %49 = arith.maximumf %44, %48 : vector<512x64xf32>
    %cst_25 = arith.constant 0.000000e+00 : f32
    %50 = vector.broadcast %cst_25 : f32 to vector<512x64xf32>
    %51 = arith.subf %50, %47 : vector<512x64xf32>
    %52 = math.exp %51 : vector<512x64xf32>
    %53 = math.log1p %52 : vector<512x64xf32>
    %cst_26 = arith.constant 0.00999999977 : f32
    %54 = vector.broadcast %cst_26 : f32 to vector<512x64xf32>
    %55 = arith.mulf %53, %54 : vector<512x64xf32>
    %56 = arith.addf %49, %55 : vector<512x64xf32>
    %57 = arith.truncf %56 : vector<512x64xf32> to vector<512x64xbf16>
    %c0_27 = arith.constant 0 : index
    %c0_28 = arith.constant 0 : index
    %58 = vector.load %arg8[%c0_27, %c0_28] : memref<64x16xbf16, #tpu.memory_space<vmem>>, vector<64x16xbf16>
    %cst_29 = arith.constant dense<0.000000e+00> : vector<512x16xf32>
    %59 = tpu.matmul %57, %58, %cst_29 {dimension_numbers = #tpu.dot_dimension_numbers<[1], [0], [0], [1], [0, 0, 1, 1], [], []>} : vector<512x64xbf16>, vector<64x16xbf16>, vector<512x16xf32> -> vector<512x16xf32>
    %c0_30 = arith.constant 0 : index
    %c0_31 = arith.constant 0 : index
    %60 = vector.load %arg9[%c0_30, %c0_31] : memref<1x16xf32, #tpu.memory_space<vmem>>, vector<1x16xf32>
    %61 = vector.broadcast %60 : vector<1x16xf32> to vector<512x16xf32>
    %62 = arith.addf %59, %61 : vector<512x16xf32>
    %63 = arith.truncf %62 : vector<512x16xf32> to vector<512x16xbf16>
    %c0_32 = arith.constant 0 : index
    %c0_33 = arith.constant 0 : index
    %64 = vector.load %arg10[%c0_32, %c0_33] : memref<512x16xbf16, #tpu.memory_space<vmem>>, vector<512x16xbf16>
    tpu.vector_store %arg10[%c0_32, %c0_33], %63 {strides = array<i32>} : memref<512x16xbf16, #tpu.memory_space<vmem>>, vector<512x16xbf16>,
    return
  }
  func.func @transform_0(%arg0: i32) -> (i32, i32) {
    %c0_i32 = arith.constant 0 : i32
    %c0_i32_0 = arith.constant 0 : i32
    return %arg0, %c0_i32 : i32, i32
  }
  func.func @transform_1(%arg0: i32) -> (i32, i32) {
    %c0_i32 = arith.constant 0 : i32
    %c0_i32_0 = arith.constant 0 : i32
    %c0_i32_1 = arith.constant 0 : i32
    return %c0_i32, %c0_i32_0 : i32, i32
  }
  func.func @transform_2(%arg0: i32) -> (i32, i32) {
    %c0_i32 = arith.constant 0 : i32
    %c0_i32_0 = arith.constant 0 : i32
    %c0_i32_1 = arith.constant 0 : i32
    return %c0_i32, %c0_i32_0 : i32, i32
  }
  func.func @transform_3(%arg0: i32) -> (i32, i32) {
    %c0_i32 = arith.constant 0 : i32
    %c0_i32_0 = arith.constant 0 : i32
    %c0_i32_1 = arith.constant 0 : i32
    return %c0_i32, %c0_i32_0 : i32, i32
  }
  func.func @transform_4(%arg0: i32) -> (i32, i32) {
    %c0_i32 = arith.constant 0 : i32
    %c0_i32_0 = arith.constant 0 : i32
    %c0_i32_1 = arith.constant 0 : i32
    return %c0_i32, %c0_i32_0 : i32, i32
  }
  func.func @transform_5(%arg0: i32) -> (i32, i32) {
    %c0_i32 = arith.constant 0 : i32
    %c0_i32_0 = arith.constant 0 : i32
    %c0_i32_1 = arith.constant 0 : i32
    return %c0_i32, %c0_i32_0 : i32, i32
  }
  func.func @transform_6(%arg0: i32) -> (i32, i32) {
    %c0_i32 = arith.constant 0 : i32
    %c0_i32_0 = arith.constant 0 : i32
    %c0_i32_1 = arith.constant 0 : i32
    return %c0_i32, %c0_i32_0 : i32, i32
  }
  func.func @transform_7(%arg0: i32) -> (i32, i32) {
    %c0_i32 = arith.constant 0 : i32
    %c0_i32_0 = arith.constant 0 : i32
    %c0_i32_1 = arith.constant 0 : i32
    return %c0_i32, %c0_i32_0 : i32, i32
  }
  func.func @transform_8(%arg0: i32) -> (i32, i32) {
    %c0_i32 = arith.constant 0 : i32
    %c0_i32_0 = arith.constant 0 : i32
    %c0_i32_1 = arith.constant 0 : i32
    return %c0_i32, %c0_i32_0 : i32, i32
  }
  func.func @transform_9(%arg0: i32) -> (i32, i32) {
    %c0_i32 = arith.constant 0 : i32
    %c0_i32_0 = arith.constant 0 : i32
    return %arg0, %c0_i32 : i32, i32
  }
}

</mosaic_0001>

<llo_original>
// kernel: tpu_custom_call.1
$region0: #{tpu_custom_call.1}
  #allocation0 [shape = 'u32[]', space=smem, size = 0x4, offset = 0x4, fixed_abs, tag = 'smem constant byte address 0x4 - core index']
  #allocation1 [shape = 'u32[72,128]{1,0:T(1,128)}', space=vmem, size = 0x9000, scoped, tag = 'internal scratch']
  %s0 = inlined_call_operand.vmem [shape: bf16[1024,32], index: 0, kind: input, shape index: {}]
  %s1 = inlined_call_operand.vmem [shape: bf16[32,128], index: 1, kind: input, shape index: {}]
  %s2 = inlined_call_operand.vmem [shape: f32[1,64], index: 2, kind: input, shape index: {}]
  %s3 = inlined_call_operand.vmem [shape: bf16[64,32], index: 3, kind: input, shape index: {}]
  %s4 = inlined_call_operand.vmem [shape: f32[1,32], index: 4, kind: input, shape index: {}]
  %s5 = inlined_call_operand.vmem [shape: bf16[32,64], index: 5, kind: input, shape index: {}]
  %s6 = inlined_call_operand.vmem [shape: f32[1,64], index: 6, kind: input, shape index: {}]
  %s7 = inlined_call_operand.vmem [shape: bf16[64,16], index: 7, kind: input, shape index: {}]
  %s8 = inlined_call_operand.vmem [shape: f32[1,16], index: 8, kind: input, shape index: {}]
  %s9 = inlined_call_operand.vmem [shape: bf16[1024,16], index: 9, kind: output, shape index: {}]
  %s10 = sld [smem:[#allocation0]]
  $region69: #{tpu_custom_call.1} parent=0
    _
  %s12 = ssub.s32 1, %s10
  %s13 = scalar_select 0, %s12, %s10
  loop: start=0, step=1, limit=4
  $region2: #{tpu_custom_call.1} parent=0 // loop_pre_header
    _
  $region3: #{tpu_custom_call.1} parent=0 // loop_header
    %s15 = sphi 0, %s19
    %p16 = scmp.ge.s32.totalorder %s15, 4
    %s25 = sphi 0, %s27
    %s28 = sphi 0, %s25
    %s29 = sphi 0, %s28
    %s45 = sphi 0, %s29
    %s49 = sphi 0, %s49
    %s51 = sphi 0, %s49
    %s52 = sphi 0, %s51
    %s66 = sphi 0, %s52
    %s70 = sphi 0, %s70
    %s72 = sphi 0, %s70
    %s73 = sphi 0, %s72
    %s87 = sphi 0, %s73
    %s91 = sphi 0, %s91
    %s93 = sphi 0, %s91
    %s94 = sphi 0, %s93
    %s108 = sphi 0, %s94
    %s112 = sphi 0, %s112
    %s114 = sphi 0, %s112
    %s115 = sphi 0, %s114
    %s129 = sphi 0, %s115
    %s133 = sphi 0, %s133
    %s135 = sphi 0, %s133
    %s136 = sphi 0, %s135
    %s150 = sphi 0, %s136
    %s154 = sphi 0, %s154
    %s156 = sphi 0, %s154
    %s157 = sphi 0, %s156
    %s171 = sphi 0, %s157
    %s175 = sphi 0, %s175
    %s177 = sphi 0, %s175
    %s178 = sphi 0, %s177
    %s192 = sphi 0, %s178
    %s196 = sphi 0, %s196
    %s198 = sphi 0, %s196
    %s199 = sphi 0, %s198
    %s213 = sphi 0, %s199
    %s219 = sphi 0, %s221
    %s222 = sphi 0, %s219
    %s223 = sphi 0, %s222
    %s239 = sphi 0, %s223
  $region4: #{tpu_custom_call.1} parent=0 // loop_header_branch
    %18 = sbr.rel (%p16) target = $region8
  $region5: #{tpu_custom_call.1} parent=0 // loop_body
    %s20 = ssub.s32 %s15, 1
    %s21 = ssub.s32 %s15, 2
    %s22 = sadd.s32 %s15, 1
    %s23 = ssub.s32 %s15, %s22
    %p24 = scmp.eq.s32.totalorder %s23, 0
    %s26 = sadd.s32 %s25, 1
    %s27 = scalar_select %p24, %s25, %s26
    %p30 = pneg %p24
    %p31 = scmp.eq.s32.totalorder %s15, 1
    %p32 = por %p30, %p31
    %p33 = scmp.ne.s32.totalorder %s25, %s28
    %p34 = scmp.eq.s32.totalorder %s15, 0
    %p35 = por %p33, %p34
    %p36 = scmp.ne.s32.totalorder %s25, %s28
    %p37 = scmp.eq.s32.totalorder %s20, 1
    %p38 = por %p36, %p37
    %p39 = scmp.ne.s32.totalorder %s28, %s29
    %p40 = scmp.eq.s32.totalorder %s20, 0
    %p41 = por %p39, %p40
    %p42 = scmp.ne.s32.totalorder %s28, %s29
    %p43 = scmp.eq.s32.totalorder %s21, 1
    %p44 = por %p42, %p43
    %p46 = scmp.ne.s32.totalorder %s29, %s45
    %p47 = scmp.eq.s32.totalorder %s21, 0
    %p48 = por %p46, %p47
    %s50 = sadd.s32 %s49, 1
    %p53 = scmp.eq.s32.totalorder %s15, 1
    %p54 = scmp.ne.s32.totalorder %s49, %s51
    %p55 = scmp.eq.s32.totalorder %s15, 0
    %p56 = por %p54, %p55
    %p57 = scmp.ne.s32.totalorder %s49, %s51
    %p58 = scmp.eq.s32.totalorder %s20, 1
    %p59 = por %p57, %p58
    %p60 = scmp.ne.s32.totalorder %s51, %s52
    %p61 = scmp.eq.s32.totalorder %s20, 0
    %p62 = por %p60, %p61
    %p63 = scmp.ne.s32.totalorder %s51, %s52
    %p64 = scmp.eq.s32.totalorder %s21, 1
    %p65 = por %p63, %p64
    %p67 = scmp.ne.s32.totalorder %s52, %s66
    %p68 = scmp.eq.s32.totalorder %s21, 0
    %p69 = por %p67, %p68
    %s71 = sadd.s32 %s70, 1
    %p74 = scmp.eq.s32.totalorder %s15, 1
    %p75 = scmp.ne.s32.totalorder %s70, %s72
    %p76 = scmp.eq.s32.totalorder %s15, 0
    %p77 = por %p75, %p76
    %p78 = scmp.ne.s32.totalorder %s70, %s72
    %p79 = scmp.eq.s32.totalorder %s20, 1
    %p80 = por %p78, %p79
    %p81 = scmp.ne.s32.totalorder %s72, %s73
    %p82 = scmp.eq.s32.totalorder %s20, 0
    %p83 = por %p81, %p82
    %p84 = scmp.ne.s32.totalorder %s72, %s73
    %p85 = scmp.eq.s32.totalorder %s21, 1
    %p86 = por %p84, %p85
    %p88 = scmp.ne.s32.totalorder %s73, %s87
    %p89 = scmp.eq.s32.totalorder %s21, 0
    %p90 = por %p88, %p89
    %s92 = sadd.s32 %s91, 1
    %p95 = scmp.eq.s32.totalorder %s15, 1
    %p96 = scmp.ne.s32.totalorder %s91, %s93
    %p97 = scmp.eq.s32.totalorder %s15, 0
    %p98 = por %p96, %p97
    %p99 = scmp.ne.s32.totalorder %s91, %s93
    %p100 = scmp.eq.s32.totalorder %s20, 1
    %p101 = por %p99, %p100
    %p102 = scmp.ne.s32.totalorder %s93, %s94
    %p103 = scmp.eq.s32.totalorder %s20, 0
    %p104 = por %p102, %p103
    %p105 = scmp.ne.s32.totalorder %s93, %s94
    %p106 = scmp.eq.s32.totalorder %s21, 1
    %p107 = por %p105, %p106
    %p109 = scmp.ne.s32.totalorder %s94, %s108
    %p110 = scmp.eq.s32.totalorder %s21, 0
    %p111 = por %p109, %p110
    %s113 = sadd.s32 %s112, 1
    %p116 = scmp.eq.s32.totalorder %s15, 1
    %p117 = scmp.ne.s32.totalorder %s112, %s114
    %p118 = scmp.eq.s32.totalorder %s15, 0
    %p119 = por %p117, %p118
    %p120 = scmp.ne.s32.totalorder %s112, %s114
    %p121 = scmp.eq.s32.totalorder %s20, 1
    %p122 = por %p120, %p121
    %p123 = scmp.ne.s32.totalorder %s114, %s115
    %p124 = scmp.eq.s32.totalorder %s20, 0
    %p125 = por %p123, %p124
    %p126 = scmp.ne.s32.totalorder %s114, %s115
    %p127 = scmp.eq.s32.totalorder %s21, 1
    %p128 = por %p126, %p127
    %p130 = scmp.ne.s32.totalorder %s115, %s129
    %p131 = scmp.eq.s32.totalorder %s21, 0
    %p132 = por %p130, %p131
    %s134 = sadd.s32 %s133, 1
    %p137 = scmp.eq.s32.totalorder %s15, 1
    %p138 = scmp.ne.s32.totalorder %s133, %s135
    %p139 = scmp.eq.s32.totalorder %s15, 0
    %p140 = por %p138, %p139
    %p141 = scmp.ne.s32.totalorder %s133, %s135
    %p142 = scmp.eq.s32.totalorder %s20, 1
    %p143 = por %p141, %p142
    %p144 = scmp.ne.s32.totalorder %s135, %s136
    %p145 = scmp.eq.s32.totalorder %s20, 0
    %p146 = por %p144, %p145
    %p147 = scmp.ne.s32.totalorder %s135, %s136
    %p148 = scmp.eq.s32.totalorder %s21, 1
    %p149 = por %p147, %p148
    %p151 = scmp.ne.s32.totalorder %s136, %s150
    %p152 = scmp.eq.s32.totalorder %s21, 0
    %p153 = por %p151, %p152
    %s155 = sadd.s32 %s154, 1
    %p158 = scmp.eq.s32.totalorder %s15, 1
    %p159 = scmp.ne.s32.totalorder %s154, %s156
    %p160 = scmp.eq.s32.totalorder %s15, 0
    %p161 = por %p159, %p160
    %p162 = scmp.ne.s32.totalorder %s154, %s156
    %p163 = scmp.eq.s32.totalorder %s20, 1
    %p164 = por %p162, %p163
    %p165 = scmp.ne.s32.totalorder %s156, %s157
    %p166 = scmp.eq.s32.totalorder %s20, 0
    %p167 = por %p165, %p166
    %p168 = scmp.ne.s32.totalorder %s156, %s157
    %p169 = scmp.eq.s32.totalorder %s21, 1
    %p170 = por %p168, %p169
    %p172 = scmp.ne.s32.totalorder %s157, %s171
    %p173 = scmp.eq.s32.totalorder %s21, 0
    %p174 = por %p172, %p173
    %s176 = sadd.s32 %s175, 1
    %p179 = scmp.eq.s32.totalorder %s15, 1
    %p180 = scmp.ne.s32.totalorder %s175, %s177
    %p181 = scmp.eq.s32.totalorder %s15, 0
    %p182 = por %p180, %p181
    %p183 = scmp.ne.s32.totalorder %s175, %s177
    %p184 = scmp.eq.s32.totalorder %s20, 1
    %p185 = por %p183, %p184
    %p186 = scmp.ne.s32.totalorder %s177, %s178
    %p187 = scmp.eq.s32.totalorder %s20, 0
    %p188 = por %p186, %p187
    %p189 = scmp.ne.s32.totalorder %s177, %s178
    %p190 = scmp.eq.s32.totalorder %s21, 1
    %p191 = por %p189, %p190
    %p193 = scmp.ne.s32.totalorder %s178, %s192
    %p194 = scmp.eq.s32.totalorder %s21, 0
    %p195 = por %p193, %p194
    %s197 = sadd.s32 %s196, 1
    %p200 = scmp.eq.s32.totalorder %s15, 1
    %p201 = scmp.ne.s32.totalorder %s196, %s198
    %p202 = scmp.eq.s32.totalorder %s15, 0
    %p203 = por %p201, %p202
    %p204 = scmp.ne.s32.totalorder %s196, %s198
    %p205 = scmp.eq.s32.totalorder %s20, 1
    %p206 = por %p204, %p205
    %p207 = scmp.ne.s32.totalorder %s198, %s199
    %p208 = scmp.eq.s32.totalorder %s20, 0
    %p209 = por %p207, %p208
    %p210 = scmp.ne.s32.totalorder %s198, %s199
    %p211 = scmp.eq.s32.totalorder %s21, 1
    %p212 = por %p210, %p211
    %p214 = scmp.ne.s32.totalorder %s199, %s213
    %p215 = scmp.eq.s32.totalorder %s21, 0
    %p216 = por %p214, %p215
    %s217 = ssub.s32 %s15, %s22
    %p218 = scmp.eq.s32.totalorder %s217, 0
    %s220 = sadd.s32 %s219, 1
    %s221 = scalar_select %p218, %s219, %s220
    %p224 = pneg %p218
    %p225 = scmp.eq.s32.totalorder %s15, 1
    %p226 = por %p224, %p225
    %p227 = scmp.ne.s32.totalorder %s219, %s222
    %p228 = scmp.eq.s32.totalorder %s15, 0
    %p229 = por %p227, %p228
    %p230 = scmp.ne.s32.totalorder %s219, %s222
    %p231 = scmp.eq.s32.totalorder %s20, 1
    %p232 = por %p230, %p231
    %p233 = scmp.ne.s32.totalorder %s222, %s223
    %p234 = scmp.eq.s32.totalorder %s20, 0
    %p235 = por %p233, %p234
    %p236 = scmp.ne.s32.totalorder %s222, %s223
    %p237 = scmp.eq.s32.totalorder %s21, 1
    %p238 = por %p236, %p237
    %p240 = scmp.ne.s32.totalorder %s223, %s239
    %p241 = scmp.eq.s32.totalorder %s21, 0
    %p242 = por %p240, %p241
    %p243 = scmp.le.s32.totalorder 1, %s15
    %p244 = scmp.lt.s32.totalorder %s15, 3
    %p245 = pnand %p243, %p244
    %p246 = pneg %p245
    // Predicated region
    $region9: #{tpu_custom_call.1} parent=5 // pred_check
      _
    $region10: #{tpu_custom_call.1} parent=5 // pred_check_branch
      %248 = sbr.rel (%p245) target = $region12
    $region11: #{tpu_custom_call.1} parent=5 // pred_region
      %s249 = ssub.s32 %s15, 1
      // Predicated region
      $region13: #{tpu_custom_call.1} parent=11 // pred_check
        %p250 = pneg %p62
      $region14: #{tpu_custom_call.1} parent=11 // pred_check_branch
        %252 = sbr.rel (%p250) target = $region16
      $region15: #{tpu_custom_call.1} parent=11 // pred_region
        _
      $region16: #{tpu_custom_call.1} parent=11 // pred_fallthru
        _
      // Predicated region
      $region17: #{tpu_custom_call.1} parent=11 // pred_check
        %p253 = pneg %p83
      $region18: #{tpu_custom_call.1} parent=11 // pred_check_branch
        %255 = sbr.rel (%p253) target = $region20
      $region19: #{tpu_custom_call.1} parent=11 // pred_region
        _
      $region20: #{tpu_custom_call.1} parent=11 // pred_fallthru
        _
      // Predicated region
      $region21: #{tpu_custom_call.1} parent=11 // pred_check
        %p256 = pneg %p104
      $region22: #{tpu_custom_call.1} parent=11 // pred_check_branch
        %258 = sbr.rel (%p256) target = $region24
      $region23: #{tpu_custom_call.1} parent=11 // pred_region
        _
      $region24: #{tpu_custom_call.1} parent=11 // pred_fallthru
        _
      // Predicated region
      $region25: #{tpu_custom_call.1} parent=11 // pred_check
        %p259 = pneg %p125
      $region26: #{tpu_custom_call.1} parent=11 // pred_check_branch
        %261 = sbr.rel (%p259) target = $region28
      $region27: #{tpu_custom_call.1} parent=11 // pred_region
        _
      $region28: #{tpu_custom_call.1} parent=11 // pred_fallthru
        _
      // Predicated region
      $region29: #{tpu_custom_call.1} parent=11 // pred_check
        %p262 = pneg %p146
      $region30: #{tpu_custom_call.1} parent=11 // pred_check_branch
        %264 = sbr.rel (%p262) target = $region32
      $region31: #{tpu_custom_call.1} parent=11 // pred_region
        _
      $region32: #{tpu_custom_call.1} parent=11 // pred_fallthru
        _
      // Predicated region
      $region33: #{tpu_custom_call.1} parent=11 // pred_check
        %p265 = pneg %p167
      $region34: #{tpu_custom_call.1} parent=11 // pred_check_branch
        %267 = sbr.rel (%p265) target = $region36
      $region35: #{tpu_custom_call.1} parent=11 // pred_region
        _
      $region36: #{tpu_custom_call.1} parent=11 // pred_fallthru
        _
      // Predicated region
      $region37: #{tpu_custom_call.1} parent=11 // pred_check
        %p268 = pneg %p188
      $region38: #{tpu_custom_call.1} parent=11 // pred_check_branch
        %270 = sbr.rel (%p268) target = $region40
      $region39: #{tpu_custom_call.1} parent=11 // pred_region
        _
      $region40: #{tpu_custom_call.1} parent=11 // pred_fallthru
        _
      // Predicated region
      $region41: #{tpu_custom_call.1} parent=11 // pred_check
        %p271 = pneg %p209
      $region42: #{tpu_custom_call.1} parent=11 // pred_check_branch
        %273 = sbr.rel (%p271) target = $region44
      $region43: #{tpu_custom_call.1} parent=11 // pred_region
        _
      $region44: #{tpu_custom_call.1} parent=11 // pred_fallthru
        _
    $region12: #{tpu_custom_call.1} parent=5 // pred_fallthru
      _
    %p274 = scmp.lt.s32.totalorder %s15, 2
    // Predicated region
    $region45: #{tpu_custom_call.1} parent=5 // pred_check
      %p275 = pneg %p274
    $region46: #{tpu_custom_call.1} parent=5 // pred_check_branch
      %277 = sbr.rel (%p275) target = $region48
    $region47: #{tpu_custom_call.1} parent=5 // pred_region
      // Predicated region
      $region49: #{tpu_custom_call.1} parent=47 // pred_check
        %p278 = pneg %p35
      $region50: #{tpu_custom_call.1} parent=47 // pred_check_branch
        %280 = sbr.rel (%p278) target = $region52
      $region51: #{tpu_custom_call.1} parent=47 // pred_region
        %s281 = smul.u32 64, %s15
        %p282 = scmp.lt.s32.totalorder %s281, 127
        %s283 = scalar_select %p282, %s281, 127
        %s284 = smul.addr %s283, 4
        %s285 = scalar_lea.vmem %s0, %s284
        %s286 = smul.u32 64, %s15
      $region52: #{tpu_custom_call.1} parent=47 // pred_fallthru
        _
    $region48: #{tpu_custom_call.1} parent=5 // pred_fallthru
      _
    %p287 = scmp.le.s32.totalorder 1, %s15
    %p288 = scmp.lt.s32.totalorder %s15, 3
    %p289 = pnand %p287, %p288
    %p290 = pneg %p289
    // Predicated region
    $region53: #{tpu_custom_call.1} parent=5 // pred_check
      _
    $region54: #{tpu_custom_call.1} parent=5 // pred_check_branch
      %292 = sbr.rel (%p289) target = $region56
    $region55: #{tpu_custom_call.1} parent=5 // pred_region
      %s293 = ssub.s32 %s15, 1
      %s294 = smul.u32 64, %s20
      %p295 = scmp.lt.s32.totalorder %s294, 127
      %s296 = scalar_select %p295, %s294, 127
      %s297 = smul.addr %s296, 4
      %s298 = scalar_lea.vmem %s0, %s297
      %p299 = pneg %p41
      %p300 = pneg %p38
      %p301 = pneg %p62
      %p302 = pneg %p59
      %p303 = pneg %p83
      %p304 = pneg %p80
      %p305 = pneg %p104
      %p306 = pneg %p101
      %p307 = pneg %p125
      %p308 = pneg %p122
      %p309 = pneg %p146
      %p310 = pneg %p143
      %p311 = pneg %p167
      %p312 = pneg %p164
      %p313 = pneg %p188
      %p314 = pneg %p185
      %p315 = pneg %p209
      %p316 = pneg %p206
      %p317 = pneg %p235
      %p318 = pneg %p232
      %s319 = smul.u32 64, %s20
      %p320 = scmp.lt.s32.totalorder %s319, 127
      %s321 = scalar_select %p320, %s319, 127
      %s322 = smul.addr %s321, 4
      %s323 = scalar_lea.vmem %s9, %s322
      %s324 = smul.u32 64, %s20
      %p325 = scmp.lt.s32.totalorder %s324, 127
      %s326 = scalar_select %p325, %s324, 127
      %s327 = smul.addr %s326, 4
      %s328 = scalar_lea.vmem %s0, %s327
      %s329 = smul.u32 64, %s20
      %s330 = smul.u32 64, %s20
      %p331 = scmp.lt.s32.totalorder %s330, 127
      %s332 = scalar_select %p331, %s330, 127
      %s333 = smul.addr %s332, 4
      %s334 = scalar_lea.vmem %s9, %s333
      %s335 = smul.u32 64, %s20
      %v337 = vld [vmem:[%s328] sm:$0xf]
      %v338 = vld [vmem:[%s328 + $0x4] sm:$0xf]
      %v339 = vld [vmem:[%s328 + $0x8] sm:$0xf]
      %v340 = vld [vmem:[%s328 + $0xc] sm:$0xf]
      %v341 = vld [vmem:[%s328 + $0x10] sm:$0xf]
      %v342 = vld [vmem:[%s328 + $0x14] sm:$0xf]
      %v343 = vld [vmem:[%s328 + $0x18] sm:$0xf]
      %v344 = vld [vmem:[%s328 + $0x1c] sm:$0xf]
      %v345 = vld [vmem:[%s328 + $0x20] sm:$0xf]
      %v346 = vld [vmem:[%s328 + $0x24] sm:$0xf]
      %v347 = vld [vmem:[%s328 + $0x28] sm:$0xf]
      %v348 = vld [vmem:[%s328 + $0x2c] sm:$0xf]
      %v349 = vld [vmem:[%s328 + $0x30] sm:$0xf]
      %v350 = vld [vmem:[%s328 + $0x34] sm:$0xf]
      %v351 = vld [vmem:[%s328 + $0x38] sm:$0xf]
      %v352 = vld [vmem:[%s328 + $0x3c] sm:$0xf]
      %v353 = vld [vmem:[%s328 + $0x40] sm:$0xf]
      %v354 = vld [vmem:[%s328 + $0x44] sm:$0xf]
      %v355 = vld [vmem:[%s328 + $0x48] sm:$0xf]
      %v356 = vld [vmem:[%s328 + $0x4c] sm:$0xf]
      %v357 = vld [vmem:[%s328 + $0x50] sm:$0xf]
      %v358 = vld [vmem:[%s328 + $0x54] sm:$0xf]
      %v359 = vld [vmem:[%s328 + $0x58] sm:$0xf]
      %v360 = vld [vmem:[%s328 + $0x5c] sm:$0xf]
      %v361 = vld [vmem:[%s328 + $0x60] sm:$0xf]
      %v362 = vld [vmem:[%s328 + $0x64] sm:$0xf]
      %v363 = vld [vmem:[%s328 + $0x68] sm:$0xf]
      %v364 = vld [vmem:[%s328 + $0x6c] sm:$0xf]
      %v365 = vld [vmem:[%s328 + $0x70] sm:$0xf]
      %v366 = vld [vmem:[%s328 + $0x74] sm:$0xf]
      %v367 = vld [vmem:[%s328 + $0x78] sm:$0xf]
      %v368 = vld [vmem:[%s328 + $0x7c] sm:$0xf]
      %v369 = vld [vmem:[%s328 + $0x80] sm:$0xf]
      %v370 = vld [vmem:[%s328 + $0x84] sm:$0xf]
      %v371 = vld [vmem:[%s328 + $0x88] sm:$0xf]
      %v372 = vld [vmem:[%s328 + $0x8c] sm:$0xf]
      %v373 = vld [vmem:[%s328 + $0x90] sm:$0xf]
      %v374 = vld [vmem:[%s328 + $0x94] sm:$0xf]
      %v375 = vld [vmem:[%s328 + $0x98] sm:$0xf]
      %v376 = vld [vmem:[%s328 + $0x9c] sm:$0xf]
      %v377 = vld [vmem:[%s328 + $0xa0] sm:$0xf]
      %v378 = vld [vmem:[%s328 + $0xa4] sm:$0xf]
      %v379 = vld [vmem:[%s328 + $0xa8] sm:$0xf]
      %v380 = vld [vmem:[%s328 + $0xac] sm:$0xf]
      %v381 = vld [vmem:[%s328 + $0xb0] sm:$0xf]
      %v382 = vld [vmem:[%s328 + $0xb4] sm:$0xf]
      %v383 = vld [vmem:[%s328 + $0xb8] sm:$0xf]
      %v384 = vld [vmem:[%s328 + $0xbc] sm:$0xf]
      %v385 = vld [vmem:[%s328 + $0xc0] sm:$0xf]
      %v386 = vld [vmem:[%s328 + $0xc4] sm:$0xf]
      %v387 = vld [vmem:[%s328 + $0xc8] sm:$0xf]
      %v388 = vld [vmem:[%s328 + $0xcc] sm:$0xf]
      %v389 = vld [vmem:[%s328 + $0xd0] sm:$0xf]
      %v390 = vld [vmem:[%s328 + $0xd4] sm:$0xf]
      %v391 = vld [vmem:[%s328 + $0xd8] sm:$0xf]
      %v392 = vld [vmem:[%s328 + $0xdc] sm:$0xf]
      %v393 = vld [vmem:[%s328 + $0xe0] sm:$0xf]
      %v394 = vld [vmem:[%s328 + $0xe4] sm:$0xf]
      %v395 = vld [vmem:[%s328 + $0xe8] sm:$0xf]
      %v396 = vld [vmem:[%s328 + $0xec] sm:$0xf]
      %v397 = vld [vmem:[%s328 + $0xf0] sm:$0xf]
      %v398 = vld [vmem:[%s328 + $0xf4] sm:$0xf]
      %v399 = vld [vmem:[%s328 + $0xf8] sm:$0xf]
      %v400 = vld [vmem:[%s328 + $0xfc] sm:$0xf]
      %v401 = vld [vmem:[%s1] sm:$0xf]
      %v402 = vld [vmem:[%s1 + $0x4] sm:$0xf]
      %v403 = vld [vmem:[%s1 + $0x8] sm:$0xf]
      %v404 = vld [vmem:[%s1 + $0xc] sm:$0xf]
      %v469 = vunpack.c.l.b16 %v337
      %v470 = vunpack.c.l.b16 %v338
      %v471 = vunpack.c.l.b16 %v339
      %v472 = vunpack.c.l.b16 %v340
      %v473 = vunpack.c.l.b16 %v341
      %v474 = vunpack.c.l.b16 %v342
      %v475 = vunpack.c.l.b16 %v343
      %v476 = vunpack.c.l.b16 %v344
      %v477 = vunpack.c.l.b16 %v345
      %v478 = vunpack.c.l.b16 %v346
      %v479 = vunpack.c.l.b16 %v347
      %v480 = vunpack.c.l.b16 %v348
      %v481 = vunpack.c.l.b16 %v349
      %v482 = vunpack.c.l.b16 %v350
      %v483 = vunpack.c.l.b16 %v351
      %v484 = vunpack.c.l.b16 %v352
      %v485 = vunpack.c.l.b16 %v353
      %v486 = vunpack.c.l.b16 %v354
      %v487 = vunpack.c.l.b16 %v355
      %v488 = vunpack.c.l.b16 %v356
      %v489 = vunpack.c.l.b16 %v357
      %v490 = vunpack.c.l.b16 %v358
      %v491 = vunpack.c.l.b16 %v359
      %v492 = vunpack.c.l.b16 %v360
      %v493 = vunpack.c.l.b16 %v361
      %v494 = vunpack.c.l.b16 %v362
      %v495 = vunpack.c.l.b16 %v363
      %v496 = vunpack.c.l.b16 %v364
      %v497 = vunpack.c.l.b16 %v365
      %v498 = vunpack.c.l.b16 %v366
      %v499 = vunpack.c.l.b16 %v367
      %v500 = vunpack.c.l.b16 %v368
      %v501 = vunpack.c.l.b16 %v369
      %v502 = vunpack.c.l.b16 %v370
      %v503 = vunpack.c.l.b16 %v371
      %v504 = vunpack.c.l.b16 %v372
      %v505 = vunpack.c.l.b16 %v373
      %v506 = vunpack.c.l.b16 %v374
      %v507 = vunpack.c.l.b16 %v375
      %v508 = vunpack.c.l.b16 %v376
      %v509 = vunpack.c.l.b16 %v377
      %v510 = vunpack.c.l.b16 %v378
      %v511 = vunpack.c.l.b16 %v379
      %v512 = vunpack.c.l.b16 %v380
      %v513 = vunpack.c.l.b16 %v381
      %v514 = vunpack.c.l.b16 %v382
      %v515 = vunpack.c.l.b16 %v383
      %v516 = vunpack.c.l.b16 %v384
      %v517 = vunpack.c.l.b16 %v385
      %v518 = vunpack.c.l.b16 %v386
      %v519 = vunpack.c.l.b16 %v387
      %v520 = vunpack.c.l.b16 %v388
      %v521 = vunpack.c.l.b16 %v389
      %v522 = vunpack.c.l.b16 %v390
      %v523 = vunpack.c.l.b16 %v391
      %v524 = vunpack.c.l.b16 %v392
      %v525 = vunpack.c.l.b16 %v393
      %v526 = vunpack.c.l.b16 %v394
      %v527 = vunpack.c.l.b16 %v395
      %v528 = vunpack.c.l.b16 %v396
      %v529 = vunpack.c.l.b16 %v397
      %v530 = vunpack.c.l.b16 %v398
      %v531 = vunpack.c.l.b16 %v399
      %v532 = vunpack.c.l.b16 %v400
      %v533 = vpack.c.b16 %v470, %v469
      %v534 = vpack.c.b16 %v472, %v471
      %v535 = vpack.c.b16 %v474, %v473
      %v536 = vpack.c.b16 %v476, %v475
      %v537 = vpack.c.b16 %v478, %v477
      %v538 = vpack.c.b16 %v480, %v479
      %v539 = vpack.c.b16 %v482, %v481
      %v540 = vpack.c.b16 %v484, %v483
      %v541 = vpack.c.b16 %v486, %v485
      %v542 = vpack.c.b16 %v488, %v487
      %v543 = vpack.c.b16 %v490, %v489
      %v544 = vpack.c.b16 %v492, %v491
      %v545 = vpack.c.b16 %v494, %v493
      %v546 = vpack.c.b16 %v496, %v495
      %v547 = vpack.c.b16 %v498, %v497
      %v548 = vpack.c.b16 %v500, %v499
      %v549 = vpack.c.b16 %v502, %v501
      %v550 = vpack.c.b16 %v504, %v503
      %v551 = vpack.c.b16 %v506, %v505
      %v552 = vpack.c.b16 %v508, %v507
      %v553 = vpack.c.b16 %v510, %v509
      %v554 = vpack.c.b16 %v512, %v511
      %v555 = vpack.c.b16 %v514, %v513
      %v556 = vpack.c.b16 %v516, %v515
      %v557 = vpack.c.b16 %v518, %v517
      %v558 = vpack.c.b16 %v520, %v519
      %v559 = vpack.c.b16 %v522, %v521
      %v560 = vpack.c.b16 %v524, %v523
      %v561 = vpack.c.b16 %v526, %v525
      %v562 = vpack.c.b16 %v528, %v527
      %v563 = vpack.c.b16 %v530, %v529
      %v564 = vpack.c.b16 %v532, %v531
      %v569 = vunpack.c.l.b16 %v401
      %v570 = vunpack.c.l.b16 %v402
      %v571 = vunpack.c.l.b16 %v403
      %v572 = vunpack.c.l.b16 %v404
      %v573 = vpack.c.b16 %v570, %v569
      %v574 = vpack.c.b16 %v572, %v571
      %vm577 = vcmask 261120
      %v579 = vsel %vm577, %v533, 0
      %v582 = vsel %vm577, %v534, 0
      %v585 = vsel %vm577, %v535, 0
      %v588 = vsel %vm577, %v536, 0
      %v591 = vsel %vm577, %v537, 0
      %v594 = vsel %vm577, %v538, 0
      %v597 = vsel %vm577, %v539, 0
      %v600 = vsel %vm577, %v540, 0
      %v603 = vsel %vm577, %v541, 0
      %v606 = vsel %vm577, %v542, 0
      %v609 = vsel %vm577, %v543, 0
      %v612 = vsel %vm577, %v544, 0
      %v615 = vsel %vm577, %v545, 0
      %v618 = vsel %vm577, %v546, 0
      %v621 = vsel %vm577, %v547, 0
      %v624 = vsel %vm577, %v548, 0
      %v627 = vsel %vm577, %v549, 0
      %v630 = vsel %vm577, %v550, 0
      %v633 = vsel %vm577, %v551, 0
      %v636 = vsel %vm577, %v552, 0
      %v639 = vsel %vm577, %v553, 0
      %v642 = vsel %vm577, %v554, 0
      %v645 = vsel %vm577, %v555, 0
      %v648 = vsel %vm577, %v556, 0
      %v651 = vsel %vm577, %v557, 0
      %v654 = vsel %vm577, %v558, 0
      %v657 = vsel %vm577, %v559, 0
      %v660 = vsel %vm577, %v560, 0
      %v663 = vsel %vm577, %v561, 0
      %v666 = vsel %vm577, %v562, 0
      %v669 = vsel %vm577, %v563, 0
      %v672 = vsel %vm577, %v564, 0
      %674 = vmatpush.bf16.msra.mxu0 0
      %675 = vmatpush.bf16.msra.mxu0 0
      %676 = vmatpush.bf16.msra.mxu0 0
      %677 = vmatpush.bf16.msra.mxu0 0
      %678 = vmatpush.bf16.msra.mxu0 0
      %679 = vmatpush.bf16.msra.mxu0 0
      %680 = vmatpush.bf16.msra.mxu0 %v574
      %681 = vmatpush.bf16.msra.mxu0 %v573
      %682 = vmatmul.bf16.gmra.mxu0 %v579
      %v683 = vpop.f32.mrf.mxu0
      %v684 = vadd.f32 0.0, %v683
      %v685 = vpop.f32.mrf.mxu0
      %v686 = vadd.f32 0.0, %v685
      %687 = vmatmul.bf16.gmra.mxu0 %v582
      %v688 = vpop.f32.mrf.mxu0
      %v689 = vadd.f32 0.0, %v688
      %v690 = vpop.f32.mrf.mxu0
      %v691 = vadd.f32 0.0, %v690
      %692 = vmatmul.bf16.gmra.mxu0 %v585
      %v693 = vpop.f32.mrf.mxu0
      %v694 = vadd.f32 0.0, %v693
      %v695 = vpop.f32.mrf.mxu0
      %v696 = vadd.f32 0.0, %v695
      %697 = vmatmul.bf16.gmra.mxu0 %v588
      %v698 = vpop.f32.mrf.mxu0
      %v699 = vadd.f32 0.0, %v698
      %v700 = vpop.f32.mrf.mxu0
      %v701 = vadd.f32 0.0, %v700
      %702 = vmatmul.bf16.gmra.mxu0 %v591
      %v703 = vpop.f32.mrf.mxu0
      %v704 = vadd.f32 0.0, %v703
      %v705 = vpop.f32.mrf.mxu0
      %v706 = vadd.f32 0.0, %v705
      %707 = vmatmul.bf16.gmra.mxu0 %v594
      %v708 = vpop.f32.mrf.mxu0
      %v709 = vadd.f32 0.0, %v708
      %v710 = vpop.f32.mrf.mxu0
      %v711 = vadd.f32 0.0, %v710
      %712 = vmatmul.bf16.gmra.mxu0 %v597
      %v713 = vpop.f32.mrf.mxu0
      %v714 = vadd.f32 0.0, %v713
      %v715 = vpop.f32.mrf.mxu0
      %v716 = vadd.f32 0.0, %v715
      %717 = vmatmul.bf16.gmra.mxu0 %v600
      %v718 = vpop.f32.mrf.mxu0
      %v719 = vadd.f32 0.0, %v718
      %v720 = vpop.f32.mrf.mxu0
      %v721 = vadd.f32 0.0, %v720
      %722 = vmatmul.bf16.gmra.mxu0 %v603
      %v723 = vpop.f32.mrf.mxu0
      %v724 = vadd.f32 0.0, %v723
      %v725 = vpop.f32.mrf.mxu0
      %v726 = vadd.f32 0.0, %v725
      %727 = vmatmul.bf16.gmra.mxu0 %v606
      %v728 = vpop.f32.mrf.mxu0
      %v729 = vadd.f32 0.0, %v728
      %v730 = vpop.f32.mrf.mxu0
      %v731 = vadd.f32 0.0, %v730
      %732 = vmatmul.bf16.gmra.mxu0 %v609
      %v733 = vpop.f32.mrf.mxu0
      %v734 = vadd.f32 0.0, %v733
      %v735 = vpop.f32.mrf.mxu0
      %v736 = vadd.f32 0.0, %v735
      %737 = vmatmul.bf16.gmra.mxu0 %v612
      %v738 = vpop.f32.mrf.mxu0
      %v739 = vadd.f32 0.0, %v738
      %v740 = vpop.f32.mrf.mxu0
      %v741 = vadd.f32 0.0, %v740
      %742 = vmatmul.bf16.gmra.mxu0 %v615
      %v743 = vpop.f32.mrf.mxu0
      %v744 = vadd.f32 0.0, %v743
      %v745 = vpop.f32.mrf.mxu0
      %v746 = vadd.f32 0.0, %v745
      %747 = vmatmul.bf16.gmra.mxu0 %v618
      %v748 = vpop.f32.mrf.mxu0
      %v749 = vadd.f32 0.0, %v748
      %v750 = vpop.f32.mrf.mxu0
      %v751 = vadd.f32 0.0, %v750
      %752 = vmatmul.bf16.gmra.mxu0 %v621
      %v753 = vpop.f32.mrf.mxu0
      %v754 = vadd.f32 0.0, %v753
      %v755 = vpop.f32.mrf.mxu0
      %v756 = vadd.f32 0.0, %v755
      %757 = vmatmul.bf16.gmra.mxu0 %v624
      %v758 = vpop.f32.mrf.mxu0
      %v759 = vadd.f32 0.0, %v758
      %v760 = vpop.f32.mrf.mxu0
      %v761 = vadd.f32 0.0, %v760
      %762 = vmatmul.bf16.gmra.mxu0 %v627
      %v763 = vpop.f32.mrf.mxu0
      %v764 = vadd.f32 0.0, %v763
      %v765 = vpop.f32.mrf.mxu0
      %v766 = vadd.f32 0.0, %v765
      %767 = vmatmul.bf16.gmra.mxu0 %v630
      %v768 = vpop.f32.mrf.mxu0
      %v769 = vadd.f32 0.0, %v768
      %v770 = vpop.f32.mrf.mxu0
      %v771 = vadd.f32 0.0, %v770
      %772 = vmatmul.bf16.gmra.mxu0 %v633
      %v773 = vpop.f32.mrf.mxu0
      %v774 = vadd.f32 0.0, %v773
      %v775 = vpop.f32.mrf.mxu0
      %v776 = vadd.f32 0.0, %v775
      %777 = vmatmul.bf16.gmra.mxu0 %v636
      %v778 = vpop.f32.mrf.mxu0
      %v779 = vadd.f32 0.0, %v778
      %v780 = vpop.f32.mrf.mxu0
      %v781 = vadd.f32 0.0, %v780
      %782 = vmatmul.bf16.gmra.mxu0 %v639
      %v783 = vpop.f32.mrf.mxu0
      %v784 = vadd.f32 0.0, %v783
      %v785 = vpop.f32.mrf.mxu0
      %v786 = vadd.f32 0.0, %v785
      %787 = vmatmul.bf16.gmra.mxu0 %v642
      %v788 = vpop.f32.mrf.mxu0
      %v789 = vadd.f32 0.0, %v788
      %v790 = vpop.f32.mrf.mxu0
      %v791 = vadd.f32 0.0, %v790
      %792 = vmatmul.bf16.gmra.mxu0 %v645
      %v793 = vpop.f32.mrf.mxu0
      %v794 = vadd.f32 0.0, %v793
      %v795 = vpop.f32.mrf.mxu0
      %v796 = vadd.f32 0.0, %v795
      %797 = vmatmul.bf16.gmra.mxu0 %v648
      %v798 = vpop.f32.mrf.mxu0
      %v799 = vadd.f32 0.0, %v798
      %v800 = vpop.f32.mrf.mxu0
      %v801 = vadd.f32 0.0, %v800
      %802 = vmatmul.bf16.gmra.mxu0 %v651
      %v803 = vpop.f32.mrf.mxu0
      %v804 = vadd.f32 0.0, %v803
      %v805 = vpop.f32.mrf.mxu0
      %v806 = vadd.f32 0.0, %v805
      %807 = vmatmul.bf16.gmra.mxu0 %v654
      %v808 = vpop.f32.mrf.mxu0
      %v809 = vadd.f32 0.0, %v808
      %v810 = vpop.f32.mrf.mxu0
      %v811 = vadd.f32 0.0, %v810
      %812 = vmatmul.bf16.gmra.mxu0 %v657
      %v813 = vpop.f32.mrf.mxu0
      %v814 = vadd.f32 0.0, %v813
      %v815 = vpop.f32.mrf.mxu0
      %v816 = vadd.f32 0.0, %v815
      %817 = vmatmul.bf16.gmra.mxu0 %v660
      %v818 = vpop.f32.mrf.mxu0
      %v819 = vadd.f32 0.0, %v818
      %v820 = vpop.f32.mrf.mxu0
      %v821 = vadd.f32 0.0, %v820
      %822 = vmatmul.bf16.gmra.mxu0 %v663
      %v823 = vpop.f32.mrf.mxu0
      %v824 = vadd.f32 0.0, %v823
      %v825 = vpop.f32.mrf.mxu0
      %v826 = vadd.f32 0.0, %v825
      %827 = vmatmul.bf16.gmra.mxu0 %v666
      %v828 = vpop.f32.mrf.mxu0
      %v829 = vadd.f32 0.0, %v828
      %v830 = vpop.f32.mrf.mxu0
      %v831 = vadd.f32 0.0, %v830
      %832 = vmatmul.bf16.gmra.mxu0 %v669
      %v833 = vpop.f32.mrf.mxu0
      %v834 = vadd.f32 0.0, %v833
      %v835 = vpop.f32.mrf.mxu0
      %v836 = vadd.f32 0.0, %v835
      %837 = vmatmul.bf16.gmra.mxu0 %v672
      %v838 = vpop.f32.mrf.mxu0
      %v839 = vadd.f32 0.0, %v838
      %v840 = vpop.f32.mrf.mxu0
      %v841 = vadd.f32 0.0, %v840
      %842 = vdwg.mxu0
      %v843 = vld [vmem:[%s2] sm:$0x1]
      %v845 = vperm.slane %v843, 0
      %v847 = vadd.f32 %v684, %v845
      %v848 = vadd.f32 %v686, %v845
      %v849 = vadd.f32 %v689, %v845
      %v850 = vadd.f32 %v691, %v845
      %v851 = vadd.f32 %v694, %v845
      %v852 = vadd.f32 %v696, %v845
      %v853 = vadd.f32 %v699, %v845
      %v854 = vadd.f32 %v701, %v845
      %v855 = vadd.f32 %v704, %v845
      %v856 = vadd.f32 %v706, %v845
      %v857 = vadd.f32 %v709, %v845
      %v858 = vadd.f32 %v711, %v845
      %v859 = vadd.f32 %v714, %v845
      %v860 = vadd.f32 %v716, %v845
      %v861 = vadd.f32 %v719, %v845
      %v862 = vadd.f32 %v721, %v845
      %v863 = vadd.f32 %v724, %v845
      %v864 = vadd.f32 %v726, %v845
      %v865 = vadd.f32 %v729, %v845
      %v866 = vadd.f32 %v731, %v845
      %v867 = vadd.f32 %v734, %v845
      %v868 = vadd.f32 %v736, %v845
      %v869 = vadd.f32 %v739, %v845
      %v870 = vadd.f32 %v741, %v845
      %v871 = vadd.f32 %v744, %v845
      %v872 = vadd.f32 %v746, %v845
      %v873 = vadd.f32 %v749, %v845
      %v874 = vadd.f32 %v751, %v845
      %v875 = vadd.f32 %v754, %v845
      %v876 = vadd.f32 %v756, %v845
      %v877 = vadd.f32 %v759, %v845
      %v878 = vadd.f32 %v761, %v845
      %v879 = vadd.f32 %v764, %v845
      %v880 = vadd.f32 %v766, %v845
      %v881 = vadd.f32 %v769, %v845
      %v882 = vadd.f32 %v771, %v845
      %v883 = vadd.f32 %v774, %v845
      %v884 = vadd.f32 %v776, %v845
      %v885 = vadd.f32 %v779, %v845
      %v886 = vadd.f32 %v781, %v845
      %v887 = vadd.f32 %v784, %v845
      %v888 = vadd.f32 %v786, %v845
      %v889 = vadd.f32 %v789, %v845
      %v890 = vadd.f32 %v791, %v845
      %v891 = vadd.f32 %v794, %v845
      %v892 = vadd.f32 %v796, %v845
      %v893 = vadd.f32 %v799, %v845
      %v894 = vadd.f32 %v801, %v845
      %v895 = vadd.f32 %v804, %v845
      %v896 = vadd.f32 %v806, %v845
      %v897 = vadd.f32 %v809, %v845
      %v898 = vadd.f32 %v811, %v845
      %v899 = vadd.f32 %v814, %v845
      %v900 = vadd.f32 %v816, %v845
      %v901 = vadd.f32 %v819, %v845
      %v902 = vadd.f32 %v821, %v845
      %v903 = vadd.f32 %v824, %v845
      %v904 = vadd.f32 %v826, %v845
      %v905 = vadd.f32 %v829, %v845
      %v906 = vadd.f32 %v831, %v845
      %v907 = vadd.f32 %v834, %v845
      %v908 = vadd.f32 %v836, %v845
      %v909 = vadd.f32 %v839, %v845
      %v910 = vadd.f32 %v841, %v845
      %v911 = vand.u32 2147483647, %v847
      %v912 = vand.u32 2147483647, %v848
      %v913 = vand.u32 2147483647, %v849
      %v914 = vand.u32 2147483647, %v850
      %v915 = vand.u32 2147483647, %v851
      %v916 = vand.u32 2147483647, %v852
      %v917 = vand.u32 2147483647, %v853
      %v918 = vand.u32 2147483647, %v854
      %v919 = vand.u32 2147483647, %v855
      %v920 = vand.u32 2147483647, %v856
      %v921 = vand.u32 2147483647, %v857
      %v922 = vand.u32 2147483647, %v858
      %v923 = vand.u32 2147483647, %v859
      %v924 = vand.u32 2147483647, %v860
      %v925 = vand.u32 2147483647, %v861
      %v926 = vand.u32 2147483647, %v862
      %v927 = vand.u32 2147483647, %v863
      %v928 = vand.u32 2147483647, %v864
      %v929 = vand.u32 2147483647, %v865
      %v930 = vand.u32 2147483647, %v866
      %v931 = vand.u32 2147483647, %v867
      %v932 = vand.u32 2147483647, %v868
      %v933 = vand.u32 2147483647, %v869
      %v934 = vand.u32 2147483647, %v870
      %v935 = vand.u32 2147483647, %v871
      %v936 = vand.u32 2147483647, %v872
      %v937 = vand.u32 2147483647, %v873
      %v938 = vand.u32 2147483647, %v874
      %v939 = vand.u32 2147483647, %v875
      %v940 = vand.u32 2147483647, %v876
      %v941 = vand.u32 2147483647, %v877
      %v942 = vand.u32 2147483647, %v878
      %v943 = vand.u32 2147483647, %v879
      %v944 = vand.u32 2147483647, %v880
      %v945 = vand.u32 2147483647, %v881
      %v946 = vand.u32 2147483647, %v882
      %v947 = vand.u32 2147483647, %v883
      %v948 = vand.u32 2147483647, %v884
      %v949 = vand.u32 2147483647, %v885
      %v950 = vand.u32 2147483647, %v886
      %v951 = vand.u32 2147483647, %v887
      %v952 = vand.u32 2147483647, %v888
      %v953 = vand.u32 2147483647, %v889
      %v954 = vand.u32 2147483647, %v890
      %v955 = vand.u32 2147483647, %v891
      %v956 = vand.u32 2147483647, %v892
      %v957 = vand.u32 2147483647, %v893
      %v958 = vand.u32 2147483647, %v894
      %v959 = vand.u32 2147483647, %v895
      %v960 = vand.u32 2147483647, %v896
      %v961 = vand.u32 2147483647, %v897
      %v962 = vand.u32 2147483647, %v898
      %v963 = vand.u32 2147483647, %v899
      %v964 = vand.u32 2147483647, %v900
      %v965 = vand.u32 2147483647, %v901
      %v966 = vand.u32 2147483647, %v902
      %v967 = vand.u32 2147483647, %v903
      %v968 = vand.u32 2147483647, %v904
      %v969 = vand.u32 2147483647, %v905
      %v970 = vand.u32 2147483647, %v906
      %v971 = vand.u32 2147483647, %v907
      %v972 = vand.u32 2147483647, %v908
      %v973 = vand.u32 2147483647, %v909
      %v974 = vand.u32 2147483647, %v910
      %v975 = vmul.f32 %v911, 100.0
      %v976 = vmul.f32 %v912, 100.0
      %v977 = vmul.f32 %v913, 100.0
      %v978 = vmul.f32 %v914, 100.0
      %v979 = vmul.f32 %v915, 100.0
      %v980 = vmul.f32 %v916, 100.0
      %v981 = vmul.f32 %v917, 100.0
      %v982 = vmul.f32 %v918, 100.0
      %v983 = vmul.f32 %v919, 100.0
      %v984 = vmul.f32 %v920, 100.0
      %v985 = vmul.f32 %v921, 100.0
      %v986 = vmul.f32 %v922, 100.0
      %v987 = vmul.f32 %v923, 100.0
      %v988 = vmul.f32 %v924, 100.0
      %v989 = vmul.f32 %v925, 100.0
      %v990 = vmul.f32 %v926, 100.0
      %v991 = vmul.f32 %v927, 100.0
      %v992 = vmul.f32 %v928, 100.0
      %v993 = vmul.f32 %v929, 100.0
      %v994 = vmul.f32 %v930, 100.0
      %v995 = vmul.f32 %v931, 100.0
      %v996 = vmul.f32 %v932, 100.0
      %v997 = vmul.f32 %v933, 100.0
      %v998 = vmul.f32 %v934, 100.0
      %v999 = vmul.f32 %v935, 100.0
      %v1000 = vmul.f32 %v936, 100.0
      %v1001 = vmul.f32 %v937, 100.0
      %v1002 = vmul.f32 %v938, 100.0
      %v1003 = vmul.f32 %v939, 100.0
      %v1004 = vmul.f32 %v940, 100.0
      %v1005 = vmul.f32 %v941, 100.0
      %v1006 = vmul.f32 %v942, 100.0
      %v1007 = vmul.f32 %v943, 100.0
      %v1008 = vmul.f32 %v944, 100.0
      %v1009 = vmul.f32 %v945, 100.0
      %v1010 = vmul.f32 %v946, 100.0
      %v1011 = vmul.f32 %v947, 100.0
      %v1012 = vmul.f32 %v948, 100.0
      %v1013 = vmul.f32 %v949, 100.0
      %v1014 = vmul.f32 %v950, 100.0
      %v1015 = vmul.f32 %v951, 100.0
      %v1016 = vmul.f32 %v952, 100.0
      %v1017 = vmul.f32 %v953, 100.0
      %v1018 = vmul.f32 %v954, 100.0
      %v1019 = vmul.f32 %v955, 100.0
      %v1020 = vmul.f32 %v956, 100.0
      %v1021 = vmul.f32 %v957, 100.0
      %v1022 = vmul.f32 %v958, 100.0
      %v1023 = vmul.f32 %v959, 100.0
      %v1024 = vmul.f32 %v960, 100.0
      %v1025 = vmul.f32 %v961, 100.0
      %v1026 = vmul.f32 %v962, 100.0
      %v1027 = vmul.f32 %v963, 100.0
      %v1028 = vmul.f32 %v964, 100.0
      %v1029 = vmul.f32 %v965, 100.0
      %v1030 = vmul.f32 %v966, 100.0
      %v1031 = vmul.f32 %v967, 100.0
      %v1032 = vmul.f32 %v968, 100.0
      %v1033 = vmul.f32 %v969, 100.0
      %v1034 = vmul.f32 %v970, 100.0
      %v1035 = vmul.f32 %v971, 100.0
      %v1036 = vmul.f32 %v972, 100.0
      %v1037 = vmul.f32 %v973, 100.0
      %v1038 = vmul.f32 %v974, 100.0
      %v1039 = vmax.f32 %v847, 0.0
      %v1040 = vmax.f32 %v848, 0.0
      %v1041 = vmax.f32 %v849, 0.0
      %v1042 = vmax.f32 %v850, 0.0
      %v1043 = vmax.f32 %v851, 0.0
      %v1044 = vmax.f32 %v852, 0.0
      %v1045 = vmax.f32 %v853, 0.0
      %v1046 = vmax.f32 %v854, 0.0
      %v1047 = vmax.f32 %v855, 0.0
      %v1048 = vmax.f32 %v856, 0.0
      %v1049 = vmax.f32 %v857, 0.0
      %v1050 = vmax.f32 %v858, 0.0
      %v1051 = vmax.f32 %v859, 0.0
      %v1052 = vmax.f32 %v860, 0.0
      %v1053 = vmax.f32 %v861, 0.0
      %v1054 = vmax.f32 %v862, 0.0
      %v1055 = vmax.f32 %v863, 0.0
      %v1056 = vmax.f32 %v864, 0.0
      %v1057 = vmax.f32 %v865, 0.0
      %v1058 = vmax.f32 %v866, 0.0
      %v1059 = vmax.f32 %v867, 0.0
      %v1060 = vmax.f32 %v868, 0.0
      %v1061 = vmax.f32 %v869, 0.0
      %v1062 = vmax.f32 %v870, 0.0
      %v1063 = vmax.f32 %v871, 0.0
      %v1064 = vmax.f32 %v872, 0.0
      %v1065 = vmax.f32 %v873, 0.0
      %v1066 = vmax.f32 %v874, 0.0
      %v1067 = vmax.f32 %v875, 0.0
      %v1068 = vmax.f32 %v876, 0.0
      %v1069 = vmax.f32 %v877, 0.0
      %v1070 = vmax.f32 %v878, 0.0
      %v1071 = vmax.f32 %v879, 0.0
      %v1072 = vmax.f32 %v880, 0.0
      %v1073 = vmax.f32 %v881, 0.0
      %v1074 = vmax.f32 %v882, 0.0
      %v1075 = vmax.f32 %v883, 0.0
      %v1076 = vmax.f32 %v884, 0.0
      %v1077 = vmax.f32 %v885, 0.0
      %v1078 = vmax.f32 %v886, 0.0
      %v1079 = vmax.f32 %v887, 0.0
      %v1080 = vmax.f32 %v888, 0.0
      %v1081 = vmax.f32 %v889, 0.0
      %v1082 = vmax.f32 %v890, 0.0
      %v1083 = vmax.f32 %v891, 0.0
      %v1084 = vmax.f32 %v892, 0.0
      %v1085 = vmax.f32 %v893, 0.0
      %v1086 = vmax.f32 %v894, 0.0
      %v1087 = vmax.f32 %v895, 0.0
      %v1088 = vmax.f32 %v896, 0.0
      %v1089 = vmax.f32 %v897, 0.0
      %v1090 = vmax.f32 %v898, 0.0
      %v1091 = vmax.f32 %v899, 0.0
      %v1092 = vmax.f32 %v900, 0.0
      %v1093 = vmax.f32 %v901, 0.0
      %v1094 = vmax.f32 %v902, 0.0
      %v1095 = vmax.f32 %v903, 0.0
      %v1096 = vmax.f32 %v904, 0.0
      %v1097 = vmax.f32 %v905, 0.0
      %v1098 = vmax.f32 %v906, 0.0
      %v1099 = vmax.f32 %v907, 0.0
      %v1100 = vmax.f32 %v908, 0.0
      %v1101 = vmax.f32 %v909, 0.0
      %v1102 = vmax.f32 %v910, 0.0
      %v1103 = vsub.f32 0.0, %v975
      %v1104 = vsub.f32 0.0, %v976
      %v1105 = vsub.f32 0.0, %v977
      %v1106 = vsub.f32 0.0, %v978
      %v1107 = vsub.f32 0.0, %v979
      %v1108 = vsub.f32 0.0, %v980
      %v1109 = vsub.f32 0.0, %v981
      %v1110 = vsub.f32 0.0, %v982
      %v1111 = vsub.f32 0.0, %v983
      %v1112 = vsub.f32 0.0, %v984
      %v1113 = vsub.f32 0.0, %v985
      %v1114 = vsub.f32 0.0, %v986
      %v1115 = vsub.f32 0.0, %v987
      %v1116 = vsub.f32 0.0, %v988
      %v1117 = vsub.f32 0.0, %v989
      %v1118 = vsub.f32 0.0, %v990
      %v1119 = vsub.f32 0.0, %v991
      %v1120 = vsub.f32 0.0, %v992
      %v1121 = vsub.f32 0.0, %v993
      %v1122 = vsub.f32 0.0, %v994
      %v1123 = vsub.f32 0.0, %v995
      %v1124 = vsub.f32 0.0, %v996
      %v1125 = vsub.f32 0.0, %v997
      %v1126 = vsub.f32 0.0, %v998
      %v1127 = vsub.f32 0.0, %v999
      %v1128 = vsub.f32 0.0, %v1000
      %v1129 = vsub.f32 0.0, %v1001
      %v1130 = vsub.f32 0.0, %v1002
      %v1131 = vsub.f32 0.0, %v1003
      %v1132 = vsub.f32 0.0, %v1004
      %v1133 = vsub.f32 0.0, %v1005
      %v1134 = vsub.f32 0.0, %v1006
      %v1135 = vsub.f32 0.0, %v1007
      %v1136 = vsub.f32 0.0, %v1008
      %v1137 = vsub.f32 0.0, %v1009
      %v1138 = vsub.f32 0.0, %v1010
      %v1139 = vsub.f32 0.0, %v1011
      %v1140 = vsub.f32 0.0, %v1012
      %v1141 = vsub.f32 0.0, %v1013
      %v1142 = vsub.f32 0.0, %v1014
      %v1143 = vsub.f32 0.0, %v1015
      %v1144 = vsub.f32 0.0, %v1016
      %v1145 = vsub.f32 0.0, %v1017
      %v1146 = vsub.f32 0.0, %v1018
      %v1147 = vsub.f32 0.0, %v1019
      %v1148 = vsub.f32 0.0, %v1020
      %v1149 = vsub.f32 0.0, %v1021
      %v1150 = vsub.f32 0.0, %v1022
      %v1151 = vsub.f32 0.0, %v1023
      %v1152 = vsub.f32 0.0, %v1024
      %v1153 = vsub.f32 0.0, %v1025
      %v1154 = vsub.f32 0.0, %v1026
      %v1155 = vsub.f32 0.0, %v1027
      %v1156 = vsub.f32 0.0, %v1028
      %v1157 = vsub.f32 0.0, %v1029
      %v1158 = vsub.f32 0.0, %v1030
      %v1159 = vsub.f32 0.0, %v1031
      %v1160 = vsub.f32 0.0, %v1032
      %v1161 = vsub.f32 0.0, %v1033
      %v1162 = vsub.f32 0.0, %v1034
      %v1163 = vsub.f32 0.0, %v1035
      %v1164 = vsub.f32 0.0, %v1036
      %v1165 = vsub.f32 0.0, %v1037
      %v1166 = vsub.f32 0.0, %v1038
      %v1167 = vmul.f32 %v1103, 1.442695
      %v1168 = vpow.pop %v1167
      %v1169 = vmul.f32 %v1104, 1.442695
      %v1170 = vpow.pop %v1169
      %v1171 = vmul.f32 %v1105, 1.442695
      %v1172 = vpow.pop %v1171
      %v1173 = vmul.f32 %v1106, 1.442695
      %v1174 = vpow.pop %v1173
      %v1175 = vmul.f32 %v1107, 1.442695
      %v1176 = vpow.pop %v1175
      %v1177 = vmul.f32 %v1108, 1.442695
      %v1178 = vpow.pop %v1177
      %v1179 = vmul.f32 %v1109, 1.442695
      %v1180 = vpow.pop %v1179
      %v1181 = vmul.f32 %v1110, 1.442695
      %v1182 = vpow.pop %v1181
      %v1183 = vmul.f32 %v1111, 1.442695
      %v1184 = vpow.pop %v1183
      %v1185 = vmul.f32 %v1112, 1.442695
      %v1186 = vpow.pop %v1185
      %v1187 = vmul.f32 %v1113, 1.442695
      %v1188 = vpow.pop %v1187
      %v1189 = vmul.f32 %v1114, 1.442695
      %v1190 = vpow.pop %v1189
      %v1191 = vmul.f32 %v1115, 1.442695
      %v1192 = vpow.pop %v1191
      %v1193 = vmul.f32 %v1116, 1.442695
      %v1194 = vpow.pop %v1193
      %v1195 = vmul.f32 %v1117, 1.442695
      %v1196 = vpow.pop %v1195
      %v1197 = vmul.f32 %v1118, 1.442695
      %v1198 = vpow.pop %v1197
      %v1199 = vmul.f32 %v1119, 1.442695
      %v1200 = vpow.pop %v1199
      %v1201 = vmul.f32 %v1120, 1.442695
      %v1202 = vpow.pop %v1201
      %v1203 = vmul.f32 %v1121, 1.442695
      %v1204 = vpow.pop %v1203
      %v1205 = vmul.f32 %v1122, 1.442695
      %v1206 = vpow.pop %v1205
      %v1207 = vmul.f32 %v1123, 1.442695
      %v1208 = vpow.pop %v1207
      %v1209 = vmul.f32 %v1124, 1.442695
      %v1210 = vpow.pop %v1209
      %v1211 = vmul.f32 %v1125, 1.442695
      %v1212 = vpow.pop %v1211
      %v1213 = vmul.f32 %v1126, 1.442695
      %v1214 = vpow.pop %v1213
      %v1215 = vmul.f32 %v1127, 1.442695
      %v1216 = vpow.pop %v1215
      %v1217 = vmul.f32 %v1128, 1.442695
      %v1218 = vpow.pop %v1217
      %v1219 = vmul.f32 %v1129, 1.442695
      %v1220 = vpow.pop %v1219
      %v1221 = vmul.f32 %v1130, 1.442695
      %v1222 = vpow.pop %v1221
      %v1223 = vmul.f32 %v1131, 1.442695
      %v1224 = vpow.pop %v1223
      %v1225 = vmul.f32 %v1132, 1.442695
      %v1226 = vpow.pop %v1225
      %v1227 = vmul.f32 %v1133, 1.442695
      %v1228 = vpow.pop %v1227
      %v1229 = vmul.f32 %v1134, 1.442695
      %v1230 = vpow.pop %v1229
      %v1231 = vmul.f32 %v1135, 1.442695
      %v1232 = vpow.pop %v1231
      %v1233 = vmul.f32 %v1136, 1.442695
      %v1234 = vpow.pop %v1233
      %v1235 = vmul.f32 %v1137, 1.442695
      %v1236 = vpow.pop %v1235
      %v1237 = vmul.f32 %v1138, 1.442695
      %v1238 = vpow.pop %v1237
      %v1239 = vmul.f32 %v1139, 1.442695
      %v1240 = vpow.pop %v1239
      %v1241 = vmul.f32 %v1140, 1.442695
      %v1242 = vpow.pop %v1241
      %v1243 = vmul.f32 %v1141, 1.442695
      %v1244 = vpow.pop %v1243
      %v1245 = vmul.f32 %v1142, 1.442695
      %v1246 = vpow.pop %v1245
      %v1247 = vmul.f32 %v1143, 1.442695
      %v1248 = vpow.pop %v1247
      %v1249 = vmul.f32 %v1144, 1.442695
      %v1250 = vpow.pop %v1249
      %v1251 = vmul.f32 %v1145, 1.442695
      %v1252 = vpow.pop %v1251
      %v1253 = vmul.f32 %v1146, 1.442695
      %v1254 = vpow.pop %v1253
      %v1255 = vmul.f32 %v1147, 1.442695
      %v1256 = vpow.pop %v1255
      %v1257 = vmul.f32 %v1148, 1.442695
      %v1258 = vpow.pop %v1257
      %v1259 = vmul.f32 %v1149, 1.442695
      %v1260 = vpow.pop %v1259
      %v1261 = vmul.f32 %v1150, 1.442695
      %v1262 = vpow.pop %v1261
      %v1263 = vmul.f32 %v1151, 1.442695
      %v1264 = vpow.pop %v1263
      %v1265 = vmul.f32 %v1152, 1.442695
      %v1266 = vpow.pop %v1265
      %v1267 = vmul.f32 %v1153, 1.442695
      %v1268 = vpow.pop %v1267
      %v1269 = vmul.f32 %v1154, 1.442695
      %v1270 = vpow.pop %v1269
      %v1271 = vmul.f32 %v1155, 1.442695
      %v1272 = vpow.pop %v1271
      %v1273 = vmul.f32 %v1156, 1.442695
      %v1274 = vpow.pop %v1273
      %v1275 = vmul.f32 %v1157, 1.442695
      %v1276 = vpow.pop %v1275
      %v1277 = vmul.f32 %v1158, 1.442695
      %v1278 = vpow.pop %v1277
      %v1279 = vmul.f32 %v1159, 1.442695
      %v1280 = vpow.pop %v1279
      %v1281 = vmul.f32 %v1160, 1.442695
      %v1282 = vpow.pop %v1281
      %v1283 = vmul.f32 %v1161, 1.442695
      %v1284 = vpow.pop %v1283
      %v1285 = vmul.f32 %v1162, 1.442695
      %v1286 = vpow.pop %v1285
      %v1287 = vmul.f32 %v1163, 1.442695
      %v1288 = vpow.pop %v1287
      %v1289 = vmul.f32 %v1164, 1.442695
      %v1290 = vpow.pop %v1289
      %v1291 = vmul.f32 %v1165, 1.442695
      %v1292 = vpow.pop %v1291
      %v1293 = vmul.f32 %v1166, 1.442695
      %v1294 = vpow.pop %v1293
      %v1295 = vadd.f32 %v1168, 1.0
      %v1296 = vlog2.pop %v1295
      %v1297 = vmul.f32 %v1296, 0.6931472
      %v1298 = vmul.f32 -0.5, %v1168
      %v1299 = vadd.f32 %v1298, 1.0
      %v1300 = vmul.f32 %v1299, %v1168
      %v1301 = vand.u32 2147483647, %v1168
      %vm1302 = vcmp.lt.f32.partialorder %v1301, 0.0004427343
      %v1303 = vsel %vm1302, %v1300, %v1297
      %v1304 = vadd.f32 %v1170, 1.0
      %v1305 = vlog2.pop %v1304
      %v1306 = vmul.f32 %v1305, 0.6931472
      %v1307 = vmul.f32 -0.5, %v1170
      %v1308 = vadd.f32 %v1307, 1.0
      %v1309 = vmul.f32 %v1308, %v1170
      %v1310 = vand.u32 2147483647, %v1170
      %vm1311 = vcmp.lt.f32.partialorder %v1310, 0.0004427343
      %v1312 = vsel %vm1311, %v1309, %v1306
      %v1313 = vadd.f32 %v1172, 1.0
      %v1314 = vlog2.pop %v1313
      %v1315 = vmul.f32 %v1314, 0.6931472
      %v1316 = vmul.f32 -0.5, %v1172
      %v1317 = vadd.f32 %v1316, 1.0
      %v1318 = vmul.f32 %v1317, %v1172
      %v1319 = vand.u32 2147483647, %v1172
      %vm1320 = vcmp.lt.f32.partialorder %v1319, 0.0004427343
      %v1321 = vsel %vm1320, %v1318, %v1315
      %v1322 = vadd.f32 %v1174, 1.0
      %v1323 = vlog2.pop %v1322
      %v1324 = vmul.f32 %v1323, 0.6931472
      %v1325 = vmul.f32 -0.5, %v1174
      %v1326 = vadd.f32 %v1325, 1.0
      %v1327 = vmul.f32 %v1326, %v1174
      %v1328 = vand.u32 2147483647, %v1174
      %vm1329 = vcmp.lt.f32.partialorder %v1328, 0.0004427343
      %v1330 = vsel %vm1329, %v1327, %v1324
      %v1331 = vadd.f32 %v1176, 1.0
      %v1332 = vlog2.pop %v1331
      %v1333 = vmul.f32 %v1332, 0.6931472
      %v1334 = vmul.f32 -0.5, %v1176
      %v1335 = vadd.f32 %v1334, 1.0
      %v1336 = vmul.f32 %v1335, %v1176
      %v1337 = vand.u32 2147483647, %v1176
      %vm1338 = vcmp.lt.f32.partialorder %v1337, 0.0004427343
      %v1339 = vsel %vm1338, %v1336, %v1333
      %v1340 = vadd.f32 %v1178, 1.0
      %v1341 = vlog2.pop %v1340
      %v1342 = vmul.f32 %v1341, 0.6931472
      %v1343 = vmul.f32 -0.5, %v1178
      %v1344 = vadd.f32 %v1343, 1.0
      %v1345 = vmul.f32 %v1344, %v1178
      %v1346 = vand.u32 2147483647, %v1178
      %vm1347 = vcmp.lt.f32.partialorder %v1346, 0.0004427343
      %v1348 = vsel %vm1347, %v1345, %v1342
      %v1349 = vadd.f32 %v1180, 1.0
      %v1350 = vlog2.pop %v1349
      %v1351 = vmul.f32 %v1350, 0.6931472
      %v1352 = vmul.f32 -0.5, %v1180
      %v1353 = vadd.f32 %v1352, 1.0
      %v1354 = vmul.f32 %v1353, %v1180
      %v1355 = vand.u32 2147483647, %v1180
      %vm1356 = vcmp.lt.f32.partialorder %v1355, 0.0004427343
      %v1357 = vsel %vm1356, %v1354, %v1351
      %v1358 = vadd.f32 %v1182, 1.0
      %v1359 = vlog2.pop %v1358
      %v1360 = vmul.f32 %v1359, 0.6931472
      %v1361 = vmul.f32 -0.5, %v1182
      %v1362 = vadd.f32 %v1361, 1.0
      %v1363 = vmul.f32 %v1362, %v1182
      %v1364 = vand.u32 2147483647, %v1182
      %vm1365 = vcmp.lt.f32.partialorder %v1364, 0.0004427343
      %v1366 = vsel %vm1365, %v1363, %v1360
      %v1367 = vadd.f32 %v1184, 1.0
      %v1368 = vlog2.pop %v1367
      %v1369 = vmul.f32 %v1368, 0.6931472
      %v1370 = vmul.f32 -0.5, %v1184
      %v1371 = vadd.f32 %v1370, 1.0
      %v1372 = vmul.f32 %v1371, %v1184
      %v1373 = vand.u32 2147483647, %v1184
      %vm1374 = vcmp.lt.f32.partialorder %v1373, 0.0004427343
      %v1375 = vsel %vm1374, %v1372, %v1369
      %v1376 = vadd.f32 %v1186, 1.0
      %v1377 = vlog2.pop %v1376
      %v1378 = vmul.f32 %v1377, 0.6931472
      %v1379 = vmul.f32 -0.5, %v1186
      %v1380 = vadd.f32 %v1379, 1.0
      %v1381 = vmul.f32 %v1380, %v1186
      %v1382 = vand.u32 2147483647, %v1186
      %vm1383 = vcmp.lt.f32.partialorder %v1382, 0.0004427343
      %v1384 = vsel %vm1383, %v1381, %v1378
      %v1385 = vadd.f32 %v1188, 1.0
      %v1386 = vlog2.pop %v1385
      %v1387 = vmul.f32 %v1386, 0.6931472
      %v1388 = vmul.f32 -0.5, %v1188
      %v1389 = vadd.f32 %v1388, 1.0
      %v1390 = vmul.f32 %v1389, %v1188
      %v1391 = vand.u32 2147483647, %v1188
      %vm1392 = vcmp.lt.f32.partialorder %v1391, 0.0004427343
      %v1393 = vsel %vm1392, %v1390, %v1387
      %v1394 = vadd.f32 %v1190, 1.0
      %v1395 = vlog2.pop %v1394
      %v1396 = vmul.f32 %v1395, 0.6931472
      %v1397 = vmul.f32 -0.5, %v1190
      %v1398 = vadd.f32 %v1397, 1.0
      %v1399 = vmul.f32 %v1398, %v1190
      %v1400 = vand.u32 2147483647, %v1190
      %vm1401 = vcmp.lt.f32.partialorder %v1400, 0.0004427343
      %v1402 = vsel %vm1401, %v1399, %v1396
      %v1403 = vadd.f32 %v1192, 1.0
      %v1404 = vlog2.pop %v1403
      %v1405 = vmul.f32 %v1404, 0.6931472
      %v1406 = vmul.f32 -0.5, %v1192
      %v1407 = vadd.f32 %v1406, 1.0
      %v1408 = vmul.f32 %v1407, %v1192
      %v1409 = vand.u32 2147483647, %v1192
      %vm1410 = vcmp.lt.f32.partialorder %v1409, 0.0004427343
      %v1411 = vsel %vm1410, %v1408, %v1405
      %v1412 = vadd.f32 %v1194, 1.0
      %v1413 = vlog2.pop %v1412
      %v1414 = vmul.f32 %v1413, 0.6931472
      %v1415 = vmul.f32 -0.5, %v1194
      %v1416 = vadd.f32 %v1415, 1.0
      %v1417 = vmul.f32 %v1416, %v1194
      %v1418 = vand.u32 2147483647, %v1194
      %vm1419 = vcmp.lt.f32.partialorder %v1418, 0.0004427343
      %v1420 = vsel %vm1419, %v1417, %v1414
      %v1421 = vadd.f32 %v1196, 1.0
      %v1422 = vlog2.pop %v1421
      %v1423 = vmul.f32 %v1422, 0.6931472
      %v1424 = vmul.f32 -0.5, %v1196
      %v1425 = vadd.f32 %v1424, 1.0
      %v1426 = vmul.f32 %v1425, %v1196
      %v1427 = vand.u32 2147483647, %v1196
      %vm1428 = vcmp.lt.f32.partialorder %v1427, 0.0004427343
      %v1429 = vsel %vm1428, %v1426, %v1423
      %v1430 = vadd.f32 %v1198, 1.0
      %v1431 = vlog2.pop %v1430
      %v1432 = vmul.f32 %v1431, 0.6931472
      %v1433 = vmul.f32 -0.5, %v1198
      %v1434 = vadd.f32 %v1433, 1.0
      %v1435 = vmul.f32 %v1434, %v1198
      %v1436 = vand.u32 2147483647, %v1198
      %vm1437 = vcmp.lt.f32.partialorder %v1436, 0.0004427343
      %v1438 = vsel %vm1437, %v1435, %v1432
      %v1439 = vadd.f32 %v1200, 1.0
      %v1440 = vlog2.pop %v1439
      %v1441 = vmul.f32 %v1440, 0.6931472
      %v1442 = vmul.f32 -0.5, %v1200
      %v1443 = vadd.f32 %v1442, 1.0
      %v1444 = vmul.f32 %v1443, %v1200
      %v1445 = vand.u32 2147483647, %v1200
      %vm1446 = vcmp.lt.f32.partialorder %v1445, 0.0004427343
      %v1447 = vsel %vm1446, %v1444, %v1441
      %v1448 = vadd.f32 %v1202, 1.0
      %v1449 = vlog2.pop %v1448
      %v1450 = vmul.f32 %v1449, 0.6931472
      %v1451 = vmul.f32 -0.5, %v1202
      %v1452 = vadd.f32 %v1451, 1.0
      %v1453 = vmul.f32 %v1452, %v1202
      %v1454 = vand.u32 2147483647, %v1202
      %vm1455 = vcmp.lt.f32.partialorder %v1454, 0.0004427343
      %v1456 = vsel %vm1455, %v1453, %v1450
      %v1457 = vadd.f32 %v1204, 1.0
      %v1458 = vlog2.pop %v1457
      %v1459 = vmul.f32 %v1458, 0.6931472
      %v1460 = vmul.f32 -0.5, %v1204
      %v1461 = vadd.f32 %v1460, 1.0
      %v1462 = vmul.f32 %v1461, %v1204
      %v1463 = vand.u32 2147483647, %v1204
      %vm1464 = vcmp.lt.f32.partialorder %v1463, 0.0004427343
      %v1465 = vsel %vm1464, %v1462, %v1459
      %v1466 = vadd.f32 %v1206, 1.0
      %v1467 = vlog2.pop %v1466
      %v1468 = vmul.f32 %v1467, 0.6931472
      %v1469 = vmul.f32 -0.5, %v1206
      %v1470 = vadd.f32 %v1469, 1.0
      %v1471 = vmul.f32 %v1470, %v1206
      %v1472 = vand.u32 2147483647, %v1206
      %vm1473 = vcmp.lt.f32.partialorder %v1472, 0.0004427343
      %v1474 = vsel %vm1473, %v1471, %v1468
      %v1475 = vadd.f32 %v1208, 1.0
      %v1476 = vlog2.pop %v1475
      %v1477 = vmul.f32 %v1476, 0.6931472
      %v1478 = vmul.f32 -0.5, %v1208
      %v1479 = vadd.f32 %v1478, 1.0
      %v1480 = vmul.f32 %v1479, %v1208
      %v1481 = vand.u32 2147483647, %v1208
      %vm1482 = vcmp.lt.f32.partialorder %v1481, 0.0004427343
      %v1483 = vsel %vm1482, %v1480, %v1477
      %v1484 = vadd.f32 %v1210, 1.0
      %v1485 = vlog2.pop %v1484
      %v1486 = vmul.f32 %v1485, 0.6931472
      %v1487 = vmul.f32 -0.5, %v1210
      %v1488 = vadd.f32 %v1487, 1.0
      %v1489 = vmul.f32 %v1488, %v1210
      %v1490 = vand.u32 2147483647, %v1210
      %vm1491 = vcmp.lt.f32.partialorder %v1490, 0.0004427343
      %v1492 = vsel %vm1491, %v1489, %v1486
      %v1493 = vadd.f32 %v1212, 1.0
      %v1494 = vlog2.pop %v1493
      %v1495 = vmul.f32 %v1494, 0.6931472
      %v1496 = vmul.f32 -0.5, %v1212
      %v1497 = vadd.f32 %v1496, 1.0
      %v1498 = vmul.f32 %v1497, %v1212
      %v1499 = vand.u32 2147483647, %v1212
      %vm1500 = vcmp.lt.f32.partialorder %v1499, 0.0004427343
      %v1501 = vsel %vm1500, %v1498, %v1495
      %v1502 = vadd.f32 %v1214, 1.0
      %v1503 = vlog2.pop %v1502
      %v1504 = vmul.f32 %v1503, 0.6931472
      %v1505 = vmul.f32 -0.5, %v1214
      %v1506 = vadd.f32 %v1505, 1.0
      %v1507 = vmul.f32 %v1506, %v1214
      %v1508 = vand.u32 2147483647, %v1214
      %vm1509 = vcmp.lt.f32.partialorder %v1508, 0.0004427343
      %v1510 = vsel %vm1509, %v1507, %v1504
      %v1511 = vadd.f32 %v1216, 1.0
      %v1512 = vlog2.pop %v1511
      %v1513 = vmul.f32 %v1512, 0.6931472
      %v1514 = vmul.f32 -0.5, %v1216
      %v1515 = vadd.f32 %v1514, 1.0
      %v1516 = vmul.f32 %v1515, %v1216
      %v1517 = vand.u32 2147483647, %v1216
      %vm1518 = vcmp.lt.f32.partialorder %v1517, 0.0004427343
      %v1519 = vsel %vm1518, %v1516, %v1513
      %v1520 = vadd.f32 %v1218, 1.0
      %v1521 = vlog2.pop %v1520
      %v1522 = vmul.f32 %v1521, 0.6931472
      %v1523 = vmul.f32 -0.5, %v1218
      %v1524 = vadd.f32 %v1523, 1.0
      %v1525 = vmul.f32 %v1524, %v1218
      %v1526 = vand.u32 2147483647, %v1218
      %vm1527 = vcmp.lt.f32.partialorder %v1526, 0.0004427343
      %v1528 = vsel %vm1527, %v1525, %v1522
      %v1529 = vadd.f32 %v1220, 1.0
      %v1530 = vlog2.pop %v1529
      %v1531 = vmul.f32 %v1530, 0.6931472
      %v1532 = vmul.f32 -0.5, %v1220
      %v1533 = vadd.f32 %v1532, 1.0
      %v1534 = vmul.f32 %v1533, %v1220
      %v1535 = vand.u32 2147483647, %v1220
      %vm1536 = vcmp.lt.f32.partialorder %v1535, 0.0004427343
      %v1537 = vsel %vm1536, %v1534, %v1531
      %v1538 = vadd.f32 %v1222, 1.0
      %v1539 = vlog2.pop %v1538
      %v1540 = vmul.f32 %v1539, 0.6931472
      %v1541 = vmul.f32 -0.5, %v1222
      %v1542 = vadd.f32 %v1541, 1.0
      %v1543 = vmul.f32 %v1542, %v1222
      %v1544 = vand.u32 2147483647, %v1222
      %vm1545 = vcmp.lt.f32.partialorder %v1544, 0.0004427343
      %v1546 = vsel %vm1545, %v1543, %v1540
      %v1547 = vadd.f32 %v1224, 1.0
      %v1548 = vlog2.pop %v1547
      %v1549 = vmul.f32 %v1548, 0.6931472
      %v1550 = vmul.f32 -0.5, %v1224
      %v1551 = vadd.f32 %v1550, 1.0
      %v1552 = vmul.f32 %v1551, %v1224
      %v1553 = vand.u32 2147483647, %v1224
      %vm1554 = vcmp.lt.f32.partialorder %v1553, 0.0004427343
      %v1555 = vsel %vm1554, %v1552, %v1549
      %v1556 = vadd.f32 %v1226, 1.0
      %v1557 = vlog2.pop %v1556
      %v1558 = vmul.f32 %v1557, 0.6931472
      %v1559 = vmul.f32 -0.5, %v1226
      %v1560 = vadd.f32 %v1559, 1.0
      %v1561 = vmul.f32 %v1560, %v1226
      %v1562 = vand.u32 2147483647, %v1226
      %vm1563 = vcmp.lt.f32.partialorder %v1562, 0.0004427343
      %v1564 = vsel %vm1563, %v1561, %v1558
      %v1565 = vadd.f32 %v1228, 1.0
      %v1566 = vlog2.pop %v1565
      %v1567 = vmul.f32 %v1566, 0.6931472
      %v1568 = vmul.f32 -0.5, %v1228
      %v1569 = vadd.f32 %v1568, 1.0
      %v1570 = vmul.f32 %v1569, %v1228
      %v1571 = vand.u32 2147483647, %v1228
      %vm1572 = vcmp.lt.f32.partialorder %v1571, 0.0004427343
      %v1573 = vsel %vm1572, %v1570, %v1567
      %v1574 = vadd.f32 %v1230, 1.0
      %v1575 = vlog2.pop %v1574
      %v1576 = vmul.f32 %v1575, 0.6931472
      %v1577 = vmul.f32 -0.5, %v1230
      %v1578 = vadd.f32 %v1577, 1.0
      %v1579 = vmul.f32 %v1578, %v1230
      %v1580 = vand.u32 2147483647, %v1230
      %vm1581 = vcmp.lt.f32.partialorder %v1580, 0.0004427343
      %v1582 = vsel %vm1581, %v1579, %v1576
      %v1583 = vadd.f32 %v1232, 1.0
      %v1584 = vlog2.pop %v1583
      %v1585 = vmul.f32 %v1584, 0.6931472
      %v1586 = vmul.f32 -0.5, %v1232
      %v1587 = vadd.f32 %v1586, 1.0
      %v1588 = vmul.f32 %v1587, %v1232
      %v1589 = vand.u32 2147483647, %v1232
      %vm1590 = vcmp.lt.f32.partialorder %v1589, 0.0004427343
      %v1591 = vsel %vm1590, %v1588, %v1585
      %v1592 = vadd.f32 %v1234, 1.0
      %v1593 = vlog2.pop %v1592
      %v1594 = vmul.f32 %v1593, 0.6931472
      %v1595 = vmul.f32 -0.5, %v1234
      %v1596 = vadd.f32 %v1595, 1.0
      %v1597 = vmul.f32 %v1596, %v1234
      %v1598 = vand.u32 2147483647, %v1234
      %vm1599 = vcmp.lt.f32.partialorder %v1598, 0.0004427343
      %v1600 = vsel %vm1599, %v1597, %v1594
      %v1601 = vadd.f32 %v1236, 1.0
      %v1602 = vlog2.pop %v1601
      %v1603 = vmul.f32 %v1602, 0.6931472
      %v1604 = vmul.f32 -0.5, %v1236
      %v1605 = vadd.f32 %v1604, 1.0
      %v1606 = vmul.f32 %v1605, %v1236
      %v1607 = vand.u32 2147483647, %v1236
      %vm1608 = vcmp.lt.f32.partialorder %v1607, 0.0004427343
      %v1609 = vsel %vm1608, %v1606, %v1603
      %v1610 = vadd.f32 %v1238, 1.0
      %v1611 = vlog2.pop %v1610
      %v1612 = vmul.f32 %v1611, 0.6931472
      %v1613 = vmul.f32 -0.5, %v1238
      %v1614 = vadd.f32 %v1613, 1.0
      %v1615 = vmul.f32 %v1614, %v1238
      %v1616 = vand.u32 2147483647, %v1238
      %vm1617 = vcmp.lt.f32.partialorder %v1616, 0.0004427343
      %v1618 = vsel %vm1617, %v1615, %v1612
      %v1619 = vadd.f32 %v1240, 1.0
      %v1620 = vlog2.pop %v1619
      %v1621 = vmul.f32 %v1620, 0.6931472
      %v1622 = vmul.f32 -0.5, %v1240
      %v1623 = vadd.f32 %v1622, 1.0
      %v1624 = vmul.f32 %v1623, %v1240
      %v1625 = vand.u32 2147483647, %v1240
      %vm1626 = vcmp.lt.f32.partialorder %v1625, 0.0004427343
      %v1627 = vsel %vm1626, %v1624, %v1621
      %v1628 = vadd.f32 %v1242, 1.0
      %v1629 = vlog2.pop %v1628
      %v1630 = vmul.f32 %v1629, 0.6931472
      %v1631 = vmul.f32 -0.5, %v1242
      %v1632 = vadd.f32 %v1631, 1.0
      %v1633 = vmul.f32 %v1632, %v1242
      %v1634 = vand.u32 2147483647, %v1242
      %vm1635 = vcmp.lt.f32.partialorder %v1634, 0.0004427343
      %v1636 = vsel %vm1635, %v1633, %v1630
      %v1637 = vadd.f32 %v1244, 1.0
      %v1638 = vlog2.pop %v1637
      %v1639 = vmul.f32 %v1638, 0.6931472
      %v1640 = vmul.f32 -0.5, %v1244
      %v1641 = vadd.f32 %v1640, 1.0
      %v1642 = vmul.f32 %v1641, %v1244
      %v1643 = vand.u32 2147483647, %v1244
      %vm1644 = vcmp.lt.f32.partialorder %v1643, 0.0004427343
      %v1645 = vsel %vm1644, %v1642, %v1639
      %v1646 = vadd.f32 %v1246, 1.0
      %v1647 = vlog2.pop %v1646
      %v1648 = vmul.f32 %v1647, 0.6931472
      %v1649 = vmul.f32 -0.5, %v1246
      %v1650 = vadd.f32 %v1649, 1.0
      %v1651 = vmul.f32 %v1650, %v1246
      %v1652 = vand.u32 2147483647, %v1246
      %vm1653 = vcmp.lt.f32.partialorder %v1652, 0.0004427343
      %v1654 = vsel %vm1653, %v1651, %v1648
      %v1655 = vadd.f32 %v1248, 1.0
      %v1656 = vlog2.pop %v1655
      %v1657 = vmul.f32 %v1656, 0.6931472
      %v1658 = vmul.f32 -0.5, %v1248
      %v1659 = vadd.f32 %v1658, 1.0
      %v1660 = vmul.f32 %v1659, %v1248
      %v1661 = vand.u32 2147483647, %v1248
      %vm1662 = vcmp.lt.f32.partialorder %v1661, 0.0004427343
      %v1663 = vsel %vm1662, %v1660, %v1657
      %v1664 = vadd.f32 %v1250, 1.0
      %v1665 = vlog2.pop %v1664
      %v1666 = vmul.f32 %v1665, 0.6931472
      %v1667 = vmul.f32 -0.5, %v1250
      %v1668 = vadd.f32 %v1667, 1.0
      %v1669 = vmul.f32 %v1668, %v1250
      %v1670 = vand.u32 2147483647, %v1250
      %vm1671 = vcmp.lt.f32.partialorder %v1670, 0.0004427343
      %v1672 = vsel %vm1671, %v1669, %v1666
      %v1673 = vadd.f32 %v1252, 1.0
      %v1674 = vlog2.pop %v1673
      %v1675 = vmul.f32 %v1674, 0.6931472
      %v1676 = vmul.f32 -0.5, %v1252
      %v1677 = vadd.f32 %v1676, 1.0
      %v1678 = vmul.f32 %v1677, %v1252
      %v1679 = vand.u32 2147483647, %v1252
      %vm1680 = vcmp.lt.f32.partialorder %v1679, 0.0004427343
      %v1681 = vsel %vm1680, %v1678, %v1675
      %v1682 = vadd.f32 %v1254, 1.0
      %v1683 = vlog2.pop %v1682
      %v1684 = vmul.f32 %v1683, 0.6931472
      %v1685 = vmul.f32 -0.5, %v1254
      %v1686 = vadd.f32 %v1685, 1.0
      %v1687 = vmul.f32 %v1686, %v1254
      %v1688 = vand.u32 2147483647, %v1254
      %vm1689 = vcmp.lt.f32.partialorder %v1688, 0.0004427343
      %v1690 = vsel %vm1689, %v1687, %v1684
      %v1691 = vadd.f32 %v1256, 1.0
      %v1692 = vlog2.pop %v1691
      %v1693 = vmul.f32 %v1692, 0.6931472
      %v1694 = vmul.f32 -0.5, %v1256
      %v1695 = vadd.f32 %v1694, 1.0
      %v1696 = vmul.f32 %v1695, %v1256
      %v1697 = vand.u32 2147483647, %v1256
      %vm1698 = vcmp.lt.f32.partialorder %v1697, 0.0004427343
      %v1699 = vsel %vm1698, %v1696, %v1693
      %v1700 = vadd.f32 %v1258, 1.0
      %v1701 = vlog2.pop %v1700
      %v1702 = vmul.f32 %v1701, 0.6931472
      %v1703 = vmul.f32 -0.5, %v1258
      %v1704 = vadd.f32 %v1703, 1.0
      %v1705 = vmul.f32 %v1704, %v1258
      %v1706 = vand.u32 2147483647, %v1258
      %vm1707 = vcmp.lt.f32.partialorder %v1706, 0.0004427343
      %v1708 = vsel %vm1707, %v1705, %v1702
      %v1709 = vadd.f32 %v1260, 1.0
      %v1710 = vlog2.pop %v1709
      %v1711 = vmul.f32 %v1710, 0.6931472
      %v1712 = vmul.f32 -0.5, %v1260
      %v1713 = vadd.f32 %v1712, 1.0
      %v1714 = vmul.f32 %v1713, %v1260
      %v1715 = vand.u32 2147483647, %v1260
      %vm1716 = vcmp.lt.f32.partialorder %v1715, 0.0004427343
      %v1717 = vsel %vm1716, %v1714, %v1711
      %v1718 = vadd.f32 %v1262, 1.0
      %v1719 = vlog2.pop %v1718
      %v1720 = vmul.f32 %v1719, 0.6931472
      %v1721 = vmul.f32 -0.5, %v1262
      %v1722 = vadd.f32 %v1721, 1.0
      %v1723 = vmul.f32 %v1722, %v1262
      %v1724 = vand.u32 2147483647, %v1262
      %vm1725 = vcmp.lt.f32.partialorder %v1724, 0.0004427343
      %v1726 = vsel %vm1725, %v1723, %v1720
      %v1727 = vadd.f32 %v1264, 1.0
      %v1728 = vlog2.pop %v1727
      %v1729 = vmul.f32 %v1728, 0.6931472
      %v1730 = vmul.f32 -0.5, %v1264
      %v1731 = vadd.f32 %v1730, 1.0
      %v1732 = vmul.f32 %v1731, %v1264
      %v1733 = vand.u32 2147483647, %v1264
      %vm1734 = vcmp.lt.f32.partialorder %v1733, 0.0004427343
      %v1735 = vsel %vm1734, %v1732, %v1729
      %v1736 = vadd.f32 %v1266, 1.0
      %v1737 = vlog2.pop %v1736
      %v1738 = vmul.f32 %v1737, 0.6931472
      %v1739 = vmul.f32 -0.5, %v1266
      %v1740 = vadd.f32 %v1739, 1.0
      %v1741 = vmul.f32 %v1740, %v1266
      %v1742 = vand.u32 2147483647, %v1266
      %vm1743 = vcmp.lt.f32.partialorder %v1742, 0.0004427343
      %v1744 = vsel %vm1743, %v1741, %v1738
      %v1745 = vadd.f32 %v1268, 1.0
      %v1746 = vlog2.pop %v1745
      %v1747 = vmul.f32 %v1746, 0.6931472
      %v1748 = vmul.f32 -0.5, %v1268
      %v1749 = vadd.f32 %v1748, 1.0
      %v1750 = vmul.f32 %v1749, %v1268
      %v1751 = vand.u32 2147483647, %v1268
      %vm1752 = vcmp.lt.f32.partialorder %v1751, 0.0004427343
      %v1753 = vsel %vm1752, %v1750, %v1747
      %v1754 = vadd.f32 %v1270, 1.0
      %v1755 = vlog2.pop %v1754
      %v1756 = vmul.f32 %v1755, 0.6931472
      %v1757 = vmul.f32 -0.5, %v1270
      %v1758 = vadd.f32 %v1757, 1.0
      %v1759 = vmul.f32 %v1758, %v1270
      %v1760 = vand.u32 2147483647, %v1270
      %vm1761 = vcmp.lt.f32.partialorder %v1760, 0.0004427343
      %v1762 = vsel %vm1761, %v1759, %v1756
      %v1763 = vadd.f32 %v1272, 1.0
      %v1764 = vlog2.pop %v1763
      %v1765 = vmul.f32 %v1764, 0.6931472
      %v1766 = vmul.f32 -0.5, %v1272
      %v1767 = vadd.f32 %v1766, 1.0
      %v1768 = vmul.f32 %v1767, %v1272
      %v1769 = vand.u32 2147483647, %v1272
      %vm1770 = vcmp.lt.f32.partialorder %v1769, 0.0004427343
      %v1771 = vsel %vm1770, %v1768, %v1765
      %v1772 = vadd.f32 %v1274, 1.0
      %v1773 = vlog2.pop %v1772
      %v1774 = vmul.f32 %v1773, 0.6931472
      %v1775 = vmul.f32 -0.5, %v1274
      %v1776 = vadd.f32 %v1775, 1.0
      %v1777 = vmul.f32 %v1776, %v1274
      %v1778 = vand.u32 2147483647, %v1274
      %vm1779 = vcmp.lt.f32.partialorder %v1778, 0.0004427343
      %v1780 = vsel %vm1779, %v1777, %v1774
      %v1781 = vadd.f32 %v1276, 1.0
      %v1782 = vlog2.pop %v1781
      %v1783 = vmul.f32 %v1782, 0.6931472
      %v1784 = vmul.f32 -0.5, %v1276
      %v1785 = vadd.f32 %v1784, 1.0
      %v1786 = vmul.f32 %v1785, %v1276
      %v1787 = vand.u32 2147483647, %v1276
      %vm1788 = vcmp.lt.f32.partialorder %v1787, 0.0004427343
      %v1789 = vsel %vm1788, %v1786, %v1783
      %v1790 = vadd.f32 %v1278, 1.0
      %v1791 = vlog2.pop %v1790
      %v1792 = vmul.f32 %v1791, 0.6931472
      %v1793 = vmul.f32 -0.5, %v1278
      %v1794 = vadd.f32 %v1793, 1.0
      %v1795 = vmul.f32 %v1794, %v1278
      %v1796 = vand.u32 2147483647, %v1278
      %vm1797 = vcmp.lt.f32.partialorder %v1796, 0.0004427343
      %v1798 = vsel %vm1797, %v1795, %v1792
      %v1799 = vadd.f32 %v1280, 1.0
      %v1800 = vlog2.pop %v1799
      %v1801 = vmul.f32 %v1800, 0.6931472
      %v1802 = vmul.f32 -0.5, %v1280
      %v1803 = vadd.f32 %v1802, 1.0
      %v1804 = vmul.f32 %v1803, %v1280
      %v1805 = vand.u32 2147483647, %v1280
      %vm1806 = vcmp.lt.f32.partialorder %v1805, 0.0004427343
      %v1807 = vsel %vm1806, %v1804, %v1801
      %v1808 = vadd.f32 %v1282, 1.0
      %v1809 = vlog2.pop %v1808
      %v1810 = vmul.f32 %v1809, 0.6931472
      %v1811 = vmul.f32 -0.5, %v1282
      %v1812 = vadd.f32 %v1811, 1.0
      %v1813 = vmul.f32 %v1812, %v1282
      %v1814 = vand.u32 2147483647, %v1282
      %vm1815 = vcmp.lt.f32.partialorder %v1814, 0.0004427343
      %v1816 = vsel %vm1815, %v1813, %v1810
      %v1817 = vadd.f32 %v1284, 1.0
      %v1818 = vlog2.pop %v1817
      %v1819 = vmul.f32 %v1818, 0.6931472
      %v1820 = vmul.f32 -0.5, %v1284
      %v1821 = vadd.f32 %v1820, 1.0
      %v1822 = vmul.f32 %v1821, %v1284
      %v1823 = vand.u32 2147483647, %v1284
      %vm1824 = vcmp.lt.f32.partialorder %v1823, 0.0004427343
      %v1825 = vsel %vm1824, %v1822, %v1819
      %v1826 = vadd.f32 %v1286, 1.0
      %v1827 = vlog2.pop %v1826
      %v1828 = vmul.f32 %v1827, 0.6931472
      %v1829 = vmul.f32 -0.5, %v1286
      %v1830 = vadd.f32 %v1829, 1.0
      %v1831 = vmul.f32 %v1830, %v1286
      %v1832 = vand.u32 2147483647, %v1286
      %vm1833 = vcmp.lt.f32.partialorder %v1832, 0.0004427343
      %v1834 = vsel %vm1833, %v1831, %v1828
      %v1835 = vadd.f32 %v1288, 1.0
      %v1836 = vlog2.pop %v1835
      %v1837 = vmul.f32 %v1836, 0.6931472
      %v1838 = vmul.f32 -0.5, %v1288
      %v1839 = vadd.f32 %v1838, 1.0
      %v1840 = vmul.f32 %v1839, %v1288
      %v1841 = vand.u32 2147483647, %v1288
      %vm1842 = vcmp.lt.f32.partialorder %v1841, 0.0004427343
      %v1843 = vsel %vm1842, %v1840, %v1837
      %v1844 = vadd.f32 %v1290, 1.0
      %v1845 = vlog2.pop %v1844
      %v1846 = vmul.f32 %v1845, 0.6931472
      %v1847 = vmul.f32 -0.5, %v1290
      %v1848 = vadd.f32 %v1847, 1.0
      %v1849 = vmul.f32 %v1848, %v1290
      %v1850 = vand.u32 2147483647, %v1290
      %vm1851 = vcmp.lt.f32.partialorder %v1850, 0.0004427343
      %v1852 = vsel %vm1851, %v1849, %v1846
      %v1853 = vadd.f32 %v1292, 1.0
      %v1854 = vlog2.pop %v1853
      %v1855 = vmul.f32 %v1854, 0.6931472
      %v1856 = vmul.f32 -0.5, %v1292
      %v1857 = vadd.f32 %v1856, 1.0
      %v1858 = vmul.f32 %v1857, %v1292
      %v1859 = vand.u32 2147483647, %v1292
      %vm1860 = vcmp.lt.f32.partialorder %v1859, 0.0004427343
      %v1861 = vsel %vm1860, %v1858, %v1855
      %v1862 = vadd.f32 %v1294, 1.0
      %v1863 = vlog2.pop %v1862
      %v1864 = vmul.f32 %v1863, 0.6931472
      %v1865 = vmul.f32 -0.5, %v1294
      %v1866 = vadd.f32 %v1865, 1.0
      %v1867 = vmul.f32 %v1866, %v1294
      %v1868 = vand.u32 2147483647, %v1294
      %vm1869 = vcmp.lt.f32.partialorder %v1868, 0.0004427343
      %v1870 = vsel %vm1869, %v1867, %v1864
      %v1871 = vmul.f32 %v1303, 0.01
      %v1872 = vmul.f32 %v1312, 0.01
      %v1873 = vmul.f32 %v1321, 0.01
      %v1874 = vmul.f32 %v1330, 0.01
      %v1875 = vmul.f32 %v1339, 0.01
      %v1876 = vmul.f32 %v1348, 0.01
      %v1877 = vmul.f32 %v1357, 0.01
      %v1878 = vmul.f32 %v1366, 0.01
      %v1879 = vmul.f32 %v1375, 0.01
      %v1880 = vmul.f32 %v1384, 0.01
      %v1881 = vmul.f32 %v1393, 0.01
      %v1882 = vmul.f32 %v1402, 0.01
      %v1883 = vmul.f32 %v1411, 0.01
      %v1884 = vmul.f32 %v1420, 0.01
      %v1885 = vmul.f32 %v1429, 0.01
      %v1886 = vmul.f32 %v1438, 0.01
      %v1887 = vmul.f32 %v1447, 0.01
      %v1888 = vmul.f32 %v1456, 0.01
      %v1889 = vmul.f32 %v1465, 0.01
      %v1890 = vmul.f32 %v1474, 0.01
      %v1891 = vmul.f32 %v1483, 0.01
      %v1892 = vmul.f32 %v1492, 0.01
      %v1893 = vmul.f32 %v1501, 0.01
      %v1894 = vmul.f32 %v1510, 0.01
      %v1895 = vmul.f32 %v1519, 0.01
      %v1896 = vmul.f32 %v1528, 0.01
      %v1897 = vmul.f32 %v1537, 0.01
      %v1898 = vmul.f32 %v1546, 0.01
      %v1899 = vmul.f32 %v1555, 0.01
      %v1900 = vmul.f32 %v1564, 0.01
      %v1901 = vmul.f32 %v1573, 0.01
      %v1902 = vmul.f32 %v1582, 0.01
      %v1903 = vmul.f32 %v1591, 0.01
      %v1904 = vmul.f32 %v1600, 0.01
      %v1905 = vmul.f32 %v1609, 0.01
      %v1906 = vmul.f32 %v1618, 0.01
      %v1907 = vmul.f32 %v1627, 0.01
      %v1908 = vmul.f32 %v1636, 0.01
      %v1909 = vmul.f32 %v1645, 0.01
      %v1910 = vmul.f32 %v1654, 0.01
      %v1911 = vmul.f32 %v1663, 0.01
      %v1912 = vmul.f32 %v1672, 0.01
      %v1913 = vmul.f32 %v1681, 0.01
      %v1914 = vmul.f32 %v1690, 0.01
      %v1915 = vmul.f32 %v1699, 0.01
      %v1916 = vmul.f32 %v1708, 0.01
      %v1917 = vmul.f32 %v1717, 0.01
      %v1918 = vmul.f32 %v1726, 0.01
      %v1919 = vmul.f32 %v1735, 0.01
      %v1920 = vmul.f32 %v1744, 0.01
      %v1921 = vmul.f32 %v1753, 0.01
      %v1922 = vmul.f32 %v1762, 0.01
      %v1923 = vmul.f32 %v1771, 0.01
      %v1924 = vmul.f32 %v1780, 0.01
      %v1925 = vmul.f32 %v1789, 0.01
      %v1926 = vmul.f32 %v1798, 0.01
      %v1927 = vmul.f32 %v1807, 0.01
      %v1928 = vmul.f32 %v1816, 0.01
      %v1929 = vmul.f32 %v1825, 0.01
      %v1930 = vmul.f32 %v1834, 0.01
      %v1931 = vmul.f32 %v1843, 0.01
      %v1932 = vmul.f32 %v1852, 0.01
      %v1933 = vmul.f32 %v1861, 0.01
      %v1934 = vmul.f32 %v1870, 0.01
      %v1935 = vadd.f32 %v1039, %v1871
      %v1936 = vadd.f32 %v1040, %v1872
      %v1937 = vadd.f32 %v1041, %v1873
      %v1938 = vadd.f32 %v1042, %v1874
      %v1939 = vadd.f32 %v1043, %v1875
      %v1940 = vadd.f32 %v1044, %v1876
      %v1941 = vadd.f32 %v1045, %v1877
      %v1942 = vadd.f32 %v1046, %v1878
      %v1943 = vadd.f32 %v1047, %v1879
      %v1944 = vadd.f32 %v1048, %v1880
      %v1945 = vadd.f32 %v1049, %v1881
      %v1946 = vadd.f32 %v1050, %v1882
      %v1947 = vadd.f32 %v1051, %v1883
      %v1948 = vadd.f32 %v1052, %v1884
      %v1949 = vadd.f32 %v1053, %v1885
      %v1950 = vadd.f32 %v1054, %v1886
      %v1951 = vadd.f32 %v1055, %v1887
      %v1952 = vadd.f32 %v1056, %v1888
      %v1953 = vadd.f32 %v1057, %v1889
      %v1954 = vadd.f32 %v1058, %v1890
      %v1955 = vadd.f32 %v1059, %v1891
      %v1956 = vadd.f32 %v1060, %v1892
      %v1957 = vadd.f32 %v1061, %v1893
      %v1958 = vadd.f32 %v1062, %v1894
      %v1959 = vadd.f32 %v1063, %v1895
      %v1960 = vadd.f32 %v1064, %v1896
      %v1961 = vadd.f32 %v1065, %v1897
      %v1962 = vadd.f32 %v1066, %v1898
      %v1963 = vadd.f32 %v1067, %v1899
      %v1964 = vadd.f32 %v1068, %v1900
      %v1965 = vadd.f32 %v1069, %v1901
      %v1966 = vadd.f32 %v1070, %v1902
      %v1967 = vadd.f32 %v1071, %v1903
      %v1968 = vadd.f32 %v1072, %v1904
      %v1969 = vadd.f32 %v1073, %v1905
      %v1970 = vadd.f32 %v1074, %v1906
      %v1971 = vadd.f32 %v1075, %v1907
      %v1972 = vadd.f32 %v1076, %v1908
      %v1973 = vadd.f32 %v1077, %v1909
      %v1974 = vadd.f32 %v1078, %v1910
      %v1975 = vadd.f32 %v1079, %v1911
      %v1976 = vadd.f32 %v1080, %v1912
      %v1977 = vadd.f32 %v1081, %v1913
      %v1978 = vadd.f32 %v1082, %v1914
      %v1979 = vadd.f32 %v1083, %v1915
      %v1980 = vadd.f32 %v1084, %v1916
      %v1981 = vadd.f32 %v1085, %v1917
      %v1982 = vadd.f32 %v1086, %v1918
      %v1983 = vadd.f32 %v1087, %v1919
      %v1984 = vadd.f32 %v1088, %v1920
      %v1985 = vadd.f32 %v1089, %v1921
      %v1986 = vadd.f32 %v1090, %v1922
      %v1987 = vadd.f32 %v1091, %v1923
      %v1988 = vadd.f32 %v1092, %v1924
      %v1989 = vadd.f32 %v1093, %v1925
      %v1990 = vadd.f32 %v1094, %v1926
      %v1991 = vadd.f32 %v1095, %v1927
      %v1992 = vadd.f32 %v1096, %v1928
      %v1993 = vadd.f32 %v1097, %v1929
      %v1994 = vadd.f32 %v1098, %v1930
      %v1995 = vadd.f32 %v1099, %v1931
      %v1996 = vadd.f32 %v1100, %v1932
      %v1997 = vadd.f32 %v1101, %v1933
      %v1998 = vadd.f32 %v1102, %v1934
      %v1999 = vpack.c.bf16 %v1936, %v1935
      %v2000 = vpack.c.bf16 %v1938, %v1937
      %v2001 = vpack.c.bf16 %v1940, %v1939
      %v2002 = vpack.c.bf16 %v1942, %v1941
      %v2003 = vpack.c.bf16 %v1944, %v1943
      %v2004 = vpack.c.bf16 %v1946, %v1945
      %v2005 = vpack.c.bf16 %v1948, %v1947
      %v2006 = vpack.c.bf16 %v1950, %v1949
      %v2007 = vpack.c.bf16 %v1952, %v1951
      %v2008 = vpack.c.bf16 %v1954, %v1953
      %v2009 = vpack.c.bf16 %v1956, %v1955
      %v2010 = vpack.c.bf16 %v1958, %v1957
      %v2011 = vpack.c.bf16 %v1960, %v1959
      %v2012 = vpack.c.bf16 %v1962, %v1961
      %v2013 = vpack.c.bf16 %v1964, %v1963
      %v2014 = vpack.c.bf16 %v1966, %v1965
      %v2015 = vpack.c.bf16 %v1968, %v1967
      %v2016 = vpack.c.bf16 %v1970, %v1969
      %v2017 = vpack.c.bf16 %v1972, %v1971
      %v2018 = vpack.c.bf16 %v1974, %v1973
      %v2019 = vpack.c.bf16 %v1976, %v1975
      %v2020 = vpack.c.bf16 %v1978, %v1977
      %v2021 = vpack.c.bf16 %v1980, %v1979
      %v2022 = vpack.c.bf16 %v1982, %v1981
      %v2023 = vpack.c.bf16 %v1984, %v1983
      %v2024 = vpack.c.bf16 %v1986, %v1985
      %v2025 = vpack.c.bf16 %v1988, %v1987
      %v2026 = vpack.c.bf16 %v1990, %v1989
      %v2027 = vpack.c.bf16 %v1992, %v1991
      %v2028 = vpack.c.bf16 %v1994, %v1993
      %v2029 = vpack.c.bf16 %v1996, %v1995
      %v2030 = vpack.c.bf16 %v1998, %v1997
      %v2031 = vld [vmem:[%s3] sm:$0xf]
      %v2032 = vld [vmem:[%s3 + $0x4] sm:$0xf]
      %v2033 = vld [vmem:[%s3 + $0x8] sm:$0xf]
      %v2034 = vld [vmem:[%s3 + $0xc] sm:$0xf]
      %v2035 = vld [vmem:[%s3 + $0x10] sm:$0xf]
      %v2036 = vld [vmem:[%s3 + $0x14] sm:$0xf]
      %v2037 = vld [vmem:[%s3 + $0x18] sm:$0xf]
      %v2038 = vld [vmem:[%s3 + $0x1c] sm:$0xf]
      %v2039 = vld [vmem:[%s4] sm:$0x1]
      %v2041 = vperm.slane %v2039, 0
      %v2051 = vunpack.c.l.b16 %v2031
      %v2052 = vunpack.c.l.b16 %v2032
      %v2053 = vunpack.c.l.b16 %v2033
      %v2054 = vunpack.c.l.b16 %v2034
      %v2055 = vunpack.c.l.b16 %v2035
      %v2056 = vunpack.c.l.b16 %v2036
      %v2057 = vunpack.c.l.b16 %v2037
      %v2058 = vunpack.c.l.b16 %v2038
      %v2059 = vpack.c.b16 %v2052, %v2051
      %v2060 = vpack.c.b16 %v2054, %v2053
      %v2061 = vpack.c.b16 %v2056, %v2055
      %v2062 = vpack.c.b16 %v2058, %v2057
      %vm2067 = vcmask 523264
      %v2069 = vsel %vm2067, %v1999, 0
      %v2072 = vsel %vm2067, %v2000, 0
      %v2075 = vsel %vm2067, %v2001, 0
      %v2078 = vsel %vm2067, %v2002, 0
      %v2081 = vsel %vm2067, %v2003, 0
      %v2084 = vsel %vm2067, %v2004, 0
      %v2087 = vsel %vm2067, %v2005, 0
      %v2090 = vsel %vm2067, %v2006, 0
      %v2093 = vsel %vm2067, %v2007, 0
      %v2096 = vsel %vm2067, %v2008, 0
      %v2099 = vsel %vm2067, %v2009, 0
      %v2102 = vsel %vm2067, %v2010, 0
      %v2105 = vsel %vm2067, %v2011, 0
      %v2108 = vsel %vm2067, %v2012, 0
      %v2111 = vsel %vm2067, %v2013, 0
      %v2114 = vsel %vm2067, %v2014, 0
      %v2117 = vsel %vm2067, %v2015, 0
      %v2120 = vsel %vm2067, %v2016, 0
      %v2123 = vsel %vm2067, %v2017, 0
      %v2126 = vsel %vm2067, %v2018, 0
      %v2129 = vsel %vm2067, %v2019, 0
      %v2132 = vsel %vm2067, %v2020, 0
      %v2135 = vsel %vm2067, %v2021, 0
      %v2138 = vsel %vm2067, %v2022, 0
      %v2141 = vsel %vm2067, %v2023, 0
      %v2144 = vsel %vm2067, %v2024, 0
      %v2147 = vsel %vm2067, %v2025, 0
      %v2150 = vsel %vm2067, %v2026, 0
      %v2153 = vsel %vm2067, %v2027, 0
      %v2156 = vsel %vm2067, %v2028, 0
      %v2159 = vsel %vm2067, %v2029, 0
      %v2162 = vsel %vm2067, %v2030, 0
      %2164 = vmatpush.bf16.msra.mxu0 0
      %2165 = vmatpush.bf16.msra.mxu0 0
      %2166 = vmatpush.bf16.msra.mxu0 0
      %2167 = vmatpush.bf16.msra.mxu0 0
      %2168 = vmatpush.bf16.msra.mxu0 %v2062
      %2169 = vmatpush.bf16.msra.mxu0 %v2061
      %2170 = vmatpush.bf16.msra.mxu0 %v2060
      %2171 = vmatpush.bf16.msra.mxu0 %v2059
      %2172 = vmatmul.bf16.gmra.mxu0 %v2069
      %v2173 = vpop.f32.mrf.mxu0
      %v2174 = vadd.f32 %v2041, %v2173
      %v2175 = vpop.f32.mrf.mxu0
      %v2176 = vadd.f32 %v2041, %v2175
      %2177 = vmatmul.bf16.gmra.mxu0 %v2072
      %v2178 = vpop.f32.mrf.mxu0
      %v2179 = vadd.f32 %v2041, %v2178
      %v2180 = vpop.f32.mrf.mxu0
      %v2181 = vadd.f32 %v2041, %v2180
      %2182 = vmatmul.bf16.gmra.mxu0 %v2075
      %v2183 = vpop.f32.mrf.mxu0
      %v2184 = vadd.f32 %v2041, %v2183
      %v2185 = vpop.f32.mrf.mxu0
      %v2186 = vadd.f32 %v2041, %v2185
      %2187 = vmatmul.bf16.gmra.mxu0 %v2078
      %v2188 = vpop.f32.mrf.mxu0
      %v2189 = vadd.f32 %v2041, %v2188
      %v2190 = vpop.f32.mrf.mxu0
      %v2191 = vadd.f32 %v2041, %v2190
      %2192 = vmatmul.bf16.gmra.mxu0 %v2081
      %v2193 = vpop.f32.mrf.mxu0
      %v2194 = vadd.f32 %v2041, %v2193
      %v2195 = vpop.f32.mrf.mxu0
      %v2196 = vadd.f32 %v2041, %v2195
      %2197 = vmatmul.bf16.gmra.mxu0 %v2084
      %v2198 = vpop.f32.mrf.mxu0
      %v2199 = vadd.f32 %v2041, %v2198
      %v2200 = vpop.f32.mrf.mxu0
      %v2201 = vadd.f32 %v2041, %v2200
      %2202 = vmatmul.bf16.gmra.mxu0 %v2087
      %v2203 = vpop.f32.mrf.mxu0
      %v2204 = vadd.f32 %v2041, %v2203
      %v2205 = vpop.f32.mrf.mxu0
      %v2206 = vadd.f32 %v2041, %v2205
      %2207 = vmatmul.bf16.gmra.mxu0 %v2090
      %v2208 = vpop.f32.mrf.mxu0
      %v2209 = vadd.f32 %v2041, %v2208
      %v2210 = vpop.f32.mrf.mxu0
      %v2211 = vadd.f32 %v2041, %v2210
      %2212 = vmatmul.bf16.gmra.mxu0 %v2093
      %v2213 = vpop.f32.mrf.mxu0
      %v2214 = vadd.f32 %v2041, %v2213
      %v2215 = vpop.f32.mrf.mxu0
      %v2216 = vadd.f32 %v2041, %v2215
      %2217 = vmatmul.bf16.gmra.mxu0 %v2096
      %v2218 = vpop.f32.mrf.mxu0
      %v2219 = vadd.f32 %v2041, %v2218
      %v2220 = vpop.f32.mrf.mxu0
      %v2221 = vadd.f32 %v2041, %v2220
      %2222 = vmatmul.bf16.gmra.mxu0 %v2099
      %v2223 = vpop.f32.mrf.mxu0
      %v2224 = vadd.f32 %v2041, %v2223
      %v2225 = vpop.f32.mrf.mxu0
      %v2226 = vadd.f32 %v2041, %v2225
      %2227 = vmatmul.bf16.gmra.mxu0 %v2102
      %v2228 = vpop.f32.mrf.mxu0
      %v2229 = vadd.f32 %v2041, %v2228
      %v2230 = vpop.f32.mrf.mxu0
      %v2231 = vadd.f32 %v2041, %v2230
      %2232 = vmatmul.bf16.gmra.mxu0 %v2105
      %v2233 = vpop.f32.mrf.mxu0
      %v2234 = vadd.f32 %v2041, %v2233
      %v2235 = vpop.f32.mrf.mxu0
      %v2236 = vadd.f32 %v2041, %v2235
      %2237 = vmatmul.bf16.gmra.mxu0 %v2108
      %v2238 = vpop.f32.mrf.mxu0
      %v2239 = vadd.f32 %v2041, %v2238
      %v2240 = vpop.f32.mrf.mxu0
      %v2241 = vadd.f32 %v2041, %v2240
      %2242 = vmatmul.bf16.gmra.mxu0 %v2111
      %v2243 = vpop.f32.mrf.mxu0
      %v2244 = vadd.f32 %v2041, %v2243
      %v2245 = vpop.f32.mrf.mxu0
      %v2246 = vadd.f32 %v2041, %v2245
      %2247 = vmatmul.bf16.gmra.mxu0 %v2114
      %v2248 = vpop.f32.mrf.mxu0
      %v2249 = vadd.f32 %v2041, %v2248
      %v2250 = vpop.f32.mrf.mxu0
      %v2251 = vadd.f32 %v2041, %v2250
      %2252 = vmatmul.bf16.gmra.mxu0 %v2117
      %v2253 = vpop.f32.mrf.mxu0
      %v2254 = vadd.f32 %v2041, %v2253
      %v2255 = vpop.f32.mrf.mxu0
      %v2256 = vadd.f32 %v2041, %v2255
      %2257 = vmatmul.bf16.gmra.mxu0 %v2120
      %v2258 = vpop.f32.mrf.mxu0
      %v2259 = vadd.f32 %v2041, %v2258
      %v2260 = vpop.f32.mrf.mxu0
      %v2261 = vadd.f32 %v2041, %v2260
      %2262 = vmatmul.bf16.gmra.mxu0 %v2123
      %v2263 = vpop.f32.mrf.mxu0
      %v2264 = vadd.f32 %v2041, %v2263
      %v2265 = vpop.f32.mrf.mxu0
      %v2266 = vadd.f32 %v2041, %v2265
      %2267 = vmatmul.bf16.gmra.mxu0 %v2126
      %v2268 = vpop.f32.mrf.mxu0
      %v2269 = vadd.f32 %v2041, %v2268
      %v2270 = vpop.f32.mrf.mxu0
      %v2271 = vadd.f32 %v2041, %v2270
      %2272 = vmatmul.bf16.gmra.mxu0 %v2129
      %v2273 = vpop.f32.mrf.mxu0
      %v2274 = vadd.f32 %v2041, %v2273
      %v2275 = vpop.f32.mrf.mxu0
      %v2276 = vadd.f32 %v2041, %v2275
      %2277 = vmatmul.bf16.gmra.mxu0 %v2132
      %v2278 = vpop.f32.mrf.mxu0
      %v2279 = vadd.f32 %v2041, %v2278
      %v2280 = vpop.f32.mrf.mxu0
      %v2281 = vadd.f32 %v2041, %v2280
      %2282 = vmatmul.bf16.gmra.mxu0 %v2135
      %v2283 = vpop.f32.mrf.mxu0
      %v2284 = vadd.f32 %v2041, %v2283
      %v2285 = vpop.f32.mrf.mxu0
      %v2286 = vadd.f32 %v2041, %v2285
      %2287 = vmatmul.bf16.gmra.mxu0 %v2138
      %v2288 = vpop.f32.mrf.mxu0
      %v2289 = vadd.f32 %v2041, %v2288
      %v2290 = vpop.f32.mrf.mxu0
      %v2291 = vadd.f32 %v2041, %v2290
      %2292 = vmatmul.bf16.gmra.mxu0 %v2141
      %v2293 = vpop.f32.mrf.mxu0
      %v2294 = vadd.f32 %v2041, %v2293
      %v2295 = vpop.f32.mrf.mxu0
      %v2296 = vadd.f32 %v2041, %v2295
      %2297 = vmatmul.bf16.gmra.mxu0 %v2144
      %v2298 = vpop.f32.mrf.mxu0
      %v2299 = vadd.f32 %v2041, %v2298
      %v2300 = vpop.f32.mrf.mxu0
      %v2301 = vadd.f32 %v2041, %v2300
      %2302 = vmatmul.bf16.gmra.mxu0 %v2147
      %v2303 = vpop.f32.mrf.mxu0
      %v2304 = vadd.f32 %v2041, %v2303
      %v2305 = vpop.f32.mrf.mxu0
      %v2306 = vadd.f32 %v2041, %v2305
      %2307 = vmatmul.bf16.gmra.mxu0 %v2150
      %v2308 = vpop.f32.mrf.mxu0
      %v2309 = vadd.f32 %v2041, %v2308
      %v2310 = vpop.f32.mrf.mxu0
      %v2311 = vadd.f32 %v2041, %v2310
      %2312 = vmatmul.bf16.gmra.mxu0 %v2153
      %v2313 = vpop.f32.mrf.mxu0
      %v2314 = vadd.f32 %v2041, %v2313
      %v2315 = vpop.f32.mrf.mxu0
      %v2316 = vadd.f32 %v2041, %v2315
      %2317 = vmatmul.bf16.gmra.mxu0 %v2156
      %v2318 = vpop.f32.mrf.mxu0
      %v2319 = vadd.f32 %v2041, %v2318
      %v2320 = vpop.f32.mrf.mxu0
      %v2321 = vadd.f32 %v2041, %v2320
      %2322 = vmatmul.bf16.gmra.mxu0 %v2159
      %v2323 = vpop.f32.mrf.mxu0
      %v2324 = vadd.f32 %v2041, %v2323
      %v2325 = vpop.f32.mrf.mxu0
      %v2326 = vadd.f32 %v2041, %v2325
      %2327 = vmatmul.bf16.gmra.mxu0 %v2162
      %v2328 = vpop.f32.mrf.mxu0
      %v2329 = vadd.f32 %v2041, %v2328
      %v2330 = vpop.f32.mrf.mxu0
      %v2331 = vadd.f32 %v2041, %v2330
      %2332 = vdwg.mxu0
      %v2333 = vand.u32 2147483647, %v2174
      %v2334 = vand.u32 2147483647, %v2176
      %v2335 = vand.u32 2147483647, %v2179
      %v2336 = vand.u32 2147483647, %v2181
      %v2337 = vand.u32 2147483647, %v2184
      %v2338 = vand.u32 2147483647, %v2186
      %v2339 = vand.u32 2147483647, %v2189
      %v2340 = vand.u32 2147483647, %v2191
      %v2341 = vand.u32 2147483647, %v2194
      %v2342 = vand.u32 2147483647, %v2196
      %v2343 = vand.u32 2147483647, %v2199
      %v2344 = vand.u32 2147483647, %v2201
      %v2345 = vand.u32 2147483647, %v2204
      %v2346 = vand.u32 2147483647, %v2206
      %v2347 = vand.u32 2147483647, %v2209
      %v2348 = vand.u32 2147483647, %v2211
      %v2349 = vand.u32 2147483647, %v2214
      %v2350 = vand.u32 2147483647, %v2216
      %v2351 = vand.u32 2147483647, %v2219
      %v2352 = vand.u32 2147483647, %v2221
      %v2353 = vand.u32 2147483647, %v2224
      %v2354 = vand.u32 2147483647, %v2226
      %v2355 = vand.u32 2147483647, %v2229
      %v2356 = vand.u32 2147483647, %v2231
      %v2357 = vand.u32 2147483647, %v2234
      %v2358 = vand.u32 2147483647, %v2236
      %v2359 = vand.u32 2147483647, %v2239
      %v2360 = vand.u32 2147483647, %v2241
      %v2361 = vand.u32 2147483647, %v2244
      %v2362 = vand.u32 2147483647, %v2246
      %v2363 = vand.u32 2147483647, %v2249
      %v2364 = vand.u32 2147483647, %v2251
      %v2365 = vand.u32 2147483647, %v2254
      %v2366 = vand.u32 2147483647, %v2256
      %v2367 = vand.u32 2147483647, %v2259
      %v2368 = vand.u32 2147483647, %v2261
      %v2369 = vand.u32 2147483647, %v2264
      %v2370 = vand.u32 2147483647, %v2266
      %v2371 = vand.u32 2147483647, %v2269
      %v2372 = vand.u32 2147483647, %v2271
      %v2373 = vand.u32 2147483647, %v2274
      %v2374 = vand.u32 2147483647, %v2276
      %v2375 = vand.u32 2147483647, %v2279
      %v2376 = vand.u32 2147483647, %v2281
      %v2377 = vand.u32 2147483647, %v2284
      %v2378 = vand.u32 2147483647, %v2286
      %v2379 = vand.u32 2147483647, %v2289
      %v2380 = vand.u32 2147483647, %v2291
      %v2381 = vand.u32 2147483647, %v2294
      %v2382 = vand.u32 2147483647, %v2296
      %v2383 = vand.u32 2147483647, %v2299
      %v2384 = vand.u32 2147483647, %v2301
      %v2385 = vand.u32 2147483647, %v2304
      %v2386 = vand.u32 2147483647, %v2306
      %v2387 = vand.u32 2147483647, %v2309
      %v2388 = vand.u32 2147483647, %v2311
      %v2389 = vand.u32 2147483647, %v2314
      %v2390 = vand.u32 2147483647, %v2316
      %v2391 = vand.u32 2147483647, %v2319
      %v2392 = vand.u32 2147483647, %v2321
      %v2393 = vand.u32 2147483647, %v2324
      %v2394 = vand.u32 2147483647, %v2326
      %v2395 = vand.u32 2147483647, %v2329
      %v2396 = vand.u32 2147483647, %v2331
      %v2397 = vmul.f32 %v2333, 100.0
      %v2398 = vmul.f32 %v2334, 100.0
      %v2399 = vmul.f32 %v2335, 100.0
      %v2400 = vmul.f32 %v2336, 100.0
      %v2401 = vmul.f32 %v2337, 100.0
      %v2402 = vmul.f32 %v2338, 100.0
      %v2403 = vmul.f32 %v2339, 100.0
      %v2404 = vmul.f32 %v2340, 100.0
      %v2405 = vmul.f32 %v2341, 100.0
      %v2406 = vmul.f32 %v2342, 100.0
      %v2407 = vmul.f32 %v2343, 100.0
      %v2408 = vmul.f32 %v2344, 100.0
      %v2409 = vmul.f32 %v2345, 100.0
      %v2410 = vmul.f32 %v2346, 100.0
      %v2411 = vmul.f32 %v2347, 100.0
      %v2412 = vmul.f32 %v2348, 100.0
      %v2413 = vmul.f32 %v2349, 100.0
      %v2414 = vmul.f32 %v2350, 100.0
      %v2415 = vmul.f32 %v2351, 100.0
      %v2416 = vmul.f32 %v2352, 100.0
      %v2417 = vmul.f32 %v2353, 100.0
      %v2418 = vmul.f32 %v2354, 100.0
      %v2419 = vmul.f32 %v2355, 100.0
      %v2420 = vmul.f32 %v2356, 100.0
      %v2421 = vmul.f32 %v2357, 100.0
      %v2422 = vmul.f32 %v2358, 100.0
      %v2423 = vmul.f32 %v2359, 100.0
      %v2424 = vmul.f32 %v2360, 100.0
      %v2425 = vmul.f32 %v2361, 100.0
      %v2426 = vmul.f32 %v2362, 100.0
      %v2427 = vmul.f32 %v2363, 100.0
      %v2428 = vmul.f32 %v2364, 100.0
      %v2429 = vmul.f32 %v2365, 100.0
      %v2430 = vmul.f32 %v2366, 100.0
      %v2431 = vmul.f32 %v2367, 100.0
      %v2432 = vmul.f32 %v2368, 100.0
      %v2433 = vmul.f32 %v2369, 100.0
      %v2434 = vmul.f32 %v2370, 100.0
      %v2435 = vmul.f32 %v2371, 100.0
      %v2436 = vmul.f32 %v2372, 100.0
      %v2437 = vmul.f32 %v2373, 100.0
      %v2438 = vmul.f32 %v2374, 100.0
      %v2439 = vmul.f32 %v2375, 100.0
      %v2440 = vmul.f32 %v2376, 100.0
      %v2441 = vmul.f32 %v2377, 100.0
      %v2442 = vmul.f32 %v2378, 100.0
      %v2443 = vmul.f32 %v2379, 100.0
      %v2444 = vmul.f32 %v2380, 100.0
      %v2445 = vmul.f32 %v2381, 100.0
      %v2446 = vmul.f32 %v2382, 100.0
      %v2447 = vmul.f32 %v2383, 100.0
      %v2448 = vmul.f32 %v2384, 100.0
      %v2449 = vmul.f32 %v2385, 100.0
      %v2450 = vmul.f32 %v2386, 100.0
      %v2451 = vmul.f32 %v2387, 100.0
      %v2452 = vmul.f32 %v2388, 100.0
      %v2453 = vmul.f32 %v2389, 100.0
      %v2454 = vmul.f32 %v2390, 100.0
      %v2455 = vmul.f32 %v2391, 100.0
      %v2456 = vmul.f32 %v2392, 100.0
      %v2457 = vmul.f32 %v2393, 100.0
      %v2458 = vmul.f32 %v2394, 100.0
      %v2459 = vmul.f32 %v2395, 100.0
      %v2460 = vmul.f32 %v2396, 100.0
      %v2461 = vmax.f32 %v2174, 0.0
      %v2462 = vmax.f32 %v2176, 0.0
      %v2463 = vmax.f32 %v2179, 0.0
      %v2464 = vmax.f32 %v2181, 0.0
      %v2465 = vmax.f32 %v2184, 0.0
      %v2466 = vmax.f32 %v2186, 0.0
      %v2467 = vmax.f32 %v2189, 0.0
      %v2468 = vmax.f32 %v2191, 0.0
      %v2469 = vmax.f32 %v2194, 0.0
      %v2470 = vmax.f32 %v2196, 0.0
      %v2471 = vmax.f32 %v2199, 0.0
      %v2472 = vmax.f32 %v2201, 0.0
      %v2473 = vmax.f32 %v2204, 0.0
      %v2474 = vmax.f32 %v2206, 0.0
      %v2475 = vmax.f32 %v2209, 0.0
      %v2476 = vmax.f32 %v2211, 0.0
      %v2477 = vmax.f32 %v2214, 0.0
      %v2478 = vmax.f32 %v2216, 0.0
      %v2479 = vmax.f32 %v2219, 0.0
      %v2480 = vmax.f32 %v2221, 0.0
      %v2481 = vmax.f32 %v2224, 0.0
      %v2482 = vmax.f32 %v2226, 0.0
      %v2483 = vmax.f32 %v2229, 0.0
      %v2484 = vmax.f32 %v2231, 0.0
      %v2485 = vmax.f32 %v2234, 0.0
      %v2486 = vmax.f32 %v2236, 0.0
      %v2487 = vmax.f32 %v2239, 0.0
      %v2488 = vmax.f32 %v2241, 0.0
      %v2489 = vmax.f32 %v2244, 0.0
      %v2490 = vmax.f32 %v2246, 0.0
      %v2491 = vmax.f32 %v2249, 0.0
      %v2492 = vmax.f32 %v2251, 0.0
      %v2493 = vmax.f32 %v2254, 0.0
      %v2494 = vmax.f32 %v2256, 0.0
      %v2495 = vmax.f32 %v2259, 0.0
      %v2496 = vmax.f32 %v2261, 0.0
      %v2497 = vmax.f32 %v2264, 0.0
      %v2498 = vmax.f32 %v2266, 0.0
      %v2499 = vmax.f32 %v2269, 0.0
      %v2500 = vmax.f32 %v2271, 0.0
      %v2501 = vmax.f32 %v2274, 0.0
      %v2502 = vmax.f32 %v2276, 0.0
      %v2503 = vmax.f32 %v2279, 0.0
      %v2504 = vmax.f32 %v2281, 0.0
      %v2505 = vmax.f32 %v2284, 0.0
      %v2506 = vmax.f32 %v2286, 0.0
      %v2507 = vmax.f32 %v2289, 0.0
      %v2508 = vmax.f32 %v2291, 0.0
      %v2509 = vmax.f32 %v2294, 0.0
      %v2510 = vmax.f32 %v2296, 0.0
      %v2511 = vmax.f32 %v2299, 0.0
      %v2512 = vmax.f32 %v2301, 0.0
      %v2513 = vmax.f32 %v2304, 0.0
      %v2514 = vmax.f32 %v2306, 0.0
      %v2515 = vmax.f32 %v2309, 0.0
      %v2516 = vmax.f32 %v2311, 0.0
      %v2517 = vmax.f32 %v2314, 0.0
      %v2518 = vmax.f32 %v2316, 0.0
      %v2519 = vmax.f32 %v2319, 0.0
      %v2520 = vmax.f32 %v2321, 0.0
      %v2521 = vmax.f32 %v2324, 0.0
      %v2522 = vmax.f32 %v2326, 0.0
      %v2523 = vmax.f32 %v2329, 0.0
      %v2524 = vmax.f32 %v2331, 0.0
      %v2525 = vsub.f32 0.0, %v2397
      %v2526 = vsub.f32 0.0, %v2398
      %v2527 = vsub.f32 0.0, %v2399
      %v2528 = vsub.f32 0.0, %v2400
      %v2529 = vsub.f32 0.0, %v2401
      %v2530 = vsub.f32 0.0, %v2402
      %v2531 = vsub.f32 0.0, %v2403
      %v2532 = vsub.f32 0.0, %v2404
      %v2533 = vsub.f32 0.0, %v2405
      %v2534 = vsub.f32 0.0, %v2406
      %v2535 = vsub.f32 0.0, %v2407
      %v2536 = vsub.f32 0.0, %v2408
      %v2537 = vsub.f32 0.0, %v2409
      %v2538 = vsub.f32 0.0, %v2410
      %v2539 = vsub.f32 0.0, %v2411
      %v2540 = vsub.f32 0.0, %v2412
      %v2541 = vsub.f32 0.0, %v2413
      %v2542 = vsub.f32 0.0, %v2414
      %v2543 = vsub.f32 0.0, %v2415
      %v2544 = vsub.f32 0.0, %v2416
      %v2545 = vsub.f32 0.0, %v2417
      %v2546 = vsub.f32 0.0, %v2418
      %v2547 = vsub.f32 0.0, %v2419
      %v2548 = vsub.f32 0.0, %v2420
      %v2549 = vsub.f32 0.0, %v2421
      %v2550 = vsub.f32 0.0, %v2422
      %v2551 = vsub.f32 0.0, %v2423
      %v2552 = vsub.f32 0.0, %v2424
      %v2553 = vsub.f32 0.0, %v2425
      %v2554 = vsub.f32 0.0, %v2426
      %v2555 = vsub.f32 0.0, %v2427
      %v2556 = vsub.f32 0.0, %v2428
      %v2557 = vsub.f32 0.0, %v2429
      %v2558 = vsub.f32 0.0, %v2430
      %v2559 = vsub.f32 0.0, %v2431
      %v2560 = vsub.f32 0.0, %v2432
      %v2561 = vsub.f32 0.0, %v2433
      %v2562 = vsub.f32 0.0, %v2434
      %v2563 = vsub.f32 0.0, %v2435
      %v2564 = vsub.f32 0.0, %v2436
      %v2565 = vsub.f32 0.0, %v2437
      %v2566 = vsub.f32 0.0, %v2438
      %v2567 = vsub.f32 0.0, %v2439
      %v2568 = vsub.f32 0.0, %v2440
      %v2569 = vsub.f32 0.0, %v2441
      %v2570 = vsub.f32 0.0, %v2442
      %v2571 = vsub.f32 0.0, %v2443
      %v2572 = vsub.f32 0.0, %v2444
      %v2573 = vsub.f32 0.0, %v2445
      %v2574 = vsub.f32 0.0, %v2446
      %v2575 = vsub.f32 0.0, %v2447
      %v2576 = vsub.f32 0.0, %v2448
      %v2577 = vsub.f32 0.0, %v2449
      %v2578 = vsub.f32 0.0, %v2450
      %v2579 = vsub.f32 0.0, %v2451
      %v2580 = vsub.f32 0.0, %v2452
      %v2581 = vsub.f32 0.0, %v2453
      %v2582 = vsub.f32 0.0, %v2454
      %v2583 = vsub.f32 0.0, %v2455
      %v2584 = vsub.f32 0.0, %v2456
      %v2585 = vsub.f32 0.0, %v2457
      %v2586 = vsub.f32 0.0, %v2458
      %v2587 = vsub.f32 0.0, %v2459
      %v2588 = vsub.f32 0.0, %v2460
      %v2589 = vmul.f32 %v2525, 1.442695
      %v2590 = vpow.pop %v2589
      %v2591 = vmul.f32 %v2526, 1.442695
      %v2592 = vpow.pop %v2591
      %v2593 = vmul.f32 %v2527, 1.442695
      %v2594 = vpow.pop %v2593
      %v2595 = vmul.f32 %v2528, 1.442695
      %v2596 = vpow.pop %v2595
      %v2597 = vmul.f32 %v2529, 1.442695
      %v2598 = vpow.pop %v2597
      %v2599 = vmul.f32 %v2530, 1.442695
      %v2600 = vpow.pop %v2599
      %v2601 = vmul.f32 %v2531, 1.442695
      %v2602 = vpow.pop %v2601
      %v2603 = vmul.f32 %v2532, 1.442695
      %v2604 = vpow.pop %v2603
      %v2605 = vmul.f32 %v2533, 1.442695
      %v2606 = vpow.pop %v2605
      %v2607 = vmul.f32 %v2534, 1.442695
      %v2608 = vpow.pop %v2607
      %v2609 = vmul.f32 %v2535, 1.442695
      %v2610 = vpow.pop %v2609
      %v2611 = vmul.f32 %v2536, 1.442695
      %v2612 = vpow.pop %v2611
      %v2613 = vmul.f32 %v2537, 1.442695
      %v2614 = vpow.pop %v2613
      %v2615 = vmul.f32 %v2538, 1.442695
      %v2616 = vpow.pop %v2615
      %v2617 = vmul.f32 %v2539, 1.442695
      %v2618 = vpow.pop %v2617
      %v2619 = vmul.f32 %v2540, 1.442695
      %v2620 = vpow.pop %v2619
      %v2621 = vmul.f32 %v2541, 1.442695
      %v2622 = vpow.pop %v2621
      %v2623 = vmul.f32 %v2542, 1.442695
      %v2624 = vpow.pop %v2623
      %v2625 = vmul.f32 %v2543, 1.442695
      %v2626 = vpow.pop %v2625
      %v2627 = vmul.f32 %v2544, 1.442695
      %v2628 = vpow.pop %v2627
      %v2629 = vmul.f32 %v2545, 1.442695
      %v2630 = vpow.pop %v2629
      %v2631 = vmul.f32 %v2546, 1.442695
      %v2632 = vpow.pop %v2631
      %v2633 = vmul.f32 %v2547, 1.442695
      %v2634 = vpow.pop %v2633
      %v2635 = vmul.f32 %v2548, 1.442695
      %v2636 = vpow.pop %v2635
      %v2637 = vmul.f32 %v2549, 1.442695
      %v2638 = vpow.pop %v2637
      %v2639 = vmul.f32 %v2550, 1.442695
      %v2640 = vpow.pop %v2639
      %v2641 = vmul.f32 %v2551, 1.442695
      %v2642 = vpow.pop %v2641
      %v2643 = vmul.f32 %v2552, 1.442695
      %v2644 = vpow.pop %v2643
      %v2645 = vmul.f32 %v2553, 1.442695
      %v2646 = vpow.pop %v2645
      %v2647 = vmul.f32 %v2554, 1.442695
      %v2648 = vpow.pop %v2647
      %v2649 = vmul.f32 %v2555, 1.442695
      %v2650 = vpow.pop %v2649
      %v2651 = vmul.f32 %v2556, 1.442695
      %v2652 = vpow.pop %v2651
      %v2653 = vmul.f32 %v2557, 1.442695
      %v2654 = vpow.pop %v2653
      %v2655 = vmul.f32 %v2558, 1.442695
      %v2656 = vpow.pop %v2655
      %v2657 = vmul.f32 %v2559, 1.442695
      %v2658 = vpow.pop %v2657
      %v2659 = vmul.f32 %v2560, 1.442695
      %v2660 = vpow.pop %v2659
      %v2661 = vmul.f32 %v2561, 1.442695
      %v2662 = vpow.pop %v2661
      %v2663 = vmul.f32 %v2562, 1.442695
      %v2664 = vpow.pop %v2663
      %v2665 = vmul.f32 %v2563, 1.442695
      %v2666 = vpow.pop %v2665
      %v2667 = vmul.f32 %v2564, 1.442695
      %v2668 = vpow.pop %v2667
      %v2669 = vmul.f32 %v2565, 1.442695
      %v2670 = vpow.pop %v2669
      %v2671 = vmul.f32 %v2566, 1.442695
      %v2672 = vpow.pop %v2671
      %v2673 = vmul.f32 %v2567, 1.442695
      %v2674 = vpow.pop %v2673
      %v2675 = vmul.f32 %v2568, 1.442695
      %v2676 = vpow.pop %v2675
      %v2677 = vmul.f32 %v2569, 1.442695
      %v2678 = vpow.pop %v2677
      %v2679 = vmul.f32 %v2570, 1.442695
      %v2680 = vpow.pop %v2679
      %v2681 = vmul.f32 %v2571, 1.442695
      %v2682 = vpow.pop %v2681
      %v2683 = vmul.f32 %v2572, 1.442695
      %v2684 = vpow.pop %v2683
      %v2685 = vmul.f32 %v2573, 1.442695
      %v2686 = vpow.pop %v2685
      %v2687 = vmul.f32 %v2574, 1.442695
      %v2688 = vpow.pop %v2687
      %v2689 = vmul.f32 %v2575, 1.442695
      %v2690 = vpow.pop %v2689
      %v2691 = vmul.f32 %v2576, 1.442695
      %v2692 = vpow.pop %v2691
      %v2693 = vmul.f32 %v2577, 1.442695
      %v2694 = vpow.pop %v2693
      %v2695 = vmul.f32 %v2578, 1.442695
      %v2696 = vpow.pop %v2695
      %v2697 = vmul.f32 %v2579, 1.442695
      %v2698 = vpow.pop %v2697
      %v2699 = vmul.f32 %v2580, 1.442695
      %v2700 = vpow.pop %v2699
      %v2701 = vmul.f32 %v2581, 1.442695
      %v2702 = vpow.pop %v2701
      %v2703 = vmul.f32 %v2582, 1.442695
      %v2704 = vpow.pop %v2703
      %v2705 = vmul.f32 %v2583, 1.442695
      %v2706 = vpow.pop %v2705
      %v2707 = vmul.f32 %v2584, 1.442695
      %v2708 = vpow.pop %v2707
      %v2709 = vmul.f32 %v2585, 1.442695
      %v2710 = vpow.pop %v2709
      %v2711 = vmul.f32 %v2586, 1.442695
      %v2712 = vpow.pop %v2711
      %v2713 = vmul.f32 %v2587, 1.442695
      %v2714 = vpow.pop %v2713
      %v2715 = vmul.f32 %v2588, 1.442695
      %v2716 = vpow.pop %v2715
      %v2717 = vadd.f32 %v2590, 1.0
      %v2718 = vlog2.pop %v2717
      %v2719 = vmul.f32 %v2718, 0.6931472
      %v2720 = vmul.f32 -0.5, %v2590
      %v2721 = vadd.f32 %v2720, 1.0
      %v2722 = vmul.f32 %v2721, %v2590
      %v2723 = vand.u32 2147483647, %v2590
      %vm2724 = vcmp.lt.f32.partialorder %v2723, 0.0004427343
      %v2725 = vsel %vm2724, %v2722, %v2719
      %v2726 = vadd.f32 %v2592, 1.0
      %v2727 = vlog2.pop %v2726
      %v2728 = vmul.f32 %v2727, 0.6931472
      %v2729 = vmul.f32 -0.5, %v2592
      %v2730 = vadd.f32 %v2729, 1.0
      %v2731 = vmul.f32 %v2730, %v2592
      %v2732 = vand.u32 2147483647, %v2592
      %vm2733 = vcmp.lt.f32.partialorder %v2732, 0.0004427343
      %v2734 = vsel %vm2733, %v2731, %v2728
      %v2735 = vadd.f32 %v2594, 1.0
      %v2736 = vlog2.pop %v2735
      %v2737 = vmul.f32 %v2736, 0.6931472
      %v2738 = vmul.f32 -0.5, %v2594
      %v2739 = vadd.f32 %v2738, 1.0
      %v2740 = vmul.f32 %v2739, %v2594
      %v2741 = vand.u32 2147483647, %v2594
      %vm2742 = vcmp.lt.f32.partialorder %v2741, 0.0004427343
      %v2743 = vsel %vm2742, %v2740, %v2737
      %v2744 = vadd.f32 %v2596, 1.0
      %v2745 = vlog2.pop %v2744
      %v2746 = vmul.f32 %v2745, 0.6931472
      %v2747 = vmul.f32 -0.5, %v2596
      %v2748 = vadd.f32 %v2747, 1.0
      %v2749 = vmul.f32 %v2748, %v2596
      %v2750 = vand.u32 2147483647, %v2596
      %vm2751 = vcmp.lt.f32.partialorder %v2750, 0.0004427343
      %v2752 = vsel %vm2751, %v2749, %v2746
      %v2753 = vadd.f32 %v2598, 1.0
      %v2754 = vlog2.pop %v2753
      %v2755 = vmul.f32 %v2754, 0.6931472
      %v2756 = vmul.f32 -0.5, %v2598
      %v2757 = vadd.f32 %v2756, 1.0
      %v2758 = vmul.f32 %v2757, %v2598
      %v2759 = vand.u32 2147483647, %v2598
      %vm2760 = vcmp.lt.f32.partialorder %v2759, 0.0004427343
      %v2761 = vsel %vm2760, %v2758, %v2755
      %v2762 = vadd.f32 %v2600, 1.0
      %v2763 = vlog2.pop %v2762
      %v2764 = vmul.f32 %v2763, 0.6931472
      %v2765 = vmul.f32 -0.5, %v2600
      %v2766 = vadd.f32 %v2765, 1.0
      %v2767 = vmul.f32 %v2766, %v2600
      %v2768 = vand.u32 2147483647, %v2600
      %vm2769 = vcmp.lt.f32.partialorder %v2768, 0.0004427343
      %v2770 = vsel %vm2769, %v2767, %v2764
      %v2771 = vadd.f32 %v2602, 1.0
      %v2772 = vlog2.pop %v2771
      %v2773 = vmul.f32 %v2772, 0.6931472
      %v2774 = vmul.f32 -0.5, %v2602
      %v2775 = vadd.f32 %v2774, 1.0
      %v2776 = vmul.f32 %v2775, %v2602
      %v2777 = vand.u32 2147483647, %v2602
      %vm2778 = vcmp.lt.f32.partialorder %v2777, 0.0004427343
      %v2779 = vsel %vm2778, %v2776, %v2773
      %v2780 = vadd.f32 %v2604, 1.0
      %v2781 = vlog2.pop %v2780
      %v2782 = vmul.f32 %v2781, 0.6931472
      %v2783 = vmul.f32 -0.5, %v2604
      %v2784 = vadd.f32 %v2783, 1.0
      %v2785 = vmul.f32 %v2784, %v2604
      %v2786 = vand.u32 2147483647, %v2604
      %vm2787 = vcmp.lt.f32.partialorder %v2786, 0.0004427343
      %v2788 = vsel %vm2787, %v2785, %v2782
      %v2789 = vadd.f32 %v2606, 1.0
      %v2790 = vlog2.pop %v2789
      %v2791 = vmul.f32 %v2790, 0.6931472
      %v2792 = vmul.f32 -0.5, %v2606
      %v2793 = vadd.f32 %v2792, 1.0
      %v2794 = vmul.f32 %v2793, %v2606
      %v2795 = vand.u32 2147483647, %v2606
      %vm2796 = vcmp.lt.f32.partialorder %v2795, 0.0004427343
      %v2797 = vsel %vm2796, %v2794, %v2791
      %v2798 = vadd.f32 %v2608, 1.0
      %v2799 = vlog2.pop %v2798
      %v2800 = vmul.f32 %v2799, 0.6931472
      %v2801 = vmul.f32 -0.5, %v2608
      %v2802 = vadd.f32 %v2801, 1.0
      %v2803 = vmul.f32 %v2802, %v2608
      %v2804 = vand.u32 2147483647, %v2608
      %vm2805 = vcmp.lt.f32.partialorder %v2804, 0.0004427343
      %v2806 = vsel %vm2805, %v2803, %v2800
      %v2807 = vadd.f32 %v2610, 1.0
      %v2808 = vlog2.pop %v2807
      %v2809 = vmul.f32 %v2808, 0.6931472
      %v2810 = vmul.f32 -0.5, %v2610
      %v2811 = vadd.f32 %v2810, 1.0
      %v2812 = vmul.f32 %v2811, %v2610
      %v2813 = vand.u32 2147483647, %v2610
      %vm2814 = vcmp.lt.f32.partialorder %v2813, 0.0004427343
      %v2815 = vsel %vm2814, %v2812, %v2809
      %v2816 = vadd.f32 %v2612, 1.0
      %v2817 = vlog2.pop %v2816
      %v2818 = vmul.f32 %v2817, 0.6931472
      %v2819 = vmul.f32 -0.5, %v2612
      %v2820 = vadd.f32 %v2819, 1.0
      %v2821 = vmul.f32 %v2820, %v2612
      %v2822 = vand.u32 2147483647, %v2612
      %vm2823 = vcmp.lt.f32.partialorder %v2822, 0.0004427343
      %v2824 = vsel %vm2823, %v2821, %v2818
      %v2825 = vadd.f32 %v2614, 1.0
      %v2826 = vlog2.pop %v2825
      %v2827 = vmul.f32 %v2826, 0.6931472
      %v2828 = vmul.f32 -0.5, %v2614
      %v2829 = vadd.f32 %v2828, 1.0
      %v2830 = vmul.f32 %v2829, %v2614
      %v2831 = vand.u32 2147483647, %v2614
      %vm2832 = vcmp.lt.f32.partialorder %v2831, 0.0004427343
      %v2833 = vsel %vm2832, %v2830, %v2827
      %v2834 = vadd.f32 %v2616, 1.0
      %v2835 = vlog2.pop %v2834
      %v2836 = vmul.f32 %v2835, 0.6931472
      %v2837 = vmul.f32 -0.5, %v2616
      %v2838 = vadd.f32 %v2837, 1.0
      %v2839 = vmul.f32 %v2838, %v2616
      %v2840 = vand.u32 2147483647, %v2616
      %vm2841 = vcmp.lt.f32.partialorder %v2840, 0.0004427343
      %v2842 = vsel %vm2841, %v2839, %v2836
      %v2843 = vadd.f32 %v2618, 1.0
      %v2844 = vlog2.pop %v2843
      %v2845 = vmul.f32 %v2844, 0.6931472
      %v2846 = vmul.f32 -0.5, %v2618
      %v2847 = vadd.f32 %v2846, 1.0
      %v2848 = vmul.f32 %v2847, %v2618
      %v2849 = vand.u32 2147483647, %v2618
      %vm2850 = vcmp.lt.f32.partialorder %v2849, 0.0004427343
      %v2851 = vsel %vm2850, %v2848, %v2845
      %v2852 = vadd.f32 %v2620, 1.0
      %v2853 = vlog2.pop %v2852
      %v2854 = vmul.f32 %v2853, 0.6931472
      %v2855 = vmul.f32 -0.5, %v2620
      %v2856 = vadd.f32 %v2855, 1.0
      %v2857 = vmul.f32 %v2856, %v2620
      %v2858 = vand.u32 2147483647, %v2620
      %vm2859 = vcmp.lt.f32.partialorder %v2858, 0.0004427343
      %v2860 = vsel %vm2859, %v2857, %v2854
      %v2861 = vadd.f32 %v2622, 1.0
      %v2862 = vlog2.pop %v2861
      %v2863 = vmul.f32 %v2862, 0.6931472
      %v2864 = vmul.f32 -0.5, %v2622
      %v2865 = vadd.f32 %v2864, 1.0
      %v2866 = vmul.f32 %v2865, %v2622
      %v2867 = vand.u32 2147483647, %v2622
      %vm2868 = vcmp.lt.f32.partialorder %v2867, 0.0004427343
      %v2869 = vsel %vm2868, %v2866, %v2863
      %v2870 = vadd.f32 %v2624, 1.0
      %v2871 = vlog2.pop %v2870
      %v2872 = vmul.f32 %v2871, 0.6931472
      %v2873 = vmul.f32 -0.5, %v2624
      %v2874 = vadd.f32 %v2873, 1.0
      %v2875 = vmul.f32 %v2874, %v2624
      %v2876 = vand.u32 2147483647, %v2624
      %vm2877 = vcmp.lt.f32.partialorder %v2876, 0.0004427343
      %v2878 = vsel %vm2877, %v2875, %v2872
      %v2879 = vadd.f32 %v2626, 1.0
      %v2880 = vlog2.pop %v2879
      %v2881 = vmul.f32 %v2880, 0.6931472
      %v2882 = vmul.f32 -0.5, %v2626
      %v2883 = vadd.f32 %v2882, 1.0
      %v2884 = vmul.f32 %v2883, %v2626
      %v2885 = vand.u32 2147483647, %v2626
      %vm2886 = vcmp.lt.f32.partialorder %v2885, 0.0004427343
      %v2887 = vsel %vm2886, %v2884, %v2881
      %v2888 = vadd.f32 %v2628, 1.0
      %v2889 = vlog2.pop %v2888
      %v2890 = vmul.f32 %v2889, 0.6931472
      %v2891 = vmul.f32 -0.5, %v2628
      %v2892 = vadd.f32 %v2891, 1.0
      %v2893 = vmul.f32 %v2892, %v2628
      %v2894 = vand.u32 2147483647, %v2628
      %vm2895 = vcmp.lt.f32.partialorder %v2894, 0.0004427343
      %v2896 = vsel %vm2895, %v2893, %v2890
      %v2897 = vadd.f32 %v2630, 1.0
      %v2898 = vlog2.pop %v2897
      %v2899 = vmul.f32 %v2898, 0.6931472
      %v2900 = vmul.f32 -0.5, %v2630
      %v2901 = vadd.f32 %v2900, 1.0
      %v2902 = vmul.f32 %v2901, %v2630
      %v2903 = vand.u32 2147483647, %v2630
      %vm2904 = vcmp.lt.f32.partialorder %v2903, 0.0004427343
      %v2905 = vsel %vm2904, %v2902, %v2899
      %v2906 = vadd.f32 %v2632, 1.0
      %v2907 = vlog2.pop %v2906
      %v2908 = vmul.f32 %v2907, 0.6931472
      %v2909 = vmul.f32 -0.5, %v2632
      %v2910 = vadd.f32 %v2909, 1.0
      %v2911 = vmul.f32 %v2910, %v2632
      %v2912 = vand.u32 2147483647, %v2632
      %vm2913 = vcmp.lt.f32.partialorder %v2912, 0.0004427343
      %v2914 = vsel %vm2913, %v2911, %v2908
      %v2915 = vadd.f32 %v2634, 1.0
      %v2916 = vlog2.pop %v2915
      %v2917 = vmul.f32 %v2916, 0.6931472
      %v2918 = vmul.f32 -0.5, %v2634
      %v2919 = vadd.f32 %v2918, 1.0
      %v2920 = vmul.f32 %v2919, %v2634
      %v2921 = vand.u32 2147483647, %v2634
      %vm2922 = vcmp.lt.f32.partialorder %v2921, 0.0004427343
      %v2923 = vsel %vm2922, %v2920, %v2917
      %v2924 = vadd.f32 %v2636, 1.0
      %v2925 = vlog2.pop %v2924
      %v2926 = vmul.f32 %v2925, 0.6931472
      %v2927 = vmul.f32 -0.5, %v2636
      %v2928 = vadd.f32 %v2927, 1.0
      %v2929 = vmul.f32 %v2928, %v2636
      %v2930 = vand.u32 2147483647, %v2636
      %vm2931 = vcmp.lt.f32.partialorder %v2930, 0.0004427343
      %v2932 = vsel %vm2931, %v2929, %v2926
      %v2933 = vadd.f32 %v2638, 1.0
      %v2934 = vlog2.pop %v2933
      %v2935 = vmul.f32 %v2934, 0.6931472
      %v2936 = vmul.f32 -0.5, %v2638
      %v2937 = vadd.f32 %v2936, 1.0
      %v2938 = vmul.f32 %v2937, %v2638
      %v2939 = vand.u32 2147483647, %v2638
      %vm2940 = vcmp.lt.f32.partialorder %v2939, 0.0004427343
      %v2941 = vsel %vm2940, %v2938, %v2935
      %v2942 = vadd.f32 %v2640, 1.0
      %v2943 = vlog2.pop %v2942
      %v2944 = vmul.f32 %v2943, 0.6931472
      %v2945 = vmul.f32 -0.5, %v2640
      %v2946 = vadd.f32 %v2945, 1.0
      %v2947 = vmul.f32 %v2946, %v2640
      %v2948 = vand.u32 2147483647, %v2640
      %vm2949 = vcmp.lt.f32.partialorder %v2948, 0.0004427343
      %v2950 = vsel %vm2949, %v2947, %v2944
      %v2951 = vadd.f32 %v2642, 1.0
      %v2952 = vlog2.pop %v2951
      %v2953 = vmul.f32 %v2952, 0.6931472
      %v2954 = vmul.f32 -0.5, %v2642
      %v2955 = vadd.f32 %v2954, 1.0
      %v2956 = vmul.f32 %v2955, %v2642
      %v2957 = vand.u32 2147483647, %v2642
      %vm2958 = vcmp.lt.f32.partialorder %v2957, 0.0004427343
      %v2959 = vsel %vm2958, %v2956, %v2953
      %v2960 = vadd.f32 %v2644, 1.0
      %v2961 = vlog2.pop %v2960
      %v2962 = vmul.f32 %v2961, 0.6931472
      %v2963 = vmul.f32 -0.5, %v2644
      %v2964 = vadd.f32 %v2963, 1.0
      %v2965 = vmul.f32 %v2964, %v2644
      %v2966 = vand.u32 2147483647, %v2644
      %vm2967 = vcmp.lt.f32.partialorder %v2966, 0.0004427343
      %v2968 = vsel %vm2967, %v2965, %v2962
      %v2969 = vadd.f32 %v2646, 1.0
      %v2970 = vlog2.pop %v2969
      %v2971 = vmul.f32 %v2970, 0.6931472
      %v2972 = vmul.f32 -0.5, %v2646
      %v2973 = vadd.f32 %v2972, 1.0
      %v2974 = vmul.f32 %v2973, %v2646
      %v2975 = vand.u32 2147483647, %v2646
      %vm2976 = vcmp.lt.f32.partialorder %v2975, 0.0004427343
      %v2977 = vsel %vm2976, %v2974, %v2971
      %v2978 = vadd.f32 %v2648, 1.0
      %v2979 = vlog2.pop %v2978
      %v2980 = vmul.f32 %v2979, 0.6931472
      %v2981 = vmul.f32 -0.5, %v2648
      %v2982 = vadd.f32 %v2981, 1.0
      %v2983 = vmul.f32 %v2982, %v2648
      %v2984 = vand.u32 2147483647, %v2648
      %vm2985 = vcmp.lt.f32.partialorder %v2984, 0.0004427343
      %v2986 = vsel %vm2985, %v2983, %v2980
      %v2987 = vadd.f32 %v2650, 1.0
      %v2988 = vlog2.pop %v2987
      %v2989 = vmul.f32 %v2988, 0.6931472
      %v2990 = vmul.f32 -0.5, %v2650
      %v2991 = vadd.f32 %v2990, 1.0
      %v2992 = vmul.f32 %v2991, %v2650
      %v2993 = vand.u32 2147483647, %v2650
      %vm2994 = vcmp.lt.f32.partialorder %v2993, 0.0004427343
      %v2995 = vsel %vm2994, %v2992, %v2989
      %v2996 = vadd.f32 %v2652, 1.0
      %v2997 = vlog2.pop %v2996
      %v2998 = vmul.f32 %v2997, 0.6931472
      %v2999 = vmul.f32 -0.5, %v2652
      %v3000 = vadd.f32 %v2999, 1.0
      %v3001 = vmul.f32 %v3000, %v2652
      %v3002 = vand.u32 2147483647, %v2652
      %vm3003 = vcmp.lt.f32.partialorder %v3002, 0.0004427343
      %v3004 = vsel %vm3003, %v3001, %v2998
      %v3005 = vadd.f32 %v2654, 1.0
      %v3006 = vlog2.pop %v3005
      %v3007 = vmul.f32 %v3006, 0.6931472
      %v3008 = vmul.f32 -0.5, %v2654
      %v3009 = vadd.f32 %v3008, 1.0
      %v3010 = vmul.f32 %v3009, %v2654
      %v3011 = vand.u32 2147483647, %v2654
      %vm3012 = vcmp.lt.f32.partialorder %v3011, 0.0004427343
      %v3013 = vsel %vm3012, %v3010, %v3007
      %v3014 = vadd.f32 %v2656, 1.0
      %v3015 = vlog2.pop %v3014
      %v3016 = vmul.f32 %v3015, 0.6931472
      %v3017 = vmul.f32 -0.5, %v2656
      %v3018 = vadd.f32 %v3017, 1.0
      %v3019 = vmul.f32 %v3018, %v2656
      %v3020 = vand.u32 2147483647, %v2656
      %vm3021 = vcmp.lt.f32.partialorder %v3020, 0.0004427343
      %v3022 = vsel %vm3021, %v3019, %v3016
      %v3023 = vadd.f32 %v2658, 1.0
      %v3024 = vlog2.pop %v3023
      %v3025 = vmul.f32 %v3024, 0.6931472
      %v3026 = vmul.f32 -0.5, %v2658
      %v3027 = vadd.f32 %v3026, 1.0
      %v3028 = vmul.f32 %v3027, %v2658
      %v3029 = vand.u32 2147483647, %v2658
      %vm3030 = vcmp.lt.f32.partialorder %v3029, 0.0004427343
      %v3031 = vsel %vm3030, %v3028, %v3025
      %v3032 = vadd.f32 %v2660, 1.0
      %v3033 = vlog2.pop %v3032
      %v3034 = vmul.f32 %v3033, 0.6931472
      %v3035 = vmul.f32 -0.5, %v2660
      %v3036 = vadd.f32 %v3035, 1.0
      %v3037 = vmul.f32 %v3036, %v2660
      %v3038 = vand.u32 2147483647, %v2660
      %vm3039 = vcmp.lt.f32.partialorder %v3038, 0.0004427343
      %v3040 = vsel %vm3039, %v3037, %v3034
      %v3041 = vadd.f32 %v2662, 1.0
      %v3042 = vlog2.pop %v3041
      %v3043 = vmul.f32 %v3042, 0.6931472
      %v3044 = vmul.f32 -0.5, %v2662
      %v3045 = vadd.f32 %v3044, 1.0
      %v3046 = vmul.f32 %v3045, %v2662
      %v3047 = vand.u32 2147483647, %v2662
      %vm3048 = vcmp.lt.f32.partialorder %v3047, 0.0004427343
      %v3049 = vsel %vm3048, %v3046, %v3043
      %v3050 = vadd.f32 %v2664, 1.0
      %v3051 = vlog2.pop %v3050
      %v3052 = vmul.f32 %v3051, 0.6931472
      %v3053 = vmul.f32 -0.5, %v2664
      %v3054 = vadd.f32 %v3053, 1.0
      %v3055 = vmul.f32 %v3054, %v2664
      %v3056 = vand.u32 2147483647, %v2664
      %vm3057 = vcmp.lt.f32.partialorder %v3056, 0.0004427343
      %v3058 = vsel %vm3057, %v3055, %v3052
      %v3059 = vadd.f32 %v2666, 1.0
      %v3060 = vlog2.pop %v3059
      %v3061 = vmul.f32 %v3060, 0.6931472
      %v3062 = vmul.f32 -0.5, %v2666
      %v3063 = vadd.f32 %v3062, 1.0
      %v3064 = vmul.f32 %v3063, %v2666
      %v3065 = vand.u32 2147483647, %v2666
      %vm3066 = vcmp.lt.f32.partialorder %v3065, 0.0004427343
      %v3067 = vsel %vm3066, %v3064, %v3061
      %v3068 = vadd.f32 %v2668, 1.0
      %v3069 = vlog2.pop %v3068
      %v3070 = vmul.f32 %v3069, 0.6931472
      %v3071 = vmul.f32 -0.5, %v2668
      %v3072 = vadd.f32 %v3071, 1.0
      %v3073 = vmul.f32 %v3072, %v2668
      %v3074 = vand.u32 2147483647, %v2668
      %vm3075 = vcmp.lt.f32.partialorder %v3074, 0.0004427343
      %v3076 = vsel %vm3075, %v3073, %v3070
      %v3077 = vadd.f32 %v2670, 1.0
      %v3078 = vlog2.pop %v3077
      %v3079 = vmul.f32 %v3078, 0.6931472
      %v3080 = vmul.f32 -0.5, %v2670
      %v3081 = vadd.f32 %v3080, 1.0
      %v3082 = vmul.f32 %v3081, %v2670
      %v3083 = vand.u32 2147483647, %v2670
      %vm3084 = vcmp.lt.f32.partialorder %v3083, 0.0004427343
      %v3085 = vsel %vm3084, %v3082, %v3079
      %v3086 = vadd.f32 %v2672, 1.0
      %v3087 = vlog2.pop %v3086
      %v3088 = vmul.f32 %v3087, 0.6931472
      %v3089 = vmul.f32 -0.5, %v2672
      %v3090 = vadd.f32 %v3089, 1.0
      %v3091 = vmul.f32 %v3090, %v2672
      %v3092 = vand.u32 2147483647, %v2672
      %vm3093 = vcmp.lt.f32.partialorder %v3092, 0.0004427343
      %v3094 = vsel %vm3093, %v3091, %v3088
      %v3095 = vadd.f32 %v2674, 1.0
      %v3096 = vlog2.pop %v3095
      %v3097 = vmul.f32 %v3096, 0.6931472
      %v3098 = vmul.f32 -0.5, %v2674
      %v3099 = vadd.f32 %v3098, 1.0
      %v3100 = vmul.f32 %v3099, %v2674
      %v3101 = vand.u32 2147483647, %v2674
      %vm3102 = vcmp.lt.f32.partialorder %v3101, 0.0004427343
      %v3103 = vsel %vm3102, %v3100, %v3097
      %v3104 = vadd.f32 %v2676, 1.0
      %v3105 = vlog2.pop %v3104
      %v3106 = vmul.f32 %v3105, 0.6931472
      %v3107 = vmul.f32 -0.5, %v2676
      %v3108 = vadd.f32 %v3107, 1.0
      %v3109 = vmul.f32 %v3108, %v2676
      %v3110 = vand.u32 2147483647, %v2676
      %vm3111 = vcmp.lt.f32.partialorder %v3110, 0.0004427343
      %v3112 = vsel %vm3111, %v3109, %v3106
      %v3113 = vadd.f32 %v2678, 1.0
      %v3114 = vlog2.pop %v3113
      %v3115 = vmul.f32 %v3114, 0.6931472
      %v3116 = vmul.f32 -0.5, %v2678
      %v3117 = vadd.f32 %v3116, 1.0
      %v3118 = vmul.f32 %v3117, %v2678
      %v3119 = vand.u32 2147483647, %v2678
      %vm3120 = vcmp.lt.f32.partialorder %v3119, 0.0004427343
      %v3121 = vsel %vm3120, %v3118, %v3115
      %v3122 = vadd.f32 %v2680, 1.0
      %v3123 = vlog2.pop %v3122
      %v3124 = vmul.f32 %v3123, 0.6931472
      %v3125 = vmul.f32 -0.5, %v2680
      %v3126 = vadd.f32 %v3125, 1.0
      %v3127 = vmul.f32 %v3126, %v2680
      %v3128 = vand.u32 2147483647, %v2680
      %vm3129 = vcmp.lt.f32.partialorder %v3128, 0.0004427343
      %v3130 = vsel %vm3129, %v3127, %v3124
      %v3131 = vadd.f32 %v2682, 1.0
      %v3132 = vlog2.pop %v3131
      %v3133 = vmul.f32 %v3132, 0.6931472
      %v3134 = vmul.f32 -0.5, %v2682
      %v3135 = vadd.f32 %v3134, 1.0
      %v3136 = vmul.f32 %v3135, %v2682
      %v3137 = vand.u32 2147483647, %v2682
      %vm3138 = vcmp.lt.f32.partialorder %v3137, 0.0004427343
      %v3139 = vsel %vm3138, %v3136, %v3133
      %v3140 = vadd.f32 %v2684, 1.0
      %v3141 = vlog2.pop %v3140
      %v3142 = vmul.f32 %v3141, 0.6931472
      %v3143 = vmul.f32 -0.5, %v2684
      %v3144 = vadd.f32 %v3143, 1.0
      %v3145 = vmul.f32 %v3144, %v2684
      %v3146 = vand.u32 2147483647, %v2684
      %vm3147 = vcmp.lt.f32.partialorder %v3146, 0.0004427343
      %v3148 = vsel %vm3147, %v3145, %v3142
      %v3149 = vadd.f32 %v2686, 1.0
      %v3150 = vlog2.pop %v3149
      %v3151 = vmul.f32 %v3150, 0.6931472
      %v3152 = vmul.f32 -0.5, %v2686
      %v3153 = vadd.f32 %v3152, 1.0
      %v3154 = vmul.f32 %v3153, %v2686
      %v3155 = vand.u32 2147483647, %v2686
      %vm3156 = vcmp.lt.f32.partialorder %v3155, 0.0004427343
      %v3157 = vsel %vm3156, %v3154, %v3151
      %v3158 = vadd.f32 %v2688, 1.0
      %v3159 = vlog2.pop %v3158
      %v3160 = vmul.f32 %v3159, 0.6931472
      %v3161 = vmul.f32 -0.5, %v2688
      %v3162 = vadd.f32 %v3161, 1.0
      %v3163 = vmul.f32 %v3162, %v2688
      %v3164 = vand.u32 2147483647, %v2688
      %vm3165 = vcmp.lt.f32.partialorder %v3164, 0.0004427343
      %v3166 = vsel %vm3165, %v3163, %v3160
      %v3167 = vadd.f32 %v2690, 1.0
      %v3168 = vlog2.pop %v3167
      %v3169 = vmul.f32 %v3168, 0.6931472
      %v3170 = vmul.f32 -0.5, %v2690
      %v3171 = vadd.f32 %v3170, 1.0
      %v3172 = vmul.f32 %v3171, %v2690
      %v3173 = vand.u32 2147483647, %v2690
      %vm3174 = vcmp.lt.f32.partialorder %v3173, 0.0004427343
      %v3175 = vsel %vm3174, %v3172, %v3169
      %v3176 = vadd.f32 %v2692, 1.0
      %v3177 = vlog2.pop %v3176
      %v3178 = vmul.f32 %v3177, 0.6931472
      %v3179 = vmul.f32 -0.5, %v2692
      %v3180 = vadd.f32 %v3179, 1.0
      %v3181 = vmul.f32 %v3180, %v2692
      %v3182 = vand.u32 2147483647, %v2692
      %vm3183 = vcmp.lt.f32.partialorder %v3182, 0.0004427343
      %v3184 = vsel %vm3183, %v3181, %v3178
      %v3185 = vadd.f32 %v2694, 1.0
      %v3186 = vlog2.pop %v3185
      %v3187 = vmul.f32 %v3186, 0.6931472
      %v3188 = vmul.f32 -0.5, %v2694
      %v3189 = vadd.f32 %v3188, 1.0
      %v3190 = vmul.f32 %v3189, %v2694
      %v3191 = vand.u32 2147483647, %v2694
      %vm3192 = vcmp.lt.f32.partialorder %v3191, 0.0004427343
      %v3193 = vsel %vm3192, %v3190, %v3187
      %v3194 = vadd.f32 %v2696, 1.0
      %v3195 = vlog2.pop %v3194
      %v3196 = vmul.f32 %v3195, 0.6931472
      %v3197 = vmul.f32 -0.5, %v2696
      %v3198 = vadd.f32 %v3197, 1.0
      %v3199 = vmul.f32 %v3198, %v2696
      %v3200 = vand.u32 2147483647, %v2696
      %vm3201 = vcmp.lt.f32.partialorder %v3200, 0.0004427343
      %v3202 = vsel %vm3201, %v3199, %v3196
      %v3203 = vadd.f32 %v2698, 1.0
      %v3204 = vlog2.pop %v3203
      %v3205 = vmul.f32 %v3204, 0.6931472
      %v3206 = vmul.f32 -0.5, %v2698
      %v3207 = vadd.f32 %v3206, 1.0
      %v3208 = vmul.f32 %v3207, %v2698
      %v3209 = vand.u32 2147483647, %v2698
      %vm3210 = vcmp.lt.f32.partialorder %v3209, 0.0004427343
      %v3211 = vsel %vm3210, %v3208, %v3205
      %v3212 = vadd.f32 %v2700, 1.0
      %v3213 = vlog2.pop %v3212
      %v3214 = vmul.f32 %v3213, 0.6931472
      %v3215 = vmul.f32 -0.5, %v2700
      %v3216 = vadd.f32 %v3215, 1.0
      %v3217 = vmul.f32 %v3216, %v2700
      %v3218 = vand.u32 2147483647, %v2700
      %vm3219 = vcmp.lt.f32.partialorder %v3218, 0.0004427343
      %v3220 = vsel %vm3219, %v3217, %v3214
      %v3221 = vadd.f32 %v2702, 1.0
      %v3222 = vlog2.pop %v3221
      %v3223 = vmul.f32 %v3222, 0.6931472
      %v3224 = vmul.f32 -0.5, %v2702
      %v3225 = vadd.f32 %v3224, 1.0
      %v3226 = vmul.f32 %v3225, %v2702
      %v3227 = vand.u32 2147483647, %v2702
      %vm3228 = vcmp.lt.f32.partialorder %v3227, 0.0004427343
      %v3229 = vsel %vm3228, %v3226, %v3223
      %v3230 = vadd.f32 %v2704, 1.0
      %v3231 = vlog2.pop %v3230
      %v3232 = vmul.f32 %v3231, 0.6931472
      %v3233 = vmul.f32 -0.5, %v2704
      %v3234 = vadd.f32 %v3233, 1.0
      %v3235 = vmul.f32 %v3234, %v2704
      %v3236 = vand.u32 2147483647, %v2704
      %vm3237 = vcmp.lt.f32.partialorder %v3236, 0.0004427343
      %v3238 = vsel %vm3237, %v3235, %v3232
      %v3239 = vadd.f32 %v2706, 1.0
      %v3240 = vlog2.pop %v3239
      %v3241 = vmul.f32 %v3240, 0.6931472
      %v3242 = vmul.f32 -0.5, %v2706
      %v3243 = vadd.f32 %v3242, 1.0
      %v3244 = vmul.f32 %v3243, %v2706
      %v3245 = vand.u32 2147483647, %v2706
      %vm3246 = vcmp.lt.f32.partialorder %v3245, 0.0004427343
      %v3247 = vsel %vm3246, %v3244, %v3241
      %v3248 = vadd.f32 %v2708, 1.0
      %v3249 = vlog2.pop %v3248
      %v3250 = vmul.f32 %v3249, 0.6931472
      %v3251 = vmul.f32 -0.5, %v2708
      %v3252 = vadd.f32 %v3251, 1.0
      %v3253 = vmul.f32 %v3252, %v2708
      %v3254 = vand.u32 2147483647, %v2708
      %vm3255 = vcmp.lt.f32.partialorder %v3254, 0.0004427343
      %v3256 = vsel %vm3255, %v3253, %v3250
      %v3257 = vadd.f32 %v2710, 1.0
      %v3258 = vlog2.pop %v3257
      %v3259 = vmul.f32 %v3258, 0.6931472
      %v3260 = vmul.f32 -0.5, %v2710
      %v3261 = vadd.f32 %v3260, 1.0
      %v3262 = vmul.f32 %v3261, %v2710
      %v3263 = vand.u32 2147483647, %v2710
      %vm3264 = vcmp.lt.f32.partialorder %v3263, 0.0004427343
      %v3265 = vsel %vm3264, %v3262, %v3259
      %v3266 = vadd.f32 %v2712, 1.0
      %v3267 = vlog2.pop %v3266
      %v3268 = vmul.f32 %v3267, 0.6931472
      %v3269 = vmul.f32 -0.5, %v2712
      %v3270 = vadd.f32 %v3269, 1.0
      %v3271 = vmul.f32 %v3270, %v2712
      %v3272 = vand.u32 2147483647, %v2712
      %vm3273 = vcmp.lt.f32.partialorder %v3272, 0.0004427343
      %v3274 = vsel %vm3273, %v3271, %v3268
      %v3275 = vadd.f32 %v2714, 1.0
      %v3276 = vlog2.pop %v3275
      %v3277 = vmul.f32 %v3276, 0.6931472
      %v3278 = vmul.f32 -0.5, %v2714
      %v3279 = vadd.f32 %v3278, 1.0
      %v3280 = vmul.f32 %v3279, %v2714
      %v3281 = vand.u32 2147483647, %v2714
      %vm3282 = vcmp.lt.f32.partialorder %v3281, 0.0004427343
      %v3283 = vsel %vm3282, %v3280, %v3277
      %v3284 = vadd.f32 %v2716, 1.0
      %v3285 = vlog2.pop %v3284
      %v3286 = vmul.f32 %v3285, 0.6931472
      %v3287 = vmul.f32 -0.5, %v2716
      %v3288 = vadd.f32 %v3287, 1.0
      %v3289 = vmul.f32 %v3288, %v2716
      %v3290 = vand.u32 2147483647, %v2716
      %vm3291 = vcmp.lt.f32.partialorder %v3290, 0.0004427343
      %v3292 = vsel %vm3291, %v3289, %v3286
      %v3293 = vmul.f32 %v2725, 0.01
      %v3294 = vmul.f32 %v2734, 0.01
      %v3295 = vmul.f32 %v2743, 0.01
      %v3296 = vmul.f32 %v2752, 0.01
      %v3297 = vmul.f32 %v2761, 0.01
      %v3298 = vmul.f32 %v2770, 0.01
      %v3299 = vmul.f32 %v2779, 0.01
      %v3300 = vmul.f32 %v2788, 0.01
      %v3301 = vmul.f32 %v2797, 0.01
      %v3302 = vmul.f32 %v2806, 0.01
      %v3303 = vmul.f32 %v2815, 0.01
      %v3304 = vmul.f32 %v2824, 0.01
      %v3305 = vmul.f32 %v2833, 0.01
      %v3306 = vmul.f32 %v2842, 0.01
      %v3307 = vmul.f32 %v2851, 0.01
      %v3308 = vmul.f32 %v2860, 0.01
      %v3309 = vmul.f32 %v2869, 0.01
      %v3310 = vmul.f32 %v2878, 0.01
      %v3311 = vmul.f32 %v2887, 0.01
      %v3312 = vmul.f32 %v2896, 0.01
      %v3313 = vmul.f32 %v2905, 0.01
      %v3314 = vmul.f32 %v2914, 0.01
      %v3315 = vmul.f32 %v2923, 0.01
      %v3316 = vmul.f32 %v2932, 0.01
      %v3317 = vmul.f32 %v2941, 0.01
      %v3318 = vmul.f32 %v2950, 0.01
      %v3319 = vmul.f32 %v2959, 0.01
      %v3320 = vmul.f32 %v2968, 0.01
      %v3321 = vmul.f32 %v2977, 0.01
      %v3322 = vmul.f32 %v2986, 0.01
      %v3323 = vmul.f32 %v2995, 0.01
      %v3324 = vmul.f32 %v3004, 0.01
      %v3325 = vmul.f32 %v3013, 0.01
      %v3326 = vmul.f32 %v3022, 0.01
      %v3327 = vmul.f32 %v3031, 0.01
      %v3328 = vmul.f32 %v3040, 0.01
      %v3329 = vmul.f32 %v3049, 0.01
      %v3330 = vmul.f32 %v3058, 0.01
      %v3331 = vmul.f32 %v3067, 0.01
      %v3332 = vmul.f32 %v3076, 0.01
      %v3333 = vmul.f32 %v3085, 0.01
      %v3334 = vmul.f32 %v3094, 0.01
      %v3335 = vmul.f32 %v3103, 0.01
      %v3336 = vmul.f32 %v3112, 0.01
      %v3337 = vmul.f32 %v3121, 0.01
      %v3338 = vmul.f32 %v3130, 0.01
      %v3339 = vmul.f32 %v3139, 0.01
      %v3340 = vmul.f32 %v3148, 0.01
      %v3341 = vmul.f32 %v3157, 0.01
      %v3342 = vmul.f32 %v3166, 0.01
      %v3343 = vmul.f32 %v3175, 0.01
      %v3344 = vmul.f32 %v3184, 0.01
      %v3345 = vmul.f32 %v3193, 0.01
      %v3346 = vmul.f32 %v3202, 0.01
      %v3347 = vmul.f32 %v3211, 0.01
      %v3348 = vmul.f32 %v3220, 0.01
      %v3349 = vmul.f32 %v3229, 0.01
      %v3350 = vmul.f32 %v3238, 0.01
      %v3351 = vmul.f32 %v3247, 0.01
      %v3352 = vmul.f32 %v3256, 0.01
      %v3353 = vmul.f32 %v3265, 0.01
      %v3354 = vmul.f32 %v3274, 0.01
      %v3355 = vmul.f32 %v3283, 0.01
      %v3356 = vmul.f32 %v3292, 0.01
      %v3357 = vadd.f32 %v2461, %v3293
      %v3358 = vadd.f32 %v2462, %v3294
      %v3359 = vadd.f32 %v2463, %v3295
      %v3360 = vadd.f32 %v2464, %v3296
      %v3361 = vadd.f32 %v2465, %v3297
      %v3362 = vadd.f32 %v2466, %v3298
      %v3363 = vadd.f32 %v2467, %v3299
      %v3364 = vadd.f32 %v2468, %v3300
      %v3365 = vadd.f32 %v2469, %v3301
      %v3366 = vadd.f32 %v2470, %v3302
      %v3367 = vadd.f32 %v2471, %v3303
      %v3368 = vadd.f32 %v2472, %v3304
      %v3369 = vadd.f32 %v2473, %v3305
      %v3370 = vadd.f32 %v2474, %v3306
      %v3371 = vadd.f32 %v2475, %v3307
      %v3372 = vadd.f32 %v2476, %v3308
      %v3373 = vadd.f32 %v2477, %v3309
      %v3374 = vadd.f32 %v2478, %v3310
      %v3375 = vadd.f32 %v2479, %v3311
      %v3376 = vadd.f32 %v2480, %v3312
      %v3377 = vadd.f32 %v2481, %v3313
      %v3378 = vadd.f32 %v2482, %v3314
      %v3379 = vadd.f32 %v2483, %v3315
      %v3380 = vadd.f32 %v2484, %v3316
      %v3381 = vadd.f32 %v2485, %v3317
      %v3382 = vadd.f32 %v2486, %v3318
      %v3383 = vadd.f32 %v2487, %v3319
      %v3384 = vadd.f32 %v2488, %v3320
      %v3385 = vadd.f32 %v2489, %v3321
      %v3386 = vadd.f32 %v2490, %v3322
      %v3387 = vadd.f32 %v2491, %v3323
      %v3388 = vadd.f32 %v2492, %v3324
      %v3389 = vadd.f32 %v2493, %v3325
      %v3390 = vadd.f32 %v2494, %v3326
      %v3391 = vadd.f32 %v2495, %v3327
      %v3392 = vadd.f32 %v2496, %v3328
      %v3393 = vadd.f32 %v2497, %v3329
      %v3394 = vadd.f32 %v2498, %v3330
      %v3395 = vadd.f32 %v2499, %v3331
      %v3396 = vadd.f32 %v2500, %v3332
      %v3397 = vadd.f32 %v2501, %v3333
      %v3398 = vadd.f32 %v2502, %v3334
      %v3399 = vadd.f32 %v2503, %v3335
      %v3400 = vadd.f32 %v2504, %v3336
      %v3401 = vadd.f32 %v2505, %v3337
      %v3402 = vadd.f32 %v2506, %v3338
      %v3403 = vadd.f32 %v2507, %v3339
      %v3404 = vadd.f32 %v2508, %v3340
      %v3405 = vadd.f32 %v2509, %v3341
      %v3406 = vadd.f32 %v2510, %v3342
      %v3407 = vadd.f32 %v2511, %v3343
      %v3408 = vadd.f32 %v2512, %v3344
      %v3409 = vadd.f32 %v2513, %v3345
      %v3410 = vadd.f32 %v2514, %v3346
      %v3411 = vadd.f32 %v2515, %v3347
      %v3412 = vadd.f32 %v2516, %v3348
      %v3413 = vadd.f32 %v2517, %v3349
      %v3414 = vadd.f32 %v2518, %v3350
      %v3415 = vadd.f32 %v2519, %v3351
      %v3416 = vadd.f32 %v2520, %v3352
      %v3417 = vadd.f32 %v2521, %v3353
      %v3418 = vadd.f32 %v2522, %v3354
      %v3419 = vadd.f32 %v2523, %v3355
      %v3420 = vadd.f32 %v2524, %v3356
      %v3421 = vpack.c.bf16 %v3358, %v3357
      %v3422 = vpack.c.bf16 %v3360, %v3359
      %v3423 = vpack.c.bf16 %v3362, %v3361
      %v3424 = vpack.c.bf16 %v3364, %v3363
      %v3425 = vpack.c.bf16 %v3366, %v3365
      %v3426 = vpack.c.bf16 %v3368, %v3367
      %v3427 = vpack.c.bf16 %v3370, %v3369
      %v3428 = vpack.c.bf16 %v3372, %v3371
      %v3429 = vpack.c.bf16 %v3374, %v3373
      %v3430 = vpack.c.bf16 %v3376, %v3375
      %v3431 = vpack.c.bf16 %v3378, %v3377
      %v3432 = vpack.c.bf16 %v3380, %v3379
      %v3433 = vpack.c.bf16 %v3382, %v3381
      %v3434 = vpack.c.bf16 %v3384, %v3383
      %v3435 = vpack.c.bf16 %v3386, %v3385
      %v3436 = vpack.c.bf16 %v3388, %v3387
      %v3437 = vpack.c.bf16 %v3390, %v3389
      %v3438 = vpack.c.bf16 %v3392, %v3391
      %v3439 = vpack.c.bf16 %v3394, %v3393
      %v3440 = vpack.c.bf16 %v3396, %v3395
      %v3441 = vpack.c.bf16 %v3398, %v3397
      %v3442 = vpack.c.bf16 %v3400, %v3399
      %v3443 = vpack.c.bf16 %v3402, %v3401
      %v3444 = vpack.c.bf16 %v3404, %v3403
      %v3445 = vpack.c.bf16 %v3406, %v3405
      %v3446 = vpack.c.bf16 %v3408, %v3407
      %v3447 = vpack.c.bf16 %v3410, %v3409
      %v3448 = vpack.c.bf16 %v3412, %v3411
      %v3449 = vpack.c.bf16 %v3414, %v3413
      %v3450 = vpack.c.bf16 %v3416, %v3415
      %v3451 = vpack.c.bf16 %v3418, %v3417
      %v3452 = vpack.c.bf16 %v3420, %v3419
      %v3453 = vld [vmem:[%s5] sm:$0xf]
      %v3454 = vld [vmem:[%s5 + $0x4] sm:$0xf]
      %v3455 = vld [vmem:[%s5 + $0x8] sm:$0xf]
      %v3456 = vld [vmem:[%s5 + $0xc] sm:$0xf]
      %v3461 = vunpack.c.l.b16 %v3453
      %v3462 = vunpack.c.l.b16 %v3454
      %v3463 = vunpack.c.l.b16 %v3455
      %v3464 = vunpack.c.l.b16 %v3456
      %v3465 = vpack.c.b16 %v3462, %v3461
      %v3466 = vpack.c.b16 %v3464, %v3463
      %3533 = vrot.lane.b32.xlu0 %v684, 64
      %v3534 = vpop.permute.xlu0 %3533
      %3535 = vrot.lane.b32.xlu0 %v686, 64
      %v3536 = vpop.permute.xlu0 %3535
      %3537 = vrot.lane.b32.xlu0 %v689, 64
      %v3538 = vpop.permute.xlu0 %3537
      %3539 = vrot.lane.b32.xlu0 %v691, 64
      %v3540 = vpop.permute.xlu0 %3539
      %3541 = vrot.lane.b32.xlu0 %v694, 64
      %v3542 = vpop.permute.xlu0 %3541
      %3543 = vrot.lane.b32.xlu0 %v696, 64
      %v3544 = vpop.permute.xlu0 %3543
      %3545 = vrot.lane.b32.xlu0 %v699, 64
      %v3546 = vpop.permute.xlu0 %3545
      %3547 = vrot.lane.b32.xlu0 %v701, 64
      %v3548 = vpop.permute.xlu0 %3547
      %3549 = vrot.lane.b32.xlu0 %v704, 64
      %v3550 = vpop.permute.xlu0 %3549
      %3551 = vrot.lane.b32.xlu0 %v706, 64
      %v3552 = vpop.permute.xlu0 %3551
      %3553 = vrot.lane.b32.xlu0 %v709, 64
      %v3554 = vpop.permute.xlu0 %3553
      %3555 = vrot.lane.b32.xlu0 %v711, 64
      %v3556 = vpop.permute.xlu0 %3555
      %3557 = vrot.lane.b32.xlu0 %v714, 64
      %v3558 = vpop.permute.xlu0 %3557
      %3559 = vrot.lane.b32.xlu0 %v716, 64
      %v3560 = vpop.permute.xlu0 %3559
      %3561 = vrot.lane.b32.xlu0 %v719, 64
      %v3562 = vpop.permute.xlu0 %3561
      %3563 = vrot.lane.b32.xlu0 %v721, 64
      %v3564 = vpop.permute.xlu0 %3563
      %3565 = vrot.lane.b32.xlu0 %v724, 64
      %v3566 = vpop.permute.xlu0 %3565
      %3567 = vrot.lane.b32.xlu0 %v726, 64
      %v3568 = vpop.permute.xlu0 %3567
      %3569 = vrot.lane.b32.xlu0 %v729, 64
      %v3570 = vpop.permute.xlu0 %3569
      %3571 = vrot.lane.b32.xlu0 %v731, 64
      %v3572 = vpop.permute.xlu0 %3571
      %3573 = vrot.lane.b32.xlu0 %v734, 64
      %v3574 = vpop.permute.xlu0 %3573
      %3575 = vrot.lane.b32.xlu0 %v736, 64
      %v3576 = vpop.permute.xlu0 %3575
      %3577 = vrot.lane.b32.xlu0 %v739, 64
      %v3578 = vpop.permute.xlu0 %3577
      %3579 = vrot.lane.b32.xlu0 %v741, 64
      %v3580 = vpop.permute.xlu0 %3579
      %3581 = vrot.lane.b32.xlu0 %v744, 64
      %v3582 = vpop.permute.xlu0 %3581
      %3583 = vrot.lane.b32.xlu0 %v746, 64
      %v3584 = vpop.permute.xlu0 %3583
      %3585 = vrot.lane.b32.xlu0 %v749, 64
      %v3586 = vpop.permute.xlu0 %3585
      %3587 = vrot.lane.b32.xlu0 %v751, 64
      %v3588 = vpop.permute.xlu0 %3587
      %3589 = vrot.lane.b32.xlu0 %v754, 64
      %v3590 = vpop.permute.xlu0 %3589
      %3591 = vrot.lane.b32.xlu0 %v756, 64
      %v3592 = vpop.permute.xlu0 %3591
      %3593 = vrot.lane.b32.xlu0 %v759, 64
      %v3594 = vpop.permute.xlu0 %3593
      %3595 = vrot.lane.b32.xlu0 %v761, 64
      %v3596 = vpop.permute.xlu0 %3595
      %3597 = vrot.lane.b32.xlu0 %v764, 64
      %v3598 = vpop.permute.xlu0 %3597
      %3599 = vrot.lane.b32.xlu0 %v766, 64
      %v3600 = vpop.permute.xlu0 %3599
      %3601 = vrot.lane.b32.xlu0 %v769, 64
      %v3602 = vpop.permute.xlu0 %3601
      %3603 = vrot.lane.b32.xlu0 %v771, 64
      %v3604 = vpop.permute.xlu0 %3603
      %3605 = vrot.lane.b32.xlu0 %v774, 64
      %v3606 = vpop.permute.xlu0 %3605
      %3607 = vrot.lane.b32.xlu0 %v776, 64
      %v3608 = vpop.permute.xlu0 %3607
      %3609 = vrot.lane.b32.xlu0 %v779, 64
      %v3610 = vpop.permute.xlu0 %3609
      %3611 = vrot.lane.b32.xlu0 %v781, 64
      %v3612 = vpop.permute.xlu0 %3611
      %3613 = vrot.lane.b32.xlu0 %v784, 64
      %v3614 = vpop.permute.xlu0 %3613
      %3615 = vrot.lane.b32.xlu0 %v786, 64
      %v3616 = vpop.permute.xlu0 %3615
      %3617 = vrot.lane.b32.xlu0 %v789, 64
      %v3618 = vpop.permute.xlu0 %3617
      %3619 = vrot.lane.b32.xlu0 %v791, 64
      %v3620 = vpop.permute.xlu0 %3619
      %3621 = vrot.lane.b32.xlu0 %v794, 64
      %v3622 = vpop.permute.xlu0 %3621
      %3623 = vrot.lane.b32.xlu0 %v796, 64
      %v3624 = vpop.permute.xlu0 %3623
      %3625 = vrot.lane.b32.xlu0 %v799, 64
      %v3626 = vpop.permute.xlu0 %3625
      %3627 = vrot.lane.b32.xlu0 %v801, 64
      %v3628 = vpop.permute.xlu0 %3627
      %3629 = vrot.lane.b32.xlu0 %v804, 64
      %v3630 = vpop.permute.xlu0 %3629
      %3631 = vrot.lane.b32.xlu0 %v806, 64
      %v3632 = vpop.permute.xlu0 %3631
      %3633 = vrot.lane.b32.xlu0 %v809, 64
      %v3634 = vpop.permute.xlu0 %3633
      %3635 = vrot.lane.b32.xlu0 %v811, 64
      %v3636 = vpop.permute.xlu0 %3635
      %3637 = vrot.lane.b32.xlu0 %v814, 64
      %v3638 = vpop.permute.xlu0 %3637
      %3639 = vrot.lane.b32.xlu0 %v816, 64
      %v3640 = vpop.permute.xlu0 %3639
      %3641 = vrot.lane.b32.xlu0 %v819, 64
      %v3642 = vpop.permute.xlu0 %3641
      %3643 = vrot.lane.b32.xlu0 %v821, 64
      %v3644 = vpop.permute.xlu0 %3643
      %3645 = vrot.lane.b32.xlu0 %v824, 64
      %v3646 = vpop.permute.xlu0 %3645
      %3647 = vrot.lane.b32.xlu0 %v826, 64
      %v3648 = vpop.permute.xlu0 %3647
      %3649 = vrot.lane.b32.xlu0 %v829, 64
      %v3650 = vpop.permute.xlu0 %3649
      %3651 = vrot.lane.b32.xlu0 %v831, 64
      %v3652 = vpop.permute.xlu0 %3651
      %3653 = vrot.lane.b32.xlu0 %v834, 64
      %v3654 = vpop.permute.xlu0 %3653
      %3655 = vrot.lane.b32.xlu0 %v836, 64
      %v3656 = vpop.permute.xlu0 %3655
      %3657 = vrot.lane.b32.xlu0 %v839, 64
      %v3658 = vpop.permute.xlu0 %3657
      %3659 = vrot.lane.b32.xlu0 %v841, 64
      %v3660 = vpop.permute.xlu0 %3659
      %v3726 = vsel %vm577, %v3421, 0
      %v3729 = vsel %vm577, %v3422, 0
      %v3732 = vsel %vm577, %v3423, 0
      %v3735 = vsel %vm577, %v3424, 0
      %v3738 = vsel %vm577, %v3425, 0
      %v3741 = vsel %vm577, %v3426, 0
      %v3744 = vsel %vm577, %v3427, 0
      %v3747 = vsel %vm577, %v3428, 0
      %v3750 = vsel %vm577, %v3429, 0
      %v3753 = vsel %vm577, %v3430, 0
      %v3756 = vsel %vm577, %v3431, 0
      %v3759 = vsel %vm577, %v3432, 0
      %v3762 = vsel %vm577, %v3433, 0
      %v3765 = vsel %vm577, %v3434, 0
      %v3768 = vsel %vm577, %v3435, 0
      %v3771 = vsel %vm577, %v3436, 0
      %v3774 = vsel %vm577, %v3437, 0
      %v3777 = vsel %vm577, %v3438, 0
      %v3780 = vsel %vm577, %v3439, 0
      %v3783 = vsel %vm577, %v3440, 0
      %v3786 = vsel %vm577, %v3441, 0
      %v3789 = vsel %vm577, %v3442, 0
      %v3792 = vsel %vm577, %v3443, 0
      %v3795 = vsel %vm577, %v3444, 0
      %v3798 = vsel %vm577, %v3445, 0
      %v3801 = vsel %vm577, %v3446, 0
      %v3804 = vsel %vm577, %v3447, 0
      %v3807 = vsel %vm577, %v3448, 0
      %v3810 = vsel %vm577, %v3449, 0
      %v3813 = vsel %vm577, %v3450, 0
      %v3816 = vsel %vm577, %v3451, 0
      %v3819 = vsel %vm577, %v3452, 0
      %3821 = vmatpush.bf16.msra.mxu0 0
      %3822 = vmatpush.bf16.msra.mxu0 0
      %3823 = vmatpush.bf16.msra.mxu0 0
      %3824 = vmatpush.bf16.msra.mxu0 0
      %3825 = vmatpush.bf16.msra.mxu0 0
      %3826 = vmatpush.bf16.msra.mxu0 0
      %3827 = vmatpush.bf16.msra.mxu0 %v3466
      %3828 = vmatpush.bf16.msra.mxu0 %v3465
      %3829 = vmatmul.bf16.gmra.mxu0 %v3726
      %v3830 = vpop.f32.mrf.mxu0
      %v3831 = vadd.f32 %v3534, %v3830
      %v3832 = vpop.f32.mrf.mxu0
      %v3833 = vadd.f32 %v3536, %v3832
      %3834 = vmatmul.bf16.gmra.mxu0 %v3729
      %v3835 = vpop.f32.mrf.mxu0
      %v3836 = vadd.f32 %v3538, %v3835
      %v3837 = vpop.f32.mrf.mxu0
      %v3838 = vadd.f32 %v3540, %v3837
      %3839 = vmatmul.bf16.gmra.mxu0 %v3732
      %v3840 = vpop.f32.mrf.mxu0
      %v3841 = vadd.f32 %v3542, %v3840
      %v3842 = vpop.f32.mrf.mxu0
      %v3843 = vadd.f32 %v3544, %v3842
      %3844 = vmatmul.bf16.gmra.mxu0 %v3735
      %v3845 = vpop.f32.mrf.mxu0
      %v3846 = vadd.f32 %v3546, %v3845
      %v3847 = vpop.f32.mrf.mxu0
      %v3848 = vadd.f32 %v3548, %v3847
      %3849 = vmatmul.bf16.gmra.mxu0 %v3738
      %v3850 = vpop.f32.mrf.mxu0
      %v3851 = vadd.f32 %v3550, %v3850
      %v3852 = vpop.f32.mrf.mxu0
      %v3853 = vadd.f32 %v3552, %v3852
      %3854 = vmatmul.bf16.gmra.mxu0 %v3741
      %v3855 = vpop.f32.mrf.mxu0
      %v3856 = vadd.f32 %v3554, %v3855
      %v3857 = vpop.f32.mrf.mxu0
      %v3858 = vadd.f32 %v3556, %v3857
      %3859 = vmatmul.bf16.gmra.mxu0 %v3744
      %v3860 = vpop.f32.mrf.mxu0
      %v3861 = vadd.f32 %v3558, %v3860
      %v3862 = vpop.f32.mrf.mxu0
      %v3863 = vadd.f32 %v3560, %v3862
      %3864 = vmatmul.bf16.gmra.mxu0 %v3747
      %v3865 = vpop.f32.mrf.mxu0
      %v3866 = vadd.f32 %v3562, %v3865
      %v3867 = vpop.f32.mrf.mxu0
      %v3868 = vadd.f32 %v3564, %v3867
      %3869 = vmatmul.bf16.gmra.mxu0 %v3750
      %v3870 = vpop.f32.mrf.mxu0
      %v3871 = vadd.f32 %v3566, %v3870
      %v3872 = vpop.f32.mrf.mxu0
      %v3873 = vadd.f32 %v3568, %v3872
      %3874 = vmatmul.bf16.gmra.mxu0 %v3753
      %v3875 = vpop.f32.mrf.mxu0
      %v3876 = vadd.f32 %v3570, %v3875
      %v3877 = vpop.f32.mrf.mxu0
      %v3878 = vadd.f32 %v3572, %v3877
      %3879 = vmatmul.bf16.gmra.mxu0 %v3756
      %v3880 = vpop.f32.mrf.mxu0
      %v3881 = vadd.f32 %v3574, %v3880
      %v3882 = vpop.f32.mrf.mxu0
      %v3883 = vadd.f32 %v3576, %v3882
      %3884 = vmatmul.bf16.gmra.mxu0 %v3759
      %v3885 = vpop.f32.mrf.mxu0
      %v3886 = vadd.f32 %v3578, %v3885
      %v3887 = vpop.f32.mrf.mxu0
      %v3888 = vadd.f32 %v3580, %v3887
      %3889 = vmatmul.bf16.gmra.mxu0 %v3762
      %v3890 = vpop.f32.mrf.mxu0
      %v3891 = vadd.f32 %v3582, %v3890
      %v3892 = vpop.f32.mrf.mxu0
      %v3893 = vadd.f32 %v3584, %v3892
      %3894 = vmatmul.bf16.gmra.mxu0 %v3765
      %v3895 = vpop.f32.mrf.mxu0
      %v3896 = vadd.f32 %v3586, %v3895
      %v3897 = vpop.f32.mrf.mxu0
      %v3898 = vadd.f32 %v3588, %v3897
      %3899 = vmatmul.bf16.gmra.mxu0 %v3768
      %v3900 = vpop.f32.mrf.mxu0
      %v3901 = vadd.f32 %v3590, %v3900
      %v3902 = vpop.f32.mrf.mxu0
      %v3903 = vadd.f32 %v3592, %v3902
      %3904 = vmatmul.bf16.gmra.mxu0 %v3771
      %v3905 = vpop.f32.mrf.mxu0
      %v3906 = vadd.f32 %v3594, %v3905
      %v3907 = vpop.f32.mrf.mxu0
      %v3908 = vadd.f32 %v3596, %v3907
      %3909 = vmatmul.bf16.gmra.mxu0 %v3774
      %v3910 = vpop.f32.mrf.mxu0
      %v3911 = vadd.f32 %v3598, %v3910
      %v3912 = vpop.f32.mrf.mxu0
      %v3913 = vadd.f32 %v3600, %v3912
      %3914 = vmatmul.bf16.gmra.mxu0 %v3777
      %v3915 = vpop.f32.mrf.mxu0
      %v3916 = vadd.f32 %v3602, %v3915
      %v3917 = vpop.f32.mrf.mxu0
      %v3918 = vadd.f32 %v3604, %v3917
      %3919 = vmatmul.bf16.gmra.mxu0 %v3780
      %v3920 = vpop.f32.mrf.mxu0
      %v3921 = vadd.f32 %v3606, %v3920
      %v3922 = vpop.f32.mrf.mxu0
      %v3923 = vadd.f32 %v3608, %v3922
      %3924 = vmatmul.bf16.gmra.mxu0 %v3783
      %v3925 = vpop.f32.mrf.mxu0
      %v3926 = vadd.f32 %v3610, %v3925
      %v3927 = vpop.f32.mrf.mxu0
      %v3928 = vadd.f32 %v3612, %v3927
      %3929 = vmatmul.bf16.gmra.mxu0 %v3786
      %v3930 = vpop.f32.mrf.mxu0
      %v3931 = vadd.f32 %v3614, %v3930
      %v3932 = vpop.f32.mrf.mxu0
      %v3933 = vadd.f32 %v3616, %v3932
      %3934 = vmatmul.bf16.gmra.mxu0 %v3789
      %v3935 = vpop.f32.mrf.mxu0
      %v3936 = vadd.f32 %v3618, %v3935
      %v3937 = vpop.f32.mrf.mxu0
      %v3938 = vadd.f32 %v3620, %v3937
      %3939 = vmatmul.bf16.gmra.mxu0 %v3792
      %v3940 = vpop.f32.mrf.mxu0
      %v3941 = vadd.f32 %v3622, %v3940
      %v3942 = vpop.f32.mrf.mxu0
      %v3943 = vadd.f32 %v3624, %v3942
      %3944 = vmatmul.bf16.gmra.mxu0 %v3795
      %v3945 = vpop.f32.mrf.mxu0
      %v3946 = vadd.f32 %v3626, %v3945
      %v3947 = vpop.f32.mrf.mxu0
      %v3948 = vadd.f32 %v3628, %v3947
      %3949 = vmatmul.bf16.gmra.mxu0 %v3798
      %v3950 = vpop.f32.mrf.mxu0
      %v3951 = vadd.f32 %v3630, %v3950
      %v3952 = vpop.f32.mrf.mxu0
      %v3953 = vadd.f32 %v3632, %v3952
      %3954 = vmatmul.bf16.gmra.mxu0 %v3801
      %v3955 = vpop.f32.mrf.mxu0
      %v3956 = vadd.f32 %v3634, %v3955
      %v3957 = vpop.f32.mrf.mxu0
      %v3958 = vadd.f32 %v3636, %v3957
      %3959 = vmatmul.bf16.gmra.mxu0 %v3804
      %v3960 = vpop.f32.mrf.mxu0
      %v3961 = vadd.f32 %v3638, %v3960
      %v3962 = vpop.f32.mrf.mxu0
      %v3963 = vadd.f32 %v3640, %v3962
      %3964 = vmatmul.bf16.gmra.mxu0 %v3807
      %v3965 = vpop.f32.mrf.mxu0
      %v3966 = vadd.f32 %v3642, %v3965
      %v3967 = vpop.f32.mrf.mxu0
      %v3968 = vadd.f32 %v3644, %v3967
      %3969 = vmatmul.bf16.gmra.mxu0 %v3810
      %v3970 = vpop.f32.mrf.mxu0
      %v3971 = vadd.f32 %v3646, %v3970
      %v3972 = vpop.f32.mrf.mxu0
      %v3973 = vadd.f32 %v3648, %v3972
      %3974 = vmatmul.bf16.gmra.mxu0 %v3813
      %v3975 = vpop.f32.mrf.mxu0
      %v3976 = vadd.f32 %v3650, %v3975
      %v3977 = vpop.f32.mrf.mxu0
      %v3978 = vadd.f32 %v3652, %v3977
      %3979 = vmatmul.bf16.gmra.mxu0 %v3816
      %v3980 = vpop.f32.mrf.mxu0
      %v3981 = vadd.f32 %v3654, %v3980
      %v3982 = vpop.f32.mrf.mxu0
      %v3983 = vadd.f32 %v3656, %v3982
      %3984 = vmatmul.bf16.gmra.mxu0 %v3819
      %v3985 = vpop.f32.mrf.mxu0
      %v3986 = vadd.f32 %v3658, %v3985
      %v3987 = vpop.f32.mrf.mxu0
      %v3988 = vadd.f32 %v3660, %v3987
      %3989 = vdwg.mxu0
      %v3990 = vld [vmem:[%s6] sm:$0x1]
      %v3992 = vperm.slane %v3990, 0
      %v3994 = vadd.f32 %v3831, %v3992
      %v3995 = vadd.f32 %v3833, %v3992
      %v3996 = vadd.f32 %v3836, %v3992
      %v3997 = vadd.f32 %v3838, %v3992
      %v3998 = vadd.f32 %v3841, %v3992
      %v3999 = vadd.f32 %v3843, %v3992
      %v4000 = vadd.f32 %v3846, %v3992
      %v4001 = vadd.f32 %v3848, %v3992
      %v4002 = vadd.f32 %v3851, %v3992
      %v4003 = vadd.f32 %v3853, %v3992
      %v4004 = vadd.f32 %v3856, %v3992
      %v4005 = vadd.f32 %v3858, %v3992
      %v4006 = vadd.f32 %v3861, %v3992
      %v4007 = vadd.f32 %v3863, %v3992
      %v4008 = vadd.f32 %v3866, %v3992
      %v4009 = vadd.f32 %v3868, %v3992
      %v4010 = vadd.f32 %v3871, %v3992
      %v4011 = vadd.f32 %v3873, %v3992
      %v4012 = vadd.f32 %v3876, %v3992
      %v4013 = vadd.f32 %v3878, %v3992
      %v4014 = vadd.f32 %v3881, %v3992
      %v4015 = vadd.f32 %v3883, %v3992
      %v4016 = vadd.f32 %v3886, %v3992
      %v4017 = vadd.f32 %v3888, %v3992
      %v4018 = vadd.f32 %v3891, %v3992
      %v4019 = vadd.f32 %v3893, %v3992
      %v4020 = vadd.f32 %v3896, %v3992
      %v4021 = vadd.f32 %v3898, %v3992
      %v4022 = vadd.f32 %v3901, %v3992
      %v4023 = vadd.f32 %v3903, %v3992
      %v4024 = vadd.f32 %v3906, %v3992
      %v4025 = vadd.f32 %v3908, %v3992
      %v4026 = vadd.f32 %v3911, %v3992
      %v4027 = vadd.f32 %v3913, %v3992
      %v4028 = vadd.f32 %v3916, %v3992
      %v4029 = vadd.f32 %v3918, %v3992
      %v4030 = vadd.f32 %v3921, %v3992
      %v4031 = vadd.f32 %v3923, %v3992
      %v4032 = vadd.f32 %v3926, %v3992
      %v4033 = vadd.f32 %v3928, %v3992
      %v4034 = vadd.f32 %v3931, %v3992
      %v4035 = vadd.f32 %v3933, %v3992
      %v4036 = vadd.f32 %v3936, %v3992
      %v4037 = vadd.f32 %v3938, %v3992
      %v4038 = vadd.f32 %v3941, %v3992
      %v4039 = vadd.f32 %v3943, %v3992
      %v4040 = vadd.f32 %v3946, %v3992
      %v4041 = vadd.f32 %v3948, %v3992
      %v4042 = vadd.f32 %v3951, %v3992
      %v4043 = vadd.f32 %v3953, %v3992
      %v4044 = vadd.f32 %v3956, %v3992
      %v4045 = vadd.f32 %v3958, %v3992
      %v4046 = vadd.f32 %v3961, %v3992
      %v4047 = vadd.f32 %v3963, %v3992
      %v4048 = vadd.f32 %v3966, %v3992
      %v4049 = vadd.f32 %v3968, %v3992
      %v4050 = vadd.f32 %v3971, %v3992
      %v4051 = vadd.f32 %v3973, %v3992
      %v4052 = vadd.f32 %v3976, %v3992
      %v4053 = vadd.f32 %v3978, %v3992
      %v4054 = vadd.f32 %v3981, %v3992
      %v4055 = vadd.f32 %v3983, %v3992
      %v4056 = vadd.f32 %v3986, %v3992
      %v4057 = vadd.f32 %v3988, %v3992
      %v4058 = vand.u32 2147483647, %v3994
      %v4059 = vand.u32 2147483647, %v3995
      %v4060 = vand.u32 2147483647, %v3996
      %v4061 = vand.u32 2147483647, %v3997
      %v4062 = vand.u32 2147483647, %v3998
      %v4063 = vand.u32 2147483647, %v3999
      %v4064 = vand.u32 2147483647, %v4000
      %v4065 = vand.u32 2147483647, %v4001
      %v4066 = vand.u32 2147483647, %v4002
      %v4067 = vand.u32 2147483647, %v4003
      %v4068 = vand.u32 2147483647, %v4004
      %v4069 = vand.u32 2147483647, %v4005
      %v4070 = vand.u32 2147483647, %v4006
      %v4071 = vand.u32 2147483647, %v4007
      %v4072 = vand.u32 2147483647, %v4008
      %v4073 = vand.u32 2147483647, %v4009
      %v4074 = vand.u32 2147483647, %v4010
      %v4075 = vand.u32 2147483647, %v4011
      %v4076 = vand.u32 2147483647, %v4012
      %v4077 = vand.u32 2147483647, %v4013
      %v4078 = vand.u32 2147483647, %v4014
      %v4079 = vand.u32 2147483647, %v4015
      %v4080 = vand.u32 2147483647, %v4016
      %v4081 = vand.u32 2147483647, %v4017
      %v4082 = vand.u32 2147483647, %v4018
      %v4083 = vand.u32 2147483647, %v4019
      %v4084 = vand.u32 2147483647, %v4020
      %v4085 = vand.u32 2147483647, %v4021
      %v4086 = vand.u32 2147483647, %v4022
      %v4087 = vand.u32 2147483647, %v4023
      %v4088 = vand.u32 2147483647, %v4024
      %v4089 = vand.u32 2147483647, %v4025
      %v4090 = vand.u32 2147483647, %v4026
      %v4091 = vand.u32 2147483647, %v4027
      %v4092 = vand.u32 2147483647, %v4028
      %v4093 = vand.u32 2147483647, %v4029
      %v4094 = vand.u32 2147483647, %v4030
      %v4095 = vand.u32 2147483647, %v4031
      %v4096 = vand.u32 2147483647, %v4032
      %v4097 = vand.u32 2147483647, %v4033
      %v4098 = vand.u32 2147483647, %v4034
      %v4099 = vand.u32 2147483647, %v4035
      %v4100 = vand.u32 2147483647, %v4036
      %v4101 = vand.u32 2147483647, %v4037
      %v4102 = vand.u32 2147483647, %v4038
      %v4103 = vand.u32 2147483647, %v4039
      %v4104 = vand.u32 2147483647, %v4040
      %v4105 = vand.u32 2147483647, %v4041
      %v4106 = vand.u32 2147483647, %v4042
      %v4107 = vand.u32 2147483647, %v4043
      %v4108 = vand.u32 2147483647, %v4044
      %v4109 = vand.u32 2147483647, %v4045
      %v4110 = vand.u32 2147483647, %v4046
      %v4111 = vand.u32 2147483647, %v4047
      %v4112 = vand.u32 2147483647, %v4048
      %v4113 = vand.u32 2147483647, %v4049
      %v4114 = vand.u32 2147483647, %v4050
      %v4115 = vand.u32 2147483647, %v4051
      %v4116 = vand.u32 2147483647, %v4052
      %v4117 = vand.u32 2147483647, %v4053
      %v4118 = vand.u32 2147483647, %v4054
      %v4119 = vand.u32 2147483647, %v4055
      %v4120 = vand.u32 2147483647, %v4056
      %v4121 = vand.u32 2147483647, %v4057
      %v4122 = vmul.f32 %v4058, 100.0
      %v4123 = vmul.f32 %v4059, 100.0
      %v4124 = vmul.f32 %v4060, 100.0
      %v4125 = vmul.f32 %v4061, 100.0
      %v4126 = vmul.f32 %v4062, 100.0
      %v4127 = vmul.f32 %v4063, 100.0
      %v4128 = vmul.f32 %v4064, 100.0
      %v4129 = vmul.f32 %v4065, 100.0
      %v4130 = vmul.f32 %v4066, 100.0
      %v4131 = vmul.f32 %v4067, 100.0
      %v4132 = vmul.f32 %v4068, 100.0
      %v4133 = vmul.f32 %v4069, 100.0
      %v4134 = vmul.f32 %v4070, 100.0
      %v4135 = vmul.f32 %v4071, 100.0
      %v4136 = vmul.f32 %v4072, 100.0
      %v4137 = vmul.f32 %v4073, 100.0
      %v4138 = vmul.f32 %v4074, 100.0
      %v4139 = vmul.f32 %v4075, 100.0
      %v4140 = vmul.f32 %v4076, 100.0
      %v4141 = vmul.f32 %v4077, 100.0
      %v4142 = vmul.f32 %v4078, 100.0
      %v4143 = vmul.f32 %v4079, 100.0
      %v4144 = vmul.f32 %v4080, 100.0
      %v4145 = vmul.f32 %v4081, 100.0
      %v4146 = vmul.f32 %v4082, 100.0
      %v4147 = vmul.f32 %v4083, 100.0
      %v4148 = vmul.f32 %v4084, 100.0
      %v4149 = vmul.f32 %v4085, 100.0
      %v4150 = vmul.f32 %v4086, 100.0
      %v4151 = vmul.f32 %v4087, 100.0
      %v4152 = vmul.f32 %v4088, 100.0
      %v4153 = vmul.f32 %v4089, 100.0
      %v4154 = vmul.f32 %v4090, 100.0
      %v4155 = vmul.f32 %v4091, 100.0
      %v4156 = vmul.f32 %v4092, 100.0
      %v4157 = vmul.f32 %v4093, 100.0
      %v4158 = vmul.f32 %v4094, 100.0
      %v4159 = vmul.f32 %v4095, 100.0
      %v4160 = vmul.f32 %v4096, 100.0
      %v4161 = vmul.f32 %v4097, 100.0
      %v4162 = vmul.f32 %v4098, 100.0
      %v4163 = vmul.f32 %v4099, 100.0
      %v4164 = vmul.f32 %v4100, 100.0
      %v4165 = vmul.f32 %v4101, 100.0
      %v4166 = vmul.f32 %v4102, 100.0
      %v4167 = vmul.f32 %v4103, 100.0
      %v4168 = vmul.f32 %v4104, 100.0
      %v4169 = vmul.f32 %v4105, 100.0
      %v4170 = vmul.f32 %v4106, 100.0
      %v4171 = vmul.f32 %v4107, 100.0
      %v4172 = vmul.f32 %v4108, 100.0
      %v4173 = vmul.f32 %v4109, 100.0
      %v4174 = vmul.f32 %v4110, 100.0
      %v4175 = vmul.f32 %v4111, 100.0
      %v4176 = vmul.f32 %v4112, 100.0
      %v4177 = vmul.f32 %v4113, 100.0
      %v4178 = vmul.f32 %v4114, 100.0
      %v4179 = vmul.f32 %v4115, 100.0
      %v4180 = vmul.f32 %v4116, 100.0
      %v4181 = vmul.f32 %v4117, 100.0
      %v4182 = vmul.f32 %v4118, 100.0
      %v4183 = vmul.f32 %v4119, 100.0
      %v4184 = vmul.f32 %v4120, 100.0
      %v4185 = vmul.f32 %v4121, 100.0
      %v4186 = vmax.f32 %v3994, 0.0
      %v4187 = vmax.f32 %v3995, 0.0
      %v4188 = vmax.f32 %v3996, 0.0
      %v4189 = vmax.f32 %v3997, 0.0
      %v4190 = vmax.f32 %v3998, 0.0
      %v4191 = vmax.f32 %v3999, 0.0
      %v4192 = vmax.f32 %v4000, 0.0
      %v4193 = vmax.f32 %v4001, 0.0
      %v4194 = vmax.f32 %v4002, 0.0
      %v4195 = vmax.f32 %v4003, 0.0
      %v4196 = vmax.f32 %v4004, 0.0
      %v4197 = vmax.f32 %v4005, 0.0
      %v4198 = vmax.f32 %v4006, 0.0
      %v4199 = vmax.f32 %v4007, 0.0
      %v4200 = vmax.f32 %v4008, 0.0
      %v4201 = vmax.f32 %v4009, 0.0
      %v4202 = vmax.f32 %v4010, 0.0
      %v4203 = vmax.f32 %v4011, 0.0
      %v4204 = vmax.f32 %v4012, 0.0
      %v4205 = vmax.f32 %v4013, 0.0
      %v4206 = vmax.f32 %v4014, 0.0
      %v4207 = vmax.f32 %v4015, 0.0
      %v4208 = vmax.f32 %v4016, 0.0
      %v4209 = vmax.f32 %v4017, 0.0
      %v4210 = vmax.f32 %v4018, 0.0
      %v4211 = vmax.f32 %v4019, 0.0
      %v4212 = vmax.f32 %v4020, 0.0
      %v4213 = vmax.f32 %v4021, 0.0
      %v4214 = vmax.f32 %v4022, 0.0
      %v4215 = vmax.f32 %v4023, 0.0
      %v4216 = vmax.f32 %v4024, 0.0
      %v4217 = vmax.f32 %v4025, 0.0
      %v4218 = vmax.f32 %v4026, 0.0
      %v4219 = vmax.f32 %v4027, 0.0
      %v4220 = vmax.f32 %v4028, 0.0
      %v4221 = vmax.f32 %v4029, 0.0
      %v4222 = vmax.f32 %v4030, 0.0
      %v4223 = vmax.f32 %v4031, 0.0
      %v4224 = vmax.f32 %v4032, 0.0
      %v4225 = vmax.f32 %v4033, 0.0
      %v4226 = vmax.f32 %v4034, 0.0
      %v4227 = vmax.f32 %v4035, 0.0
      %v4228 = vmax.f32 %v4036, 0.0
      %v4229 = vmax.f32 %v4037, 0.0
      %v4230 = vmax.f32 %v4038, 0.0
      %v4231 = vmax.f32 %v4039, 0.0
      %v4232 = vmax.f32 %v4040, 0.0
      %v4233 = vmax.f32 %v4041, 0.0
      %v4234 = vmax.f32 %v4042, 0.0
      %v4235 = vmax.f32 %v4043, 0.0
      %v4236 = vmax.f32 %v4044, 0.0
      %v4237 = vmax.f32 %v4045, 0.0
      %v4238 = vmax.f32 %v4046, 0.0
      %v4239 = vmax.f32 %v4047, 0.0
      %v4240 = vmax.f32 %v4048, 0.0
      %v4241 = vmax.f32 %v4049, 0.0
      %v4242 = vmax.f32 %v4050, 0.0
      %v4243 = vmax.f32 %v4051, 0.0
      %v4244 = vmax.f32 %v4052, 0.0
      %v4245 = vmax.f32 %v4053, 0.0
      %v4246 = vmax.f32 %v4054, 0.0
      %v4247 = vmax.f32 %v4055, 0.0
      %v4248 = vmax.f32 %v4056, 0.0
      %v4249 = vmax.f32 %v4057, 0.0
      %v4250 = vsub.f32 0.0, %v4122
      %v4251 = vsub.f32 0.0, %v4123
      %v4252 = vsub.f32 0.0, %v4124
      %v4253 = vsub.f32 0.0, %v4125
      %v4254 = vsub.f32 0.0, %v4126
      %v4255 = vsub.f32 0.0, %v4127
      %v4256 = vsub.f32 0.0, %v4128
      %v4257 = vsub.f32 0.0, %v4129
      %v4258 = vsub.f32 0.0, %v4130
      %v4259 = vsub.f32 0.0, %v4131
      %v4260 = vsub.f32 0.0, %v4132
      %v4261 = vsub.f32 0.0, %v4133
      %v4262 = vsub.f32 0.0, %v4134
      %v4263 = vsub.f32 0.0, %v4135
      %v4264 = vsub.f32 0.0, %v4136
      %v4265 = vsub.f32 0.0, %v4137
      %v4266 = vsub.f32 0.0, %v4138
      %v4267 = vsub.f32 0.0, %v4139
      %v4268 = vsub.f32 0.0, %v4140
      %v4269 = vsub.f32 0.0, %v4141
      %v4270 = vsub.f32 0.0, %v4142
      %v4271 = vsub.f32 0.0, %v4143
      %v4272 = vsub.f32 0.0, %v4144
      %v4273 = vsub.f32 0.0, %v4145
      %v4274 = vsub.f32 0.0, %v4146
      %v4275 = vsub.f32 0.0, %v4147
      %v4276 = vsub.f32 0.0, %v4148
      %v4277 = vsub.f32 0.0, %v4149
      %v4278 = vsub.f32 0.0, %v4150
      %v4279 = vsub.f32 0.0, %v4151
      %v4280 = vsub.f32 0.0, %v4152
      %v4281 = vsub.f32 0.0, %v4153
      %v4282 = vsub.f32 0.0, %v4154
      %v4283 = vsub.f32 0.0, %v4155
      %v4284 = vsub.f32 0.0, %v4156
      %v4285 = vsub.f32 0.0, %v4157
      %v4286 = vsub.f32 0.0, %v4158
      %v4287 = vsub.f32 0.0, %v4159
      %v4288 = vsub.f32 0.0, %v4160
      %v4289 = vsub.f32 0.0, %v4161
      %v4290 = vsub.f32 0.0, %v4162
      %v4291 = vsub.f32 0.0, %v4163
      %v4292 = vsub.f32 0.0, %v4164
      %v4293 = vsub.f32 0.0, %v4165
      %v4294 = vsub.f32 0.0, %v4166
      %v4295 = vsub.f32 0.0, %v4167
      %v4296 = vsub.f32 0.0, %v4168
      %v4297 = vsub.f32 0.0, %v4169
      %v4298 = vsub.f32 0.0, %v4170
      %v4299 = vsub.f32 0.0, %v4171
      %v4300 = vsub.f32 0.0, %v4172
      %v4301 = vsub.f32 0.0, %v4173
      %v4302 = vsub.f32 0.0, %v4174
      %v4303 = vsub.f32 0.0, %v4175
      %v4304 = vsub.f32 0.0, %v4176
      %v4305 = vsub.f32 0.0, %v4177
      %v4306 = vsub.f32 0.0, %v4178
      %v4307 = vsub.f32 0.0, %v4179
      %v4308 = vsub.f32 0.0, %v4180
      %v4309 = vsub.f32 0.0, %v4181
      %v4310 = vsub.f32 0.0, %v4182
      %v4311 = vsub.f32 0.0, %v4183
      %v4312 = vsub.f32 0.0, %v4184
      %v4313 = vsub.f32 0.0, %v4185
      %v4314 = vmul.f32 %v4250, 1.442695
      %v4315 = vpow.pop %v4314
      %v4316 = vmul.f32 %v4251, 1.442695
      %v4317 = vpow.pop %v4316
      %v4318 = vmul.f32 %v4252, 1.442695
      %v4319 = vpow.pop %v4318
      %v4320 = vmul.f32 %v4253, 1.442695
      %v4321 = vpow.pop %v4320
      %v4322 = vmul.f32 %v4254, 1.442695
      %v4323 = vpow.pop %v4322
      %v4324 = vmul.f32 %v4255, 1.442695
      %v4325 = vpow.pop %v4324
      %v4326 = vmul.f32 %v4256, 1.442695
      %v4327 = vpow.pop %v4326
      %v4328 = vmul.f32 %v4257, 1.442695
      %v4329 = vpow.pop %v4328
      %v4330 = vmul.f32 %v4258, 1.442695
      %v4331 = vpow.pop %v4330
      %v4332 = vmul.f32 %v4259, 1.442695
      %v4333 = vpow.pop %v4332
      %v4334 = vmul.f32 %v4260, 1.442695
      %v4335 = vpow.pop %v4334
      %v4336 = vmul.f32 %v4261, 1.442695
      %v4337 = vpow.pop %v4336
      %v4338 = vmul.f32 %v4262, 1.442695
      %v4339 = vpow.pop %v4338
      %v4340 = vmul.f32 %v4263, 1.442695
      %v4341 = vpow.pop %v4340
      %v4342 = vmul.f32 %v4264, 1.442695
      %v4343 = vpow.pop %v4342
      %v4344 = vmul.f32 %v4265, 1.442695
      %v4345 = vpow.pop %v4344
      %v4346 = vmul.f32 %v4266, 1.442695
      %v4347 = vpow.pop %v4346
      %v4348 = vmul.f32 %v4267, 1.442695
      %v4349 = vpow.pop %v4348
      %v4350 = vmul.f32 %v4268, 1.442695
      %v4351 = vpow.pop %v4350
      %v4352 = vmul.f32 %v4269, 1.442695
      %v4353 = vpow.pop %v4352
      %v4354 = vmul.f32 %v4270, 1.442695
      %v4355 = vpow.pop %v4354
      %v4356 = vmul.f32 %v4271, 1.442695
      %v4357 = vpow.pop %v4356
      %v4358 = vmul.f32 %v4272, 1.442695
      %v4359 = vpow.pop %v4358
      %v4360 = vmul.f32 %v4273, 1.442695
      %v4361 = vpow.pop %v4360
      %v4362 = vmul.f32 %v4274, 1.442695
      %v4363 = vpow.pop %v4362
      %v4364 = vmul.f32 %v4275, 1.442695
      %v4365 = vpow.pop %v4364
      %v4366 = vmul.f32 %v4276, 1.442695
      %v4367 = vpow.pop %v4366
      %v4368 = vmul.f32 %v4277, 1.442695
      %v4369 = vpow.pop %v4368
      %v4370 = vmul.f32 %v4278, 1.442695
      %v4371 = vpow.pop %v4370
      %v4372 = vmul.f32 %v4279, 1.442695
      %v4373 = vpow.pop %v4372
      %v4374 = vmul.f32 %v4280, 1.442695
      %v4375 = vpow.pop %v4374
      %v4376 = vmul.f32 %v4281, 1.442695
      %v4377 = vpow.pop %v4376
      %v4378 = vmul.f32 %v4282, 1.442695
      %v4379 = vpow.pop %v4378
      %v4380 = vmul.f32 %v4283, 1.442695
      %v4381 = vpow.pop %v4380
      %v4382 = vmul.f32 %v4284, 1.442695
      %v4383 = vpow.pop %v4382
      %v4384 = vmul.f32 %v4285, 1.442695
      %v4385 = vpow.pop %v4384
      %v4386 = vmul.f32 %v4286, 1.442695
      %v4387 = vpow.pop %v4386
      %v4388 = vmul.f32 %v4287, 1.442695
      %v4389 = vpow.pop %v4388
      %v4390 = vmul.f32 %v4288, 1.442695
      %v4391 = vpow.pop %v4390
      %v4392 = vmul.f32 %v4289, 1.442695
      %v4393 = vpow.pop %v4392
      %v4394 = vmul.f32 %v4290, 1.442695
      %v4395 = vpow.pop %v4394
      %v4396 = vmul.f32 %v4291, 1.442695
      %v4397 = vpow.pop %v4396
      %v4398 = vmul.f32 %v4292, 1.442695
      %v4399 = vpow.pop %v4398
      %v4400 = vmul.f32 %v4293, 1.442695
      %v4401 = vpow.pop %v4400
      %v4402 = vmul.f32 %v4294, 1.442695
      %v4403 = vpow.pop %v4402
      %v4404 = vmul.f32 %v4295, 1.442695
      %v4405 = vpow.pop %v4404
      %v4406 = vmul.f32 %v4296, 1.442695
      %v4407 = vpow.pop %v4406
      %v4408 = vmul.f32 %v4297, 1.442695
      %v4409 = vpow.pop %v4408
      %v4410 = vmul.f32 %v4298, 1.442695
      %v4411 = vpow.pop %v4410
      %v4412 = vmul.f32 %v4299, 1.442695
      %v4413 = vpow.pop %v4412
      %v4414 = vmul.f32 %v4300, 1.442695
      %v4415 = vpow.pop %v4414
      %v4416 = vmul.f32 %v4301, 1.442695
      %v4417 = vpow.pop %v4416
      %v4418 = vmul.f32 %v4302, 1.442695
      %v4419 = vpow.pop %v4418
      %v4420 = vmul.f32 %v4303, 1.442695
      %v4421 = vpow.pop %v4420
      %v4422 = vmul.f32 %v4304, 1.442695
      %v4423 = vpow.pop %v4422
      %v4424 = vmul.f32 %v4305, 1.442695
      %v4425 = vpow.pop %v4424
      %v4426 = vmul.f32 %v4306, 1.442695
      %v4427 = vpow.pop %v4426
      %v4428 = vmul.f32 %v4307, 1.442695
      %v4429 = vpow.pop %v4428
      %v4430 = vmul.f32 %v4308, 1.442695
      %v4431 = vpow.pop %v4430
      %v4432 = vmul.f32 %v4309, 1.442695
      %v4433 = vpow.pop %v4432
      %v4434 = vmul.f32 %v4310, 1.442695
      %v4435 = vpow.pop %v4434
      %v4436 = vmul.f32 %v4311, 1.442695
      %v4437 = vpow.pop %v4436
      %v4438 = vmul.f32 %v4312, 1.442695
      %v4439 = vpow.pop %v4438
      %v4440 = vmul.f32 %v4313, 1.442695
      %v4441 = vpow.pop %v4440
      %v4442 = vadd.f32 %v4315, 1.0
      %v4443 = vlog2.pop %v4442
      %v4444 = vmul.f32 %v4443, 0.6931472
      %v4445 = vmul.f32 -0.5, %v4315
      %v4446 = vadd.f32 %v4445, 1.0
      %v4447 = vmul.f32 %v4446, %v4315
      %v4448 = vand.u32 2147483647, %v4315
      %vm4449 = vcmp.lt.f32.partialorder %v4448, 0.0004427343
      %v4450 = vsel %vm4449, %v4447, %v4444
      %v4451 = vadd.f32 %v4317, 1.0
      %v4452 = vlog2.pop %v4451
      %v4453 = vmul.f32 %v4452, 0.6931472
      %v4454 = vmul.f32 -0.5, %v4317
      %v4455 = vadd.f32 %v4454, 1.0
      %v4456 = vmul.f32 %v4455, %v4317
      %v4457 = vand.u32 2147483647, %v4317
      %vm4458 = vcmp.lt.f32.partialorder %v4457, 0.0004427343
      %v4459 = vsel %vm4458, %v4456, %v4453
      %v4460 = vadd.f32 %v4319, 1.0
      %v4461 = vlog2.pop %v4460
      %v4462 = vmul.f32 %v4461, 0.6931472
      %v4463 = vmul.f32 -0.5, %v4319
      %v4464 = vadd.f32 %v4463, 1.0
      %v4465 = vmul.f32 %v4464, %v4319
      %v4466 = vand.u32 2147483647, %v4319
      %vm4467 = vcmp.lt.f32.partialorder %v4466, 0.0004427343
      %v4468 = vsel %vm4467, %v4465, %v4462
      %v4469 = vadd.f32 %v4321, 1.0
      %v4470 = vlog2.pop %v4469
      %v4471 = vmul.f32 %v4470, 0.6931472
      %v4472 = vmul.f32 -0.5, %v4321
      %v4473 = vadd.f32 %v4472, 1.0
      %v4474 = vmul.f32 %v4473, %v4321
      %v4475 = vand.u32 2147483647, %v4321
      %vm4476 = vcmp.lt.f32.partialorder %v4475, 0.0004427343
      %v4477 = vsel %vm4476, %v4474, %v4471
      %v4478 = vadd.f32 %v4323, 1.0
      %v4479 = vlog2.pop %v4478
      %v4480 = vmul.f32 %v4479, 0.6931472
      %v4481 = vmul.f32 -0.5, %v4323
      %v4482 = vadd.f32 %v4481, 1.0
      %v4483 = vmul.f32 %v4482, %v4323
      %v4484 = vand.u32 2147483647, %v4323
      %vm4485 = vcmp.lt.f32.partialorder %v4484, 0.0004427343
      %v4486 = vsel %vm4485, %v4483, %v4480
      %v4487 = vadd.f32 %v4325, 1.0
      %v4488 = vlog2.pop %v4487
      %v4489 = vmul.f32 %v4488, 0.6931472
      %v4490 = vmul.f32 -0.5, %v4325
      %v4491 = vadd.f32 %v4490, 1.0
      %v4492 = vmul.f32 %v4491, %v4325
      %v4493 = vand.u32 2147483647, %v4325
      %vm4494 = vcmp.lt.f32.partialorder %v4493, 0.0004427343
      %v4495 = vsel %vm4494, %v4492, %v4489
      %v4496 = vadd.f32 %v4327, 1.0
      %v4497 = vlog2.pop %v4496
      %v4498 = vmul.f32 %v4497, 0.6931472
      %v4499 = vmul.f32 -0.5, %v4327
      %v4500 = vadd.f32 %v4499, 1.0
      %v4501 = vmul.f32 %v4500, %v4327
      %v4502 = vand.u32 2147483647, %v4327
      %vm4503 = vcmp.lt.f32.partialorder %v4502, 0.0004427343
      %v4504 = vsel %vm4503, %v4501, %v4498
      %v4505 = vadd.f32 %v4329, 1.0
      %v4506 = vlog2.pop %v4505
      %v4507 = vmul.f32 %v4506, 0.6931472
      %v4508 = vmul.f32 -0.5, %v4329
      %v4509 = vadd.f32 %v4508, 1.0
      %v4510 = vmul.f32 %v4509, %v4329
      %v4511 = vand.u32 2147483647, %v4329
      %vm4512 = vcmp.lt.f32.partialorder %v4511, 0.0004427343
      %v4513 = vsel %vm4512, %v4510, %v4507
      %v4514 = vadd.f32 %v4331, 1.0
      %v4515 = vlog2.pop %v4514
      %v4516 = vmul.f32 %v4515, 0.6931472
      %v4517 = vmul.f32 -0.5, %v4331
      %v4518 = vadd.f32 %v4517, 1.0
      %v4519 = vmul.f32 %v4518, %v4331
      %v4520 = vand.u32 2147483647, %v4331
      %vm4521 = vcmp.lt.f32.partialorder %v4520, 0.0004427343
      %v4522 = vsel %vm4521, %v4519, %v4516
      %v4523 = vadd.f32 %v4333, 1.0
      %v4524 = vlog2.pop %v4523
      %v4525 = vmul.f32 %v4524, 0.6931472
      %v4526 = vmul.f32 -0.5, %v4333
      %v4527 = vadd.f32 %v4526, 1.0
      %v4528 = vmul.f32 %v4527, %v4333
      %v4529 = vand.u32 2147483647, %v4333
      %vm4530 = vcmp.lt.f32.partialorder %v4529, 0.0004427343
      %v4531 = vsel %vm4530, %v4528, %v4525
      %v4532 = vadd.f32 %v4335, 1.0
      %v4533 = vlog2.pop %v4532
      %v4534 = vmul.f32 %v4533, 0.6931472
      %v4535 = vmul.f32 -0.5, %v4335
      %v4536 = vadd.f32 %v4535, 1.0
      %v4537 = vmul.f32 %v4536, %v4335
      %v4538 = vand.u32 2147483647, %v4335
      %vm4539 = vcmp.lt.f32.partialorder %v4538, 0.0004427343
      %v4540 = vsel %vm4539, %v4537, %v4534
      %v4541 = vadd.f32 %v4337, 1.0
      %v4542 = vlog2.pop %v4541
      %v4543 = vmul.f32 %v4542, 0.6931472
      %v4544 = vmul.f32 -0.5, %v4337
      %v4545 = vadd.f32 %v4544, 1.0
      %v4546 = vmul.f32 %v4545, %v4337
      %v4547 = vand.u32 2147483647, %v4337
      %vm4548 = vcmp.lt.f32.partialorder %v4547, 0.0004427343
      %v4549 = vsel %vm4548, %v4546, %v4543
      %v4550 = vadd.f32 %v4339, 1.0
      %v4551 = vlog2.pop %v4550
      %v4552 = vmul.f32 %v4551, 0.6931472
      %v4553 = vmul.f32 -0.5, %v4339
      %v4554 = vadd.f32 %v4553, 1.0
      %v4555 = vmul.f32 %v4554, %v4339
      %v4556 = vand.u32 2147483647, %v4339
      %vm4557 = vcmp.lt.f32.partialorder %v4556, 0.0004427343
      %v4558 = vsel %vm4557, %v4555, %v4552
      %v4559 = vadd.f32 %v4341, 1.0
      %v4560 = vlog2.pop %v4559
      %v4561 = vmul.f32 %v4560, 0.6931472
      %v4562 = vmul.f32 -0.5, %v4341
      %v4563 = vadd.f32 %v4562, 1.0
      %v4564 = vmul.f32 %v4563, %v4341
      %v4565 = vand.u32 2147483647, %v4341
      %vm4566 = vcmp.lt.f32.partialorder %v4565, 0.0004427343
      %v4567 = vsel %vm4566, %v4564, %v4561
      %v4568 = vadd.f32 %v4343, 1.0
      %v4569 = vlog2.pop %v4568
      %v4570 = vmul.f32 %v4569, 0.6931472
      %v4571 = vmul.f32 -0.5, %v4343
      %v4572 = vadd.f32 %v4571, 1.0
      %v4573 = vmul.f32 %v4572, %v4343
      %v4574 = vand.u32 2147483647, %v4343
      %vm4575 = vcmp.lt.f32.partialorder %v4574, 0.0004427343
      %v4576 = vsel %vm4575, %v4573, %v4570
      %v4577 = vadd.f32 %v4345, 1.0
      %v4578 = vlog2.pop %v4577
      %v4579 = vmul.f32 %v4578, 0.6931472
      %v4580 = vmul.f32 -0.5, %v4345
      %v4581 = vadd.f32 %v4580, 1.0
      %v4582 = vmul.f32 %v4581, %v4345
      %v4583 = vand.u32 2147483647, %v4345
      %vm4584 = vcmp.lt.f32.partialorder %v4583, 0.0004427343
      %v4585 = vsel %vm4584, %v4582, %v4579
      %v4586 = vadd.f32 %v4347, 1.0
      %v4587 = vlog2.pop %v4586
      %v4588 = vmul.f32 %v4587, 0.6931472
      %v4589 = vmul.f32 -0.5, %v4347
      %v4590 = vadd.f32 %v4589, 1.0
      %v4591 = vmul.f32 %v4590, %v4347
      %v4592 = vand.u32 2147483647, %v4347
      %vm4593 = vcmp.lt.f32.partialorder %v4592, 0.0004427343
      %v4594 = vsel %vm4593, %v4591, %v4588
      %v4595 = vadd.f32 %v4349, 1.0
      %v4596 = vlog2.pop %v4595
      %v4597 = vmul.f32 %v4596, 0.6931472
      %v4598 = vmul.f32 -0.5, %v4349
      %v4599 = vadd.f32 %v4598, 1.0
      %v4600 = vmul.f32 %v4599, %v4349
      %v4601 = vand.u32 2147483647, %v4349
      %vm4602 = vcmp.lt.f32.partialorder %v4601, 0.0004427343
      %v4603 = vsel %vm4602, %v4600, %v4597
      %v4604 = vadd.f32 %v4351, 1.0
      %v4605 = vlog2.pop %v4604
      %v4606 = vmul.f32 %v4605, 0.6931472
      %v4607 = vmul.f32 -0.5, %v4351
      %v4608 = vadd.f32 %v4607, 1.0
      %v4609 = vmul.f32 %v4608, %v4351
      %v4610 = vand.u32 2147483647, %v4351
      %vm4611 = vcmp.lt.f32.partialorder %v4610, 0.0004427343
      %v4612 = vsel %vm4611, %v4609, %v4606
      %v4613 = vadd.f32 %v4353, 1.0
      %v4614 = vlog2.pop %v4613
      %v4615 = vmul.f32 %v4614, 0.6931472
      %v4616 = vmul.f32 -0.5, %v4353
      %v4617 = vadd.f32 %v4616, 1.0
      %v4618 = vmul.f32 %v4617, %v4353
      %v4619 = vand.u32 2147483647, %v4353
      %vm4620 = vcmp.lt.f32.partialorder %v4619, 0.0004427343
      %v4621 = vsel %vm4620, %v4618, %v4615
      %v4622 = vadd.f32 %v4355, 1.0
      %v4623 = vlog2.pop %v4622
      %v4624 = vmul.f32 %v4623, 0.6931472
      %v4625 = vmul.f32 -0.5, %v4355
      %v4626 = vadd.f32 %v4625, 1.0
      %v4627 = vmul.f32 %v4626, %v4355
      %v4628 = vand.u32 2147483647, %v4355
      %vm4629 = vcmp.lt.f32.partialorder %v4628, 0.0004427343
      %v4630 = vsel %vm4629, %v4627, %v4624
      %v4631 = vadd.f32 %v4357, 1.0
      %v4632 = vlog2.pop %v4631
      %v4633 = vmul.f32 %v4632, 0.6931472
      %v4634 = vmul.f32 -0.5, %v4357
      %v4635 = vadd.f32 %v4634, 1.0
      %v4636 = vmul.f32 %v4635, %v4357
      %v4637 = vand.u32 2147483647, %v4357
      %vm4638 = vcmp.lt.f32.partialorder %v4637, 0.0004427343
      %v4639 = vsel %vm4638, %v4636, %v4633
      %v4640 = vadd.f32 %v4359, 1.0
      %v4641 = vlog2.pop %v4640
      %v4642 = vmul.f32 %v4641, 0.6931472
      %v4643 = vmul.f32 -0.5, %v4359
      %v4644 = vadd.f32 %v4643, 1.0
      %v4645 = vmul.f32 %v4644, %v4359
      %v4646 = vand.u32 2147483647, %v4359
      %vm4647 = vcmp.lt.f32.partialorder %v4646, 0.0004427343
      %v4648 = vsel %vm4647, %v4645, %v4642
      %v4649 = vadd.f32 %v4361, 1.0
      %v4650 = vlog2.pop %v4649
      %v4651 = vmul.f32 %v4650, 0.6931472
      %v4652 = vmul.f32 -0.5, %v4361
      %v4653 = vadd.f32 %v4652, 1.0
      %v4654 = vmul.f32 %v4653, %v4361
      %v4655 = vand.u32 2147483647, %v4361
      %vm4656 = vcmp.lt.f32.partialorder %v4655, 0.0004427343
      %v4657 = vsel %vm4656, %v4654, %v4651
      %v4658 = vadd.f32 %v4363, 1.0
      %v4659 = vlog2.pop %v4658
      %v4660 = vmul.f32 %v4659, 0.6931472
      %v4661 = vmul.f32 -0.5, %v4363
      %v4662 = vadd.f32 %v4661, 1.0
      %v4663 = vmul.f32 %v4662, %v4363
      %v4664 = vand.u32 2147483647, %v4363
      %vm4665 = vcmp.lt.f32.partialorder %v4664, 0.0004427343
      %v4666 = vsel %vm4665, %v4663, %v4660
      %v4667 = vadd.f32 %v4365, 1.0
      %v4668 = vlog2.pop %v4667
      %v4669 = vmul.f32 %v4668, 0.6931472
      %v4670 = vmul.f32 -0.5, %v4365
      %v4671 = vadd.f32 %v4670, 1.0
      %v4672 = vmul.f32 %v4671, %v4365
      %v4673 = vand.u32 2147483647, %v4365
      %vm4674 = vcmp.lt.f32.partialorder %v4673, 0.0004427343
      %v4675 = vsel %vm4674, %v4672, %v4669
      %v4676 = vadd.f32 %v4367, 1.0
      %v4677 = vlog2.pop %v4676
      %v4678 = vmul.f32 %v4677, 0.6931472
      %v4679 = vmul.f32 -0.5, %v4367
      %v4680 = vadd.f32 %v4679, 1.0
      %v4681 = vmul.f32 %v4680, %v4367
      %v4682 = vand.u32 2147483647, %v4367
      %vm4683 = vcmp.lt.f32.partialorder %v4682, 0.0004427343
      %v4684 = vsel %vm4683, %v4681, %v4678
      %v4685 = vadd.f32 %v4369, 1.0
      %v4686 = vlog2.pop %v4685
      %v4687 = vmul.f32 %v4686, 0.6931472
      %v4688 = vmul.f32 -0.5, %v4369
      %v4689 = vadd.f32 %v4688, 1.0
      %v4690 = vmul.f32 %v4689, %v4369
      %v4691 = vand.u32 2147483647, %v4369
      %vm4692 = vcmp.lt.f32.partialorder %v4691, 0.0004427343
      %v4693 = vsel %vm4692, %v4690, %v4687
      %v4694 = vadd.f32 %v4371, 1.0
      %v4695 = vlog2.pop %v4694
      %v4696 = vmul.f32 %v4695, 0.6931472
      %v4697 = vmul.f32 -0.5, %v4371
      %v4698 = vadd.f32 %v4697, 1.0
      %v4699 = vmul.f32 %v4698, %v4371
      %v4700 = vand.u32 2147483647, %v4371
      %vm4701 = vcmp.lt.f32.partialorder %v4700, 0.0004427343
      %v4702 = vsel %vm4701, %v4699, %v4696
      %v4703 = vadd.f32 %v4373, 1.0
      %v4704 = vlog2.pop %v4703
      %v4705 = vmul.f32 %v4704, 0.6931472
      %v4706 = vmul.f32 -0.5, %v4373
      %v4707 = vadd.f32 %v4706, 1.0
      %v4708 = vmul.f32 %v4707, %v4373
      %v4709 = vand.u32 2147483647, %v4373
      %vm4710 = vcmp.lt.f32.partialorder %v4709, 0.0004427343
      %v4711 = vsel %vm4710, %v4708, %v4705
      %v4712 = vadd.f32 %v4375, 1.0
      %v4713 = vlog2.pop %v4712
      %v4714 = vmul.f32 %v4713, 0.6931472
      %v4715 = vmul.f32 -0.5, %v4375
      %v4716 = vadd.f32 %v4715, 1.0
      %v4717 = vmul.f32 %v4716, %v4375
      %v4718 = vand.u32 2147483647, %v4375
      %vm4719 = vcmp.lt.f32.partialorder %v4718, 0.0004427343
      %v4720 = vsel %vm4719, %v4717, %v4714
      %v4721 = vadd.f32 %v4377, 1.0
      %v4722 = vlog2.pop %v4721
      %v4723 = vmul.f32 %v4722, 0.6931472
      %v4724 = vmul.f32 -0.5, %v4377
      %v4725 = vadd.f32 %v4724, 1.0
      %v4726 = vmul.f32 %v4725, %v4377
      %v4727 = vand.u32 2147483647, %v4377
      %vm4728 = vcmp.lt.f32.partialorder %v4727, 0.0004427343
      %v4729 = vsel %vm4728, %v4726, %v4723
      %v4730 = vadd.f32 %v4379, 1.0
      %v4731 = vlog2.pop %v4730
      %v4732 = vmul.f32 %v4731, 0.6931472
      %v4733 = vmul.f32 -0.5, %v4379
      %v4734 = vadd.f32 %v4733, 1.0
      %v4735 = vmul.f32 %v4734, %v4379
      %v4736 = vand.u32 2147483647, %v4379
      %vm4737 = vcmp.lt.f32.partialorder %v4736, 0.0004427343
      %v4738 = vsel %vm4737, %v4735, %v4732
      %v4739 = vadd.f32 %v4381, 1.0
      %v4740 = vlog2.pop %v4739
      %v4741 = vmul.f32 %v4740, 0.6931472
      %v4742 = vmul.f32 -0.5, %v4381
      %v4743 = vadd.f32 %v4742, 1.0
      %v4744 = vmul.f32 %v4743, %v4381
      %v4745 = vand.u32 2147483647, %v4381
      %vm4746 = vcmp.lt.f32.partialorder %v4745, 0.0004427343
      %v4747 = vsel %vm4746, %v4744, %v4741
      %v4748 = vadd.f32 %v4383, 1.0
      %v4749 = vlog2.pop %v4748
      %v4750 = vmul.f32 %v4749, 0.6931472
      %v4751 = vmul.f32 -0.5, %v4383
      %v4752 = vadd.f32 %v4751, 1.0
      %v4753 = vmul.f32 %v4752, %v4383
      %v4754 = vand.u32 2147483647, %v4383
      %vm4755 = vcmp.lt.f32.partialorder %v4754, 0.0004427343
      %v4756 = vsel %vm4755, %v4753, %v4750
      %v4757 = vadd.f32 %v4385, 1.0
      %v4758 = vlog2.pop %v4757
      %v4759 = vmul.f32 %v4758, 0.6931472
      %v4760 = vmul.f32 -0.5, %v4385
      %v4761 = vadd.f32 %v4760, 1.0
      %v4762 = vmul.f32 %v4761, %v4385
      %v4763 = vand.u32 2147483647, %v4385
      %vm4764 = vcmp.lt.f32.partialorder %v4763, 0.0004427343
      %v4765 = vsel %vm4764, %v4762, %v4759
      %v4766 = vadd.f32 %v4387, 1.0
      %v4767 = vlog2.pop %v4766
      %v4768 = vmul.f32 %v4767, 0.6931472
      %v4769 = vmul.f32 -0.5, %v4387
      %v4770 = vadd.f32 %v4769, 1.0
      %v4771 = vmul.f32 %v4770, %v4387
      %v4772 = vand.u32 2147483647, %v4387
      %vm4773 = vcmp.lt.f32.partialorder %v4772, 0.0004427343
      %v4774 = vsel %vm4773, %v4771, %v4768
      %v4775 = vadd.f32 %v4389, 1.0
      %v4776 = vlog2.pop %v4775
      %v4777 = vmul.f32 %v4776, 0.6931472
      %v4778 = vmul.f32 -0.5, %v4389
      %v4779 = vadd.f32 %v4778, 1.0
      %v4780 = vmul.f32 %v4779, %v4389
      %v4781 = vand.u32 2147483647, %v4389
      %vm4782 = vcmp.lt.f32.partialorder %v4781, 0.0004427343
      %v4783 = vsel %vm4782, %v4780, %v4777
      %v4784 = vadd.f32 %v4391, 1.0
      %v4785 = vlog2.pop %v4784
      %v4786 = vmul.f32 %v4785, 0.6931472
      %v4787 = vmul.f32 -0.5, %v4391
      %v4788 = vadd.f32 %v4787, 1.0
      %v4789 = vmul.f32 %v4788, %v4391
      %v4790 = vand.u32 2147483647, %v4391
      %vm4791 = vcmp.lt.f32.partialorder %v4790, 0.0004427343
      %v4792 = vsel %vm4791, %v4789, %v4786
      %v4793 = vadd.f32 %v4393, 1.0
      %v4794 = vlog2.pop %v4793
      %v4795 = vmul.f32 %v4794, 0.6931472
      %v4796 = vmul.f32 -0.5, %v4393
      %v4797 = vadd.f32 %v4796, 1.0
      %v4798 = vmul.f32 %v4797, %v4393
      %v4799 = vand.u32 2147483647, %v4393
      %vm4800 = vcmp.lt.f32.partialorder %v4799, 0.0004427343
      %v4801 = vsel %vm4800, %v4798, %v4795
      %v4802 = vadd.f32 %v4395, 1.0
      %v4803 = vlog2.pop %v4802
      %v4804 = vmul.f32 %v4803, 0.6931472
      %v4805 = vmul.f32 -0.5, %v4395
      %v4806 = vadd.f32 %v4805, 1.0
      %v4807 = vmul.f32 %v4806, %v4395
      %v4808 = vand.u32 2147483647, %v4395
      %vm4809 = vcmp.lt.f32.partialorder %v4808, 0.0004427343
      %v4810 = vsel %vm4809, %v4807, %v4804
      %v4811 = vadd.f32 %v4397, 1.0
      %v4812 = vlog2.pop %v4811
      %v4813 = vmul.f32 %v4812, 0.6931472
      %v4814 = vmul.f32 -0.5, %v4397
      %v4815 = vadd.f32 %v4814, 1.0
      %v4816 = vmul.f32 %v4815, %v4397
      %v4817 = vand.u32 2147483647, %v4397
      %vm4818 = vcmp.lt.f32.partialorder %v4817, 0.0004427343
      %v4819 = vsel %vm4818, %v4816, %v4813
      %v4820 = vadd.f32 %v4399, 1.0
      %v4821 = vlog2.pop %v4820
      %v4822 = vmul.f32 %v4821, 0.6931472
      %v4823 = vmul.f32 -0.5, %v4399
      %v4824 = vadd.f32 %v4823, 1.0
      %v4825 = vmul.f32 %v4824, %v4399
      %v4826 = vand.u32 2147483647, %v4399
      %vm4827 = vcmp.lt.f32.partialorder %v4826, 0.0004427343
      %v4828 = vsel %vm4827, %v4825, %v4822
      %v4829 = vadd.f32 %v4401, 1.0
      %v4830 = vlog2.pop %v4829
      %v4831 = vmul.f32 %v4830, 0.6931472
      %v4832 = vmul.f32 -0.5, %v4401
      %v4833 = vadd.f32 %v4832, 1.0
      %v4834 = vmul.f32 %v4833, %v4401
      %v4835 = vand.u32 2147483647, %v4401
      %vm4836 = vcmp.lt.f32.partialorder %v4835, 0.0004427343
      %v4837 = vsel %vm4836, %v4834, %v4831
      %v4838 = vadd.f32 %v4403, 1.0
      %v4839 = vlog2.pop %v4838
      %v4840 = vmul.f32 %v4839, 0.6931472
      %v4841 = vmul.f32 -0.5, %v4403
      %v4842 = vadd.f32 %v4841, 1.0
      %v4843 = vmul.f32 %v4842, %v4403
      %v4844 = vand.u32 2147483647, %v4403
      %vm4845 = vcmp.lt.f32.partialorder %v4844, 0.0004427343
      %v4846 = vsel %vm4845, %v4843, %v4840
      %v4847 = vadd.f32 %v4405, 1.0
      %v4848 = vlog2.pop %v4847
      %v4849 = vmul.f32 %v4848, 0.6931472
      %v4850 = vmul.f32 -0.5, %v4405
      %v4851 = vadd.f32 %v4850, 1.0
      %v4852 = vmul.f32 %v4851, %v4405
      %v4853 = vand.u32 2147483647, %v4405
      %vm4854 = vcmp.lt.f32.partialorder %v4853, 0.0004427343
      %v4855 = vsel %vm4854, %v4852, %v4849
      %v4856 = vadd.f32 %v4407, 1.0
      %v4857 = vlog2.pop %v4856
      %v4858 = vmul.f32 %v4857, 0.6931472
      %v4859 = vmul.f32 -0.5, %v4407
      %v4860 = vadd.f32 %v4859, 1.0
      %v4861 = vmul.f32 %v4860, %v4407
      %v4862 = vand.u32 2147483647, %v4407
      %vm4863 = vcmp.lt.f32.partialorder %v4862, 0.0004427343
      %v4864 = vsel %vm4863, %v4861, %v4858
      %v4865 = vadd.f32 %v4409, 1.0
      %v4866 = vlog2.pop %v4865
      %v4867 = vmul.f32 %v4866, 0.6931472
      %v4868 = vmul.f32 -0.5, %v4409
      %v4869 = vadd.f32 %v4868, 1.0
      %v4870 = vmul.f32 %v4869, %v4409
      %v4871 = vand.u32 2147483647, %v4409
      %vm4872 = vcmp.lt.f32.partialorder %v4871, 0.0004427343
      %v4873 = vsel %vm4872, %v4870, %v4867
      %v4874 = vadd.f32 %v4411, 1.0
      %v4875 = vlog2.pop %v4874
      %v4876 = vmul.f32 %v4875, 0.6931472
      %v4877 = vmul.f32 -0.5, %v4411
      %v4878 = vadd.f32 %v4877, 1.0
      %v4879 = vmul.f32 %v4878, %v4411
      %v4880 = vand.u32 2147483647, %v4411
      %vm4881 = vcmp.lt.f32.partialorder %v4880, 0.0004427343
      %v4882 = vsel %vm4881, %v4879, %v4876
      %v4883 = vadd.f32 %v4413, 1.0
      %v4884 = vlog2.pop %v4883
      %v4885 = vmul.f32 %v4884, 0.6931472
      %v4886 = vmul.f32 -0.5, %v4413
      %v4887 = vadd.f32 %v4886, 1.0
      %v4888 = vmul.f32 %v4887, %v4413
      %v4889 = vand.u32 2147483647, %v4413
      %vm4890 = vcmp.lt.f32.partialorder %v4889, 0.0004427343
      %v4891 = vsel %vm4890, %v4888, %v4885
      %v4892 = vadd.f32 %v4415, 1.0
      %v4893 = vlog2.pop %v4892
      %v4894 = vmul.f32 %v4893, 0.6931472
      %v4895 = vmul.f32 -0.5, %v4415
      %v4896 = vadd.f32 %v4895, 1.0
      %v4897 = vmul.f32 %v4896, %v4415
      %v4898 = vand.u32 2147483647, %v4415
      %vm4899 = vcmp.lt.f32.partialorder %v4898, 0.0004427343
      %v4900 = vsel %vm4899, %v4897, %v4894
      %v4901 = vadd.f32 %v4417, 1.0
      %v4902 = vlog2.pop %v4901
      %v4903 = vmul.f32 %v4902, 0.6931472
      %v4904 = vmul.f32 -0.5, %v4417
      %v4905 = vadd.f32 %v4904, 1.0
      %v4906 = vmul.f32 %v4905, %v4417
      %v4907 = vand.u32 2147483647, %v4417
      %vm4908 = vcmp.lt.f32.partialorder %v4907, 0.0004427343
      %v4909 = vsel %vm4908, %v4906, %v4903
      %v4910 = vadd.f32 %v4419, 1.0
      %v4911 = vlog2.pop %v4910
      %v4912 = vmul.f32 %v4911, 0.6931472
      %v4913 = vmul.f32 -0.5, %v4419
      %v4914 = vadd.f32 %v4913, 1.0
      %v4915 = vmul.f32 %v4914, %v4419
      %v4916 = vand.u32 2147483647, %v4419
      %vm4917 = vcmp.lt.f32.partialorder %v4916, 0.0004427343
      %v4918 = vsel %vm4917, %v4915, %v4912
      %v4919 = vadd.f32 %v4421, 1.0
      %v4920 = vlog2.pop %v4919
      %v4921 = vmul.f32 %v4920, 0.6931472
      %v4922 = vmul.f32 -0.5, %v4421
      %v4923 = vadd.f32 %v4922, 1.0
      %v4924 = vmul.f32 %v4923, %v4421
      %v4925 = vand.u32 2147483647, %v4421
      %vm4926 = vcmp.lt.f32.partialorder %v4925, 0.0004427343
      %v4927 = vsel %vm4926, %v4924, %v4921
      %v4928 = vadd.f32 %v4423, 1.0
      %v4929 = vlog2.pop %v4928
      %v4930 = vmul.f32 %v4929, 0.6931472
      %v4931 = vmul.f32 -0.5, %v4423
      %v4932 = vadd.f32 %v4931, 1.0
      %v4933 = vmul.f32 %v4932, %v4423
      %v4934 = vand.u32 2147483647, %v4423
      %vm4935 = vcmp.lt.f32.partialorder %v4934, 0.0004427343
      %v4936 = vsel %vm4935, %v4933, %v4930
      %v4937 = vadd.f32 %v4425, 1.0
      %v4938 = vlog2.pop %v4937
      %v4939 = vmul.f32 %v4938, 0.6931472
      %v4940 = vmul.f32 -0.5, %v4425
      %v4941 = vadd.f32 %v4940, 1.0
      %v4942 = vmul.f32 %v4941, %v4425
      %v4943 = vand.u32 2147483647, %v4425
      %vm4944 = vcmp.lt.f32.partialorder %v4943, 0.0004427343
      %v4945 = vsel %vm4944, %v4942, %v4939
      %v4946 = vadd.f32 %v4427, 1.0
      %v4947 = vlog2.pop %v4946
      %v4948 = vmul.f32 %v4947, 0.6931472
      %v4949 = vmul.f32 -0.5, %v4427
      %v4950 = vadd.f32 %v4949, 1.0
      %v4951 = vmul.f32 %v4950, %v4427
      %v4952 = vand.u32 2147483647, %v4427
      %vm4953 = vcmp.lt.f32.partialorder %v4952, 0.0004427343
      %v4954 = vsel %vm4953, %v4951, %v4948
      %v4955 = vadd.f32 %v4429, 1.0
      %v4956 = vlog2.pop %v4955
      %v4957 = vmul.f32 %v4956, 0.6931472
      %v4958 = vmul.f32 -0.5, %v4429
      %v4959 = vadd.f32 %v4958, 1.0
      %v4960 = vmul.f32 %v4959, %v4429
      %v4961 = vand.u32 2147483647, %v4429
      %vm4962 = vcmp.lt.f32.partialorder %v4961, 0.0004427343
      %v4963 = vsel %vm4962, %v4960, %v4957
      %v4964 = vadd.f32 %v4431, 1.0
      %v4965 = vlog2.pop %v4964
      %v4966 = vmul.f32 %v4965, 0.6931472
      %v4967 = vmul.f32 -0.5, %v4431
      %v4968 = vadd.f32 %v4967, 1.0
      %v4969 = vmul.f32 %v4968, %v4431
      %v4970 = vand.u32 2147483647, %v4431
      %vm4971 = vcmp.lt.f32.partialorder %v4970, 0.0004427343
      %v4972 = vsel %vm4971, %v4969, %v4966
      %v4973 = vadd.f32 %v4433, 1.0
      %v4974 = vlog2.pop %v4973
      %v4975 = vmul.f32 %v4974, 0.6931472
      %v4976 = vmul.f32 -0.5, %v4433
      %v4977 = vadd.f32 %v4976, 1.0
      %v4978 = vmul.f32 %v4977, %v4433
      %v4979 = vand.u32 2147483647, %v4433
      %vm4980 = vcmp.lt.f32.partialorder %v4979, 0.0004427343
      %v4981 = vsel %vm4980, %v4978, %v4975
      %v4982 = vadd.f32 %v4435, 1.0
      %v4983 = vlog2.pop %v4982
      %v4984 = vmul.f32 %v4983, 0.6931472
      %v4985 = vmul.f32 -0.5, %v4435
      %v4986 = vadd.f32 %v4985, 1.0
      %v4987 = vmul.f32 %v4986, %v4435
      %v4988 = vand.u32 2147483647, %v4435
      %vm4989 = vcmp.lt.f32.partialorder %v4988, 0.0004427343
      %v4990 = vsel %vm4989, %v4987, %v4984
      %v4991 = vadd.f32 %v4437, 1.0
      %v4992 = vlog2.pop %v4991
      %v4993 = vmul.f32 %v4992, 0.6931472
      %v4994 = vmul.f32 -0.5, %v4437
      %v4995 = vadd.f32 %v4994, 1.0
      %v4996 = vmul.f32 %v4995, %v4437
      %v4997 = vand.u32 2147483647, %v4437
      %vm4998 = vcmp.lt.f32.partialorder %v4997, 0.0004427343
      %v4999 = vsel %vm4998, %v4996, %v4993
      %v5000 = vadd.f32 %v4439, 1.0
      %v5001 = vlog2.pop %v5000
      %v5002 = vmul.f32 %v5001, 0.6931472
      %v5003 = vmul.f32 -0.5, %v4439
      %v5004 = vadd.f32 %v5003, 1.0
      %v5005 = vmul.f32 %v5004, %v4439
      %v5006 = vand.u32 2147483647, %v4439
      %vm5007 = vcmp.lt.f32.partialorder %v5006, 0.0004427343
      %v5008 = vsel %vm5007, %v5005, %v5002
      %v5009 = vadd.f32 %v4441, 1.0
      %v5010 = vlog2.pop %v5009
      %v5011 = vmul.f32 %v5010, 0.6931472
      %v5012 = vmul.f32 -0.5, %v4441
      %v5013 = vadd.f32 %v5012, 1.0
      %v5014 = vmul.f32 %v5013, %v4441
      %v5015 = vand.u32 2147483647, %v4441
      %vm5016 = vcmp.lt.f32.partialorder %v5015, 0.0004427343
      %v5017 = vsel %vm5016, %v5014, %v5011
      %v5018 = vmul.f32 %v4450, 0.01
      %v5019 = vmul.f32 %v4459, 0.01
      %v5020 = vmul.f32 %v4468, 0.01
      %v5021 = vmul.f32 %v4477, 0.01
      %v5022 = vmul.f32 %v4486, 0.01
      %v5023 = vmul.f32 %v4495, 0.01
      %v5024 = vmul.f32 %v4504, 0.01
      %v5025 = vmul.f32 %v4513, 0.01
      %v5026 = vmul.f32 %v4522, 0.01
      %v5027 = vmul.f32 %v4531, 0.01
      %v5028 = vmul.f32 %v4540, 0.01
      %v5029 = vmul.f32 %v4549, 0.01
      %v5030 = vmul.f32 %v4558, 0.01
      %v5031 = vmul.f32 %v4567, 0.01
      %v5032 = vmul.f32 %v4576, 0.01
      %v5033 = vmul.f32 %v4585, 0.01
      %v5034 = vmul.f32 %v4594, 0.01
      %v5035 = vmul.f32 %v4603, 0.01
      %v5036 = vmul.f32 %v4612, 0.01
      %v5037 = vmul.f32 %v4621, 0.01
      %v5038 = vmul.f32 %v4630, 0.01
      %v5039 = vmul.f32 %v4639, 0.01
      %v5040 = vmul.f32 %v4648, 0.01
      %v5041 = vmul.f32 %v4657, 0.01
      %v5042 = vmul.f32 %v4666, 0.01
      %v5043 = vmul.f32 %v4675, 0.01
      %v5044 = vmul.f32 %v4684, 0.01
      %v5045 = vmul.f32 %v4693, 0.01
      %v5046 = vmul.f32 %v4702, 0.01
      %v5047 = vmul.f32 %v4711, 0.01
      %v5048 = vmul.f32 %v4720, 0.01
      %v5049 = vmul.f32 %v4729, 0.01
      %v5050 = vmul.f32 %v4738, 0.01
      %v5051 = vmul.f32 %v4747, 0.01
      %v5052 = vmul.f32 %v4756, 0.01
      %v5053 = vmul.f32 %v4765, 0.01
      %v5054 = vmul.f32 %v4774, 0.01
      %v5055 = vmul.f32 %v4783, 0.01
      %v5056 = vmul.f32 %v4792, 0.01
      %v5057 = vmul.f32 %v4801, 0.01
      %v5058 = vmul.f32 %v4810, 0.01
      %v5059 = vmul.f32 %v4819, 0.01
      %v5060 = vmul.f32 %v4828, 0.01
      %v5061 = vmul.f32 %v4837, 0.01
      %v5062 = vmul.f32 %v4846, 0.01
      %v5063 = vmul.f32 %v4855, 0.01
      %v5064 = vmul.f32 %v4864, 0.01
      %v5065 = vmul.f32 %v4873, 0.01
      %v5066 = vmul.f32 %v4882, 0.01
      %v5067 = vmul.f32 %v4891, 0.01
      %v5068 = vmul.f32 %v4900, 0.01
      %v5069 = vmul.f32 %v4909, 0.01
      %v5070 = vmul.f32 %v4918, 0.01
      %v5071 = vmul.f32 %v4927, 0.01
      %v5072 = vmul.f32 %v4936, 0.01
      %v5073 = vmul.f32 %v4945, 0.01
      %v5074 = vmul.f32 %v4954, 0.01
      %v5075 = vmul.f32 %v4963, 0.01
      %v5076 = vmul.f32 %v4972, 0.01
      %v5077 = vmul.f32 %v4981, 0.01
      %v5078 = vmul.f32 %v4990, 0.01
      %v5079 = vmul.f32 %v4999, 0.01
      %v5080 = vmul.f32 %v5008, 0.01
      %v5081 = vmul.f32 %v5017, 0.01
      %v5082 = vadd.f32 %v4186, %v5018
      %v5083 = vadd.f32 %v4187, %v5019
      %v5084 = vadd.f32 %v4188, %v5020
      %v5085 = vadd.f32 %v4189, %v5021
      %v5086 = vadd.f32 %v4190, %v5022
      %v5087 = vadd.f32 %v4191, %v5023
      %v5088 = vadd.f32 %v4192, %v5024
      %v5089 = vadd.f32 %v4193, %v5025
      %v5090 = vadd.f32 %v4194, %v5026
      %v5091 = vadd.f32 %v4195, %v5027
      %v5092 = vadd.f32 %v4196, %v5028
      %v5093 = vadd.f32 %v4197, %v5029
      %v5094 = vadd.f32 %v4198, %v5030
      %v5095 = vadd.f32 %v4199, %v5031
      %v5096 = vadd.f32 %v4200, %v5032
      %v5097 = vadd.f32 %v4201, %v5033
      %v5098 = vadd.f32 %v4202, %v5034
      %v5099 = vadd.f32 %v4203, %v5035
      %v5100 = vadd.f32 %v4204, %v5036
      %v5101 = vadd.f32 %v4205, %v5037
      %v5102 = vadd.f32 %v4206, %v5038
      %v5103 = vadd.f32 %v4207, %v5039
      %v5104 = vadd.f32 %v4208, %v5040
      %v5105 = vadd.f32 %v4209, %v5041
      %v5106 = vadd.f32 %v4210, %v5042
      %v5107 = vadd.f32 %v4211, %v5043
      %v5108 = vadd.f32 %v4212, %v5044
      %v5109 = vadd.f32 %v4213, %v5045
      %v5110 = vadd.f32 %v4214, %v5046
      %v5111 = vadd.f32 %v4215, %v5047
      %v5112 = vadd.f32 %v4216, %v5048
      %v5113 = vadd.f32 %v4217, %v5049
      %v5114 = vadd.f32 %v4218, %v5050
      %v5115 = vadd.f32 %v4219, %v5051
      %v5116 = vadd.f32 %v4220, %v5052
      %v5117 = vadd.f32 %v4221, %v5053
      %v5118 = vadd.f32 %v4222, %v5054
      %v5119 = vadd.f32 %v4223, %v5055
      %v5120 = vadd.f32 %v4224, %v5056
      %v5121 = vadd.f32 %v4225, %v5057
      %v5122 = vadd.f32 %v4226, %v5058
      %v5123 = vadd.f32 %v4227, %v5059
      %v5124 = vadd.f32 %v4228, %v5060
      %v5125 = vadd.f32 %v4229, %v5061
      %v5126 = vadd.f32 %v4230, %v5062
      %v5127 = vadd.f32 %v4231, %v5063
      %v5128 = vadd.f32 %v4232, %v5064
      %v5129 = vadd.f32 %v4233, %v5065
      %v5130 = vadd.f32 %v4234, %v5066
      %v5131 = vadd.f32 %v4235, %v5067
      %v5132 = vadd.f32 %v4236, %v5068
      %v5133 = vadd.f32 %v4237, %v5069
      %v5134 = vadd.f32 %v4238, %v5070
      %v5135 = vadd.f32 %v4239, %v5071
      %v5136 = vadd.f32 %v4240, %v5072
      %v5137 = vadd.f32 %v4241, %v5073
      %v5138 = vadd.f32 %v4242, %v5074
      %v5139 = vadd.f32 %v4243, %v5075
      %v5140 = vadd.f32 %v4244, %v5076
      %v5141 = vadd.f32 %v4245, %v5077
      %v5142 = vadd.f32 %v4246, %v5078
      %v5143 = vadd.f32 %v4247, %v5079
      %v5144 = vadd.f32 %v4248, %v5080
      %v5145 = vadd.f32 %v4249, %v5081
      %v5146 = vpack.c.bf16 %v5083, %v5082
      %v5147 = vpack.c.bf16 %v5085, %v5084
      %v5148 = vpack.c.bf16 %v5087, %v5086
      %v5149 = vpack.c.bf16 %v5089, %v5088
      %v5150 = vpack.c.bf16 %v5091, %v5090
      %v5151 = vpack.c.bf16 %v5093, %v5092
      %v5152 = vpack.c.bf16 %v5095, %v5094
      %v5153 = vpack.c.bf16 %v5097, %v5096
      %v5154 = vpack.c.bf16 %v5099, %v5098
      %v5155 = vpack.c.bf16 %v5101, %v5100
      %v5156 = vpack.c.bf16 %v5103, %v5102
      %v5157 = vpack.c.bf16 %v5105, %v5104
      %v5158 = vpack.c.bf16 %v5107, %v5106
      %v5159 = vpack.c.bf16 %v5109, %v5108
      %v5160 = vpack.c.bf16 %v5111, %v5110
      %v5161 = vpack.c.bf16 %v5113, %v5112
      %v5162 = vpack.c.bf16 %v5115, %v5114
      %v5163 = vpack.c.bf16 %v5117, %v5116
      %v5164 = vpack.c.bf16 %v5119, %v5118
      %v5165 = vpack.c.bf16 %v5121, %v5120
      %v5166 = vpack.c.bf16 %v5123, %v5122
      %v5167 = vpack.c.bf16 %v5125, %v5124
      %v5168 = vpack.c.bf16 %v5127, %v5126
      %v5169 = vpack.c.bf16 %v5129, %v5128
      %v5170 = vpack.c.bf16 %v5131, %v5130
      %v5171 = vpack.c.bf16 %v5133, %v5132
      %v5172 = vpack.c.bf16 %v5135, %v5134
      %v5173 = vpack.c.bf16 %v5137, %v5136
      %v5174 = vpack.c.bf16 %v5139, %v5138
      %v5175 = vpack.c.bf16 %v5141, %v5140
      %v5176 = vpack.c.bf16 %v5143, %v5142
      %v5177 = vpack.c.bf16 %v5145, %v5144
      %v5178 = vld [vmem:[%s7] sm:$0xf]
      %v5179 = vld [vmem:[%s7 + $0x4] sm:$0xf]
      %v5180 = vld [vmem:[%s7 + $0x8] sm:$0xf]
      %v5181 = vld [vmem:[%s7 + $0xc] sm:$0xf]
      %v5182 = vld [vmem:[%s7 + $0x10] sm:$0xf]
      %v5183 = vld [vmem:[%s7 + $0x14] sm:$0xf]
      %v5184 = vld [vmem:[%s7 + $0x18] sm:$0xf]
      %v5185 = vld [vmem:[%s7 + $0x1c] sm:$0xf]
      %v5186 = vld [vmem:[%s8] sm:$0x1]
      %v5188 = vperm.slane %v5186, 0
      %v5198 = vunpack.c.l.b16 %v5178
      %v5199 = vunpack.c.l.b16 %v5179
      %v5200 = vunpack.c.l.b16 %v5180
      %v5201 = vunpack.c.l.b16 %v5181
      %v5202 = vunpack.c.l.b16 %v5182
      %v5203 = vunpack.c.l.b16 %v5183
      %v5204 = vunpack.c.l.b16 %v5184
      %v5205 = vunpack.c.l.b16 %v5185
      %v5206 = vpack.c.b16 %v5199, %v5198
      %v5207 = vpack.c.b16 %v5201, %v5200
      %v5208 = vpack.c.b16 %v5203, %v5202
      %v5209 = vpack.c.b16 %v5205, %v5204
      %v5215 = vsel %vm2067, %v5146, 0
      %v5218 = vsel %vm2067, %v5147, 0
      %v5221 = vsel %vm2067, %v5148, 0
      %v5224 = vsel %vm2067, %v5149, 0
      %v5227 = vsel %vm2067, %v5150, 0
      %v5230 = vsel %vm2067, %v5151, 0
      %v5233 = vsel %vm2067, %v5152, 0
      %v5236 = vsel %vm2067, %v5153, 0
      %v5239 = vsel %vm2067, %v5154, 0
      %v5242 = vsel %vm2067, %v5155, 0
      %v5245 = vsel %vm2067, %v5156, 0
      %v5248 = vsel %vm2067, %v5157, 0
      %v5251 = vsel %vm2067, %v5158, 0
      %v5254 = vsel %vm2067, %v5159, 0
      %v5257 = vsel %vm2067, %v5160, 0
      %v5260 = vsel %vm2067, %v5161, 0
      %v5263 = vsel %vm2067, %v5162, 0
      %v5266 = vsel %vm2067, %v5163, 0
      %v5269 = vsel %vm2067, %v5164, 0
      %v5272 = vsel %vm2067, %v5165, 0
      %v5275 = vsel %vm2067, %v5166, 0
      %v5278 = vsel %vm2067, %v5167, 0
      %v5281 = vsel %vm2067, %v5168, 0
      %v5284 = vsel %vm2067, %v5169, 0
      %v5287 = vsel %vm2067, %v5170, 0
      %v5290 = vsel %vm2067, %v5171, 0
      %v5293 = vsel %vm2067, %v5172, 0
      %v5296 = vsel %vm2067, %v5173, 0
      %v5299 = vsel %vm2067, %v5174, 0
      %v5302 = vsel %vm2067, %v5175, 0
      %v5305 = vsel %vm2067, %v5176, 0
      %v5308 = vsel %vm2067, %v5177, 0
      %5310 = vmatpush.bf16.msra.mxu0 0
      %5311 = vmatpush.bf16.msra.mxu0 0
      %5312 = vmatpush.bf16.msra.mxu0 0
      %5313 = vmatpush.bf16.msra.mxu0 0
      %5314 = vmatpush.bf16.msra.mxu0 %v5209
      %5315 = vmatpush.bf16.msra.mxu0 %v5208
      %5316 = vmatpush.bf16.msra.mxu0 %v5207
      %5317 = vmatpush.bf16.msra.mxu0 %v5206
      %5318 = vmatmul.bf16.gmra.mxu0 %v5215
      %v5319 = vpop.f32.mrf.mxu0
      %v5320 = vadd.f32 %v5188, %v5319
      %v5321 = vpop.f32.mrf.mxu0
      %v5322 = vadd.f32 %v5188, %v5321
      %5323 = vmatmul.bf16.gmra.mxu0 %v5218
      %v5324 = vpop.f32.mrf.mxu0
      %v5325 = vadd.f32 %v5188, %v5324
      %v5326 = vpop.f32.mrf.mxu0
      %v5327 = vadd.f32 %v5188, %v5326
      %5328 = vmatmul.bf16.gmra.mxu0 %v5221
      %v5329 = vpop.f32.mrf.mxu0
      %v5330 = vadd.f32 %v5188, %v5329
      %v5331 = vpop.f32.mrf.mxu0
      %v5332 = vadd.f32 %v5188, %v5331
      %5333 = vmatmul.bf16.gmra.mxu0 %v5224
      %v5334 = vpop.f32.mrf.mxu0
      %v5335 = vadd.f32 %v5188, %v5334
      %v5336 = vpop.f32.mrf.mxu0
      %v5337 = vadd.f32 %v5188, %v5336
      %5338 = vmatmul.bf16.gmra.mxu0 %v5227
      %v5339 = vpop.f32.mrf.mxu0
      %v5340 = vadd.f32 %v5188, %v5339
      %v5341 = vpop.f32.mrf.mxu0
      %v5342 = vadd.f32 %v5188, %v5341
      %5343 = vmatmul.bf16.gmra.mxu0 %v5230
      %v5344 = vpop.f32.mrf.mxu0
      %v5345 = vadd.f32 %v5188, %v5344
      %v5346 = vpop.f32.mrf.mxu0
      %v5347 = vadd.f32 %v5188, %v5346
      %5348 = vmatmul.bf16.gmra.mxu0 %v5233
      %v5349 = vpop.f32.mrf.mxu0
      %v5350 = vadd.f32 %v5188, %v5349
      %v5351 = vpop.f32.mrf.mxu0
      %v5352 = vadd.f32 %v5188, %v5351
      %5353 = vmatmul.bf16.gmra.mxu0 %v5236
      %v5354 = vpop.f32.mrf.mxu0
      %v5355 = vadd.f32 %v5188, %v5354
      %v5356 = vpop.f32.mrf.mxu0
      %v5357 = vadd.f32 %v5188, %v5356
      %5358 = vmatmul.bf16.gmra.mxu0 %v5239
      %v5359 = vpop.f32.mrf.mxu0
      %v5360 = vadd.f32 %v5188, %v5359
      %v5361 = vpop.f32.mrf.mxu0
      %v5362 = vadd.f32 %v5188, %v5361
      %5363 = vmatmul.bf16.gmra.mxu0 %v5242
      %v5364 = vpop.f32.mrf.mxu0
      %v5365 = vadd.f32 %v5188, %v5364
      %v5366 = vpop.f32.mrf.mxu0
      %v5367 = vadd.f32 %v5188, %v5366
      %5368 = vmatmul.bf16.gmra.mxu0 %v5245
      %v5369 = vpop.f32.mrf.mxu0
      %v5370 = vadd.f32 %v5188, %v5369
      %v5371 = vpop.f32.mrf.mxu0
      %v5372 = vadd.f32 %v5188, %v5371
      %5373 = vmatmul.bf16.gmra.mxu0 %v5248
      %v5374 = vpop.f32.mrf.mxu0
      %v5375 = vadd.f32 %v5188, %v5374
      %v5376 = vpop.f32.mrf.mxu0
      %v5377 = vadd.f32 %v5188, %v5376
      %5378 = vmatmul.bf16.gmra.mxu0 %v5251
      %v5379 = vpop.f32.mrf.mxu0
      %v5380 = vadd.f32 %v5188, %v5379
      %v5381 = vpop.f32.mrf.mxu0
      %v5382 = vadd.f32 %v5188, %v5381
      %5383 = vmatmul.bf16.gmra.mxu0 %v5254
      %v5384 = vpop.f32.mrf.mxu0
      %v5385 = vadd.f32 %v5188, %v5384
      %v5386 = vpop.f32.mrf.mxu0
      %v5387 = vadd.f32 %v5188, %v5386
      %5388 = vmatmul.bf16.gmra.mxu0 %v5257
      %v5389 = vpop.f32.mrf.mxu0
      %v5390 = vadd.f32 %v5188, %v5389
      %v5391 = vpop.f32.mrf.mxu0
      %v5392 = vadd.f32 %v5188, %v5391
      %5393 = vmatmul.bf16.gmra.mxu0 %v5260
      %v5394 = vpop.f32.mrf.mxu0
      %v5395 = vadd.f32 %v5188, %v5394
      %v5396 = vpop.f32.mrf.mxu0
      %v5397 = vadd.f32 %v5188, %v5396
      %5398 = vmatmul.bf16.gmra.mxu0 %v5263
      %v5399 = vpop.f32.mrf.mxu0
      %v5400 = vadd.f32 %v5188, %v5399
      %v5401 = vpop.f32.mrf.mxu0
      %v5402 = vadd.f32 %v5188, %v5401
      %5403 = vmatmul.bf16.gmra.mxu0 %v5266
      %v5404 = vpop.f32.mrf.mxu0
      %v5405 = vadd.f32 %v5188, %v5404
      %v5406 = vpop.f32.mrf.mxu0
      %v5407 = vadd.f32 %v5188, %v5406
      %5408 = vmatmul.bf16.gmra.mxu0 %v5269
      %v5409 = vpop.f32.mrf.mxu0
      %v5410 = vadd.f32 %v5188, %v5409
      %v5411 = vpop.f32.mrf.mxu0
      %v5412 = vadd.f32 %v5188, %v5411
      %5413 = vmatmul.bf16.gmra.mxu0 %v5272
      %v5414 = vpop.f32.mrf.mxu0
      %v5415 = vadd.f32 %v5188, %v5414
      %v5416 = vpop.f32.mrf.mxu0
      %v5417 = vadd.f32 %v5188, %v5416
      %5418 = vmatmul.bf16.gmra.mxu0 %v5275
      %v5419 = vpop.f32.mrf.mxu0
      %v5420 = vadd.f32 %v5188, %v5419
      %v5421 = vpop.f32.mrf.mxu0
      %v5422 = vadd.f32 %v5188, %v5421
      %5423 = vmatmul.bf16.gmra.mxu0 %v5278
      %v5424 = vpop.f32.mrf.mxu0
      %v5425 = vadd.f32 %v5188, %v5424
      %v5426 = vpop.f32.mrf.mxu0
      %v5427 = vadd.f32 %v5188, %v5426
      %5428 = vmatmul.bf16.gmra.mxu0 %v5281
      %v5429 = vpop.f32.mrf.mxu0
      %v5430 = vadd.f32 %v5188, %v5429
      %v5431 = vpop.f32.mrf.mxu0
      %v5432 = vadd.f32 %v5188, %v5431
      %5433 = vmatmul.bf16.gmra.mxu0 %v5284
      %v5434 = vpop.f32.mrf.mxu0
      %v5435 = vadd.f32 %v5188, %v5434
      %v5436 = vpop.f32.mrf.mxu0
      %v5437 = vadd.f32 %v5188, %v5436
      %5438 = vmatmul.bf16.gmra.mxu0 %v5287
      %v5439 = vpop.f32.mrf.mxu0
      %v5440 = vadd.f32 %v5188, %v5439
      %v5441 = vpop.f32.mrf.mxu0
      %v5442 = vadd.f32 %v5188, %v5441
      %5443 = vmatmul.bf16.gmra.mxu0 %v5290
      %v5444 = vpop.f32.mrf.mxu0
      %v5445 = vadd.f32 %v5188, %v5444
      %v5446 = vpop.f32.mrf.mxu0
      %v5447 = vadd.f32 %v5188, %v5446
      %5448 = vmatmul.bf16.gmra.mxu0 %v5293
      %v5449 = vpop.f32.mrf.mxu0
      %v5450 = vadd.f32 %v5188, %v5449
      %v5451 = vpop.f32.mrf.mxu0
      %v5452 = vadd.f32 %v5188, %v5451
      %5453 = vmatmul.bf16.gmra.mxu0 %v5296
      %v5454 = vpop.f32.mrf.mxu0
      %v5455 = vadd.f32 %v5188, %v5454
      %v5456 = vpop.f32.mrf.mxu0
      %v5457 = vadd.f32 %v5188, %v5456
      %5458 = vmatmul.bf16.gmra.mxu0 %v5299
      %v5459 = vpop.f32.mrf.mxu0
      %v5460 = vadd.f32 %v5188, %v5459
      %v5461 = vpop.f32.mrf.mxu0
      %v5462 = vadd.f32 %v5188, %v5461
      %5463 = vmatmul.bf16.gmra.mxu0 %v5302
      %v5464 = vpop.f32.mrf.mxu0
      %v5465 = vadd.f32 %v5188, %v5464
      %v5466 = vpop.f32.mrf.mxu0
      %v5467 = vadd.f32 %v5188, %v5466
      %5468 = vmatmul.bf16.gmra.mxu0 %v5305
      %v5469 = vpop.f32.mrf.mxu0
      %v5470 = vadd.f32 %v5188, %v5469
      %v5471 = vpop.f32.mrf.mxu0
      %v5472 = vadd.f32 %v5188, %v5471
      %5473 = vmatmul.bf16.gmra.mxu0 %v5308
      %v5474 = vpop.f32.mrf.mxu0
      %v5475 = vadd.f32 %v5188, %v5474
      %v5476 = vpop.f32.mrf.mxu0
      %v5477 = vadd.f32 %v5188, %v5476
      %5478 = vdwg.mxu0
      %v5479 = vpack.c.bf16 %v5320, %v5320
      %v5480 = vpack.c.bf16 %v5322, %v5322
      %v5481 = vpack.c.bf16 %v5325, %v5325
      %v5482 = vpack.c.bf16 %v5327, %v5327
      %v5483 = vpack.c.bf16 %v5330, %v5330
      %v5484 = vpack.c.bf16 %v5332, %v5332
      %v5485 = vpack.c.bf16 %v5335, %v5335
      %v5486 = vpack.c.bf16 %v5337, %v5337
      %v5487 = vpack.c.bf16 %v5340, %v5340
      %v5488 = vpack.c.bf16 %v5342, %v5342
      %v5489 = vpack.c.bf16 %v5345, %v5345
      %v5490 = vpack.c.bf16 %v5347, %v5347
      %v5491 = vpack.c.bf16 %v5350, %v5350
      %v5492 = vpack.c.bf16 %v5352, %v5352
      %v5493 = vpack.c.bf16 %v5355, %v5355
      %v5494 = vpack.c.bf16 %v5357, %v5357
      %v5495 = vpack.c.bf16 %v5360, %v5360
      %v5496 = vpack.c.bf16 %v5362, %v5362
      %v5497 = vpack.c.bf16 %v5365, %v5365
      %v5498 = vpack.c.bf16 %v5367, %v5367
      %v5499 = vpack.c.bf16 %v5370, %v5370
      %v5500 = vpack.c.bf16 %v5372, %v5372
      %v5501 = vpack.c.bf16 %v5375, %v5375
      %v5502 = vpack.c.bf16 %v5377, %v5377
      %v5503 = vpack.c.bf16 %v5380, %v5380
      %v5504 = vpack.c.bf16 %v5382, %v5382
      %v5505 = vpack.c.bf16 %v5385, %v5385
      %v5506 = vpack.c.bf16 %v5387, %v5387
      %v5507 = vpack.c.bf16 %v5390, %v5390
      %v5508 = vpack.c.bf16 %v5392, %v5392
      %v5509 = vpack.c.bf16 %v5395, %v5395
      %v5510 = vpack.c.bf16 %v5397, %v5397
      %v5511 = vpack.c.bf16 %v5400, %v5400
      %v5512 = vpack.c.bf16 %v5402, %v5402
      %v5513 = vpack.c.bf16 %v5405, %v5405
      %v5514 = vpack.c.bf16 %v5407, %v5407
      %v5515 = vpack.c.bf16 %v5410, %v5410
      %v5516 = vpack.c.bf16 %v5412, %v5412
      %v5517 = vpack.c.bf16 %v5415, %v5415
      %v5518 = vpack.c.bf16 %v5417, %v5417
      %v5519 = vpack.c.bf16 %v5420, %v5420
      %v5520 = vpack.c.bf16 %v5422, %v5422
      %v5521 = vpack.c.bf16 %v5425, %v5425
      %v5522 = vpack.c.bf16 %v5427, %v5427
      %v5523 = vpack.c.bf16 %v5430, %v5430
      %v5524 = vpack.c.bf16 %v5432, %v5432
      %v5525 = vpack.c.bf16 %v5435, %v5435
      %v5526 = vpack.c.bf16 %v5437, %v5437
      %v5527 = vpack.c.bf16 %v5440, %v5440
      %v5528 = vpack.c.bf16 %v5442, %v5442
      %v5529 = vpack.c.bf16 %v5445, %v5445
      %v5530 = vpack.c.bf16 %v5447, %v5447
      %v5531 = vpack.c.bf16 %v5450, %v5450
      %v5532 = vpack.c.bf16 %v5452, %v5452
      %v5533 = vpack.c.bf16 %v5455, %v5455
      %v5534 = vpack.c.bf16 %v5457, %v5457
      %v5535 = vpack.c.bf16 %v5460, %v5460
      %v5536 = vpack.c.bf16 %v5462, %v5462
      %v5537 = vpack.c.bf16 %v5465, %v5465
      %v5538 = vpack.c.bf16 %v5467, %v5467
      %v5539 = vpack.c.bf16 %v5470, %v5470
      %v5540 = vpack.c.bf16 %v5472, %v5472
      %v5541 = vpack.c.bf16 %v5475, %v5475
      %v5542 = vpack.c.bf16 %v5477, %v5477
      %vm5543 = vcmask 125952
      %5544 = vst.msk [vmem:[%s334] sm:$0xf] %vm5543, %v5479
      %5545 = vst.msk [vmem:[%s334 + $0x4] sm:$0xf] %vm5543, %v5480
      %5546 = vst.msk [vmem:[%s334 + $0x8] sm:$0xf] %vm5543, %v5481
      %5547 = vst.msk [vmem:[%s334 + $0xc] sm:$0xf] %vm5543, %v5482
      %5548 = vst.msk [vmem:[%s334 + $0x10] sm:$0xf] %vm5543, %v5483
      %5549 = vst.msk [vmem:[%s334 + $0x14] sm:$0xf] %vm5543, %v5484
      %5550 = vst.msk [vmem:[%s334 + $0x18] sm:$0xf] %vm5543, %v5485
      %5551 = vst.msk [vmem:[%s334 + $0x1c] sm:$0xf] %vm5543, %v5486
      %5552 = vst.msk [vmem:[%s334 + $0x20] sm:$0xf] %vm5543, %v5487
      %5553 = vst.msk [vmem:[%s334 + $0x24] sm:$0xf] %vm5543, %v5488
      %5554 = vst.msk [vmem:[%s334 + $0x28] sm:$0xf] %vm5543, %v5489
      %5555 = vst.msk [vmem:[%s334 + $0x2c] sm:$0xf] %vm5543, %v5490
      %5556 = vst.msk [vmem:[%s334 + $0x30] sm:$0xf] %vm5543, %v5491
      %5557 = vst.msk [vmem:[%s334 + $0x34] sm:$0xf] %vm5543, %v5492
      %5558 = vst.msk [vmem:[%s334 + $0x38] sm:$0xf] %vm5543, %v5493
      %5559 = vst.msk [vmem:[%s334 + $0x3c] sm:$0xf] %vm5543, %v5494
      %5560 = vst.msk [vmem:[%s334 + $0x40] sm:$0xf] %vm5543, %v5495
      %5561 = vst.msk [vmem:[%s334 + $0x44] sm:$0xf] %vm5543, %v5496
      %5562 = vst.msk [vmem:[%s334 + $0x48] sm:$0xf] %vm5543, %v5497
      %5563 = vst.msk [vmem:[%s334 + $0x4c] sm:$0xf] %vm5543, %v5498
      %5564 = vst.msk [vmem:[%s334 + $0x50] sm:$0xf] %vm5543, %v5499
      %5565 = vst.msk [vmem:[%s334 + $0x54] sm:$0xf] %vm5543, %v5500
      %5566 = vst.msk [vmem:[%s334 + $0x58] sm:$0xf] %vm5543, %v5501
      %5567 = vst.msk [vmem:[%s334 + $0x5c] sm:$0xf] %vm5543, %v5502
      %5568 = vst.msk [vmem:[%s334 + $0x60] sm:$0xf] %vm5543, %v5503
      %5569 = vst.msk [vmem:[%s334 + $0x64] sm:$0xf] %vm5543, %v5504
      %5570 = vst.msk [vmem:[%s334 + $0x68] sm:$0xf] %vm5543, %v5505
      %5571 = vst.msk [vmem:[%s334 + $0x6c] sm:$0xf] %vm5543, %v5506
      %5572 = vst.msk [vmem:[%s334 + $0x70] sm:$0xf] %vm5543, %v5507
      %5573 = vst.msk [vmem:[%s334 + $0x74] sm:$0xf] %vm5543, %v5508
      %5574 = vst.msk [vmem:[%s334 + $0x78] sm:$0xf] %vm5543, %v5509
      %5575 = vst.msk [vmem:[%s334 + $0x7c] sm:$0xf] %vm5543, %v5510
      %5576 = vst.msk [vmem:[%s334 + $0x80] sm:$0xf] %vm5543, %v5511
      %5577 = vst.msk [vmem:[%s334 + $0x84] sm:$0xf] %vm5543, %v5512
      %5578 = vst.msk [vmem:[%s334 + $0x88] sm:$0xf] %vm5543, %v5513
      %5579 = vst.msk [vmem:[%s334 + $0x8c] sm:$0xf] %vm5543, %v5514
      %5580 = vst.msk [vmem:[%s334 + $0x90] sm:$0xf] %vm5543, %v5515
      %5581 = vst.msk [vmem:[%s334 + $0x94] sm:$0xf] %vm5543, %v5516
      %5582 = vst.msk [vmem:[%s334 + $0x98] sm:$0xf] %vm5543, %v5517
      %5583 = vst.msk [vmem:[%s334 + $0x9c] sm:$0xf] %vm5543, %v5518
      %5584 = vst.msk [vmem:[%s334 + $0xa0] sm:$0xf] %vm5543, %v5519
      %5585 = vst.msk [vmem:[%s334 + $0xa4] sm:$0xf] %vm5543, %v5520
      %5586 = vst.msk [vmem:[%s334 + $0xa8] sm:$0xf] %vm5543, %v5521
      %5587 = vst.msk [vmem:[%s334 + $0xac] sm:$0xf] %vm5543, %v5522
      %5588 = vst.msk [vmem:[%s334 + $0xb0] sm:$0xf] %vm5543, %v5523
      %5589 = vst.msk [vmem:[%s334 + $0xb4] sm:$0xf] %vm5543, %v5524
      %5590 = vst.msk [vmem:[%s334 + $0xb8] sm:$0xf] %vm5543, %v5525
      %5591 = vst.msk [vmem:[%s334 + $0xbc] sm:$0xf] %vm5543, %v5526
      %5592 = vst.msk [vmem:[%s334 + $0xc0] sm:$0xf] %vm5543, %v5527
      %5593 = vst.msk [vmem:[%s334 + $0xc4] sm:$0xf] %vm5543, %v5528
      %5594 = vst.msk [vmem:[%s334 + $0xc8] sm:$0xf] %vm5543, %v5529
      %5595 = vst.msk [vmem:[%s334 + $0xcc] sm:$0xf] %vm5543, %v5530
      %5596 = vst.msk [vmem:[%s334 + $0xd0] sm:$0xf] %vm5543, %v5531
      %5597 = vst.msk [vmem:[%s334 + $0xd4] sm:$0xf] %vm5543, %v5532
      %5598 = vst.msk [vmem:[%s334 + $0xd8] sm:$0xf] %vm5543, %v5533
      %5599 = vst.msk [vmem:[%s334 + $0xdc] sm:$0xf] %vm5543, %v5534
      %5600 = vst.msk [vmem:[%s334 + $0xe0] sm:$0xf] %vm5543, %v5535
      %5601 = vst.msk [vmem:[%s334 + $0xe4] sm:$0xf] %vm5543, %v5536
      %5602 = vst.msk [vmem:[%s334 + $0xe8] sm:$0xf] %vm5543, %v5537
      %5603 = vst.msk [vmem:[%s334 + $0xec] sm:$0xf] %vm5543, %v5538
      %5604 = vst.msk [vmem:[%s334 + $0xf0] sm:$0xf] %vm5543, %v5539
      %5605 = vst.msk [vmem:[%s334 + $0xf4] sm:$0xf] %vm5543, %v5540
      %5606 = vst.msk [vmem:[%s334 + $0xf8] sm:$0xf] %vm5543, %v5541
      %5607 = vst.msk [vmem:[%s334 + $0xfc] sm:$0xf] %vm5543, %v5542
      %s5608 = smul.u32 64, %s20
      %p5609 = scmp.lt.s32.totalorder %s5608, 127
      %s5610 = scalar_select %p5609, %s5608, 127
      %s5611 = smul.addr %s5610, 4
      %s5612 = scalar_lea.vmem %s9, %s5611
      // Predicated region
      $region57: #{tpu_custom_call.1} parent=55 // pred_check
        %p5613 = pneg %p232
      $region58: #{tpu_custom_call.1} parent=55 // pred_check_branch
        %5615 = sbr.rel (%p5613) target = $region60
      $region59: #{tpu_custom_call.1} parent=55 // pred_region
        %s5616 = smul.u32 64, %s20
      $region60: #{tpu_custom_call.1} parent=55 // pred_fallthru
        _
    $region56: #{tpu_custom_call.1} parent=5 // pred_fallthru
      _
    %p5617 = scmp.le.s32.totalorder 2, %s15
    // Predicated region
    $region61: #{tpu_custom_call.1} parent=5 // pred_check
      %p5618 = pneg %p5617
    $region62: #{tpu_custom_call.1} parent=5 // pred_check_branch
      %5620 = sbr.rel (%p5618) target = $region64
    $region63: #{tpu_custom_call.1} parent=5 // pred_region
      %s5621 = ssub.s32 %s15, 2
      // Predicated region
      $region65: #{tpu_custom_call.1} parent=63 // pred_check
        %p5622 = pneg %p238
      $region66: #{tpu_custom_call.1} parent=63 // pred_check_branch
        %5624 = sbr.rel (%p5622) target = $region68
      $region67: #{tpu_custom_call.1} parent=63 // pred_region
        %s5625 = smul.u32 64, %s21
        %p5626 = scmp.lt.s32.totalorder %s5625, 127
        %s5627 = scalar_select %p5626, %s5625, 127
        %s5628 = smul.addr %s5627, 4
        %s5629 = scalar_lea.vmem %s9, %s5628
      $region68: #{tpu_custom_call.1} parent=63 // pred_fallthru
        _
    $region64: #{tpu_custom_call.1} parent=5 // pred_fallthru
      _
  $region6: #{tpu_custom_call.1} parent=0 // loop_footer
    %s19 = sadd.s32 1, %s15
  $region7: #{tpu_custom_call.1} parent=0 // loop_footer_branch
    %14 = sbr.rel target = $region3
  $region8: #{tpu_custom_call.1} parent=0 // loop_exit
    _

</llo_original>
